<compile_context>
chip_gen: v7x
topology: tpu7x:2x2x1
jax: 0.10.0
libtpu: 0.0.40
codegen_flags: <defaults>
</compile_context>

<pallas_src>
import jax
import jax.numpy as jnp
from jax import lax
from jax.experimental import pallas as pl
from jax.experimental.pallas import tpu as pltpu

N_EMBD = 384
N_HEAD = 6
HEAD_SIZE = N_EMBD // N_HEAD      # 64
BLOCK_SIZE = 8                    # T (sequence length); power of 2 (mask uses & (T-1))
PAIR = 2 * HEAD_SIZE              # 128 -> lane-aligned head pairs


def mha_kernel(x_ref, wqkv_ref, wp2_ref, bp2_ref, o_ref):
    x = x_ref[...]                                # (M, C) bf16, M = B*T
    M, C = x.shape

    # ---- fused QKV: one (M,C) @ (C,3C) bf16 matmul, f32 accumulation --------
    # Q columns of wqkv are pre-scaled by n_embd**-0.5 on the host.
    qkv = jnp.dot(x, wqkv_ref[...], preferred_element_type=jnp.float32)   # (M, 3C)
    q = qkv[:, :C]                                # lane-aligned slices (384/768)
    k = qkv[:, C:2 * C]
    v = qkv[:, 2 * C:]

    # lane masks selecting the low / high head of a 128-lane pair (VPU-only)
    lane = lax.broadcasted_iota(jnp.int32, (1, PAIR), 1)
    m_lo = (lane < HEAD_SIZE).astype(jnp.float32)
    m_hi = 1.0 - m_lo

    # block-diagonal causal mask over the flattened (batch*time) rows:
    # col must be in the same sequence block as row AND col <= row.
    row = lax.broadcasted_iota(jnp.int32, (M, M), 0)
    col = lax.broadcasted_iota(jnp.int32, (M, M), 1)
    blk_start = row - (row & (BLOCK_SIZE - 1))    # first row of this sequence
    mask = (col >= blk_start) & (col <= row)

    def softmax_causal(s):
        s = jnp.where(mask, s, jnp.float32(-jnp.inf))
        s = s - jnp.max(s, axis=-1, keepdims=True)
        e = jnp.exp(s)
        return e * pl.reciprocal(jnp.sum(e, axis=-1, keepdims=True), approx=True)

    # contract last dims (avoids materializing an explicit transpose of k)
    dn_qk = (((1,), (1,)), ((), ()))

    # ---- attention, two heads at a time (128-lane aligned), partial proj ----
    acc = jnp.zeros((M, C), jnp.float32)
    for p_idx in range(N_HEAD // 2):
        lo = p_idx * PAIR
        qp = q[:, lo:lo + PAIR]                   # (M, 128) aligned, f32
        kp = k[:, lo:lo + PAIR].astype(jnp.bfloat16)
        vp = v[:, lo:lo + PAIR]

        s0 = lax.dot_general((qp * m_lo).astype(jnp.bfloat16), kp, dn_qk,
                             preferred_element_type=jnp.float32)
        s1 = lax.dot_general((qp * m_hi).astype(jnp.bfloat16), kp, dn_qk,
                             preferred_element_type=jnp.float32)
        p0 = softmax_causal(s0).astype(jnp.bfloat16)
        p1 = softmax_causal(s1).astype(jnp.bfloat16)
        # lanes 0:64 <- head 2p output, lanes 64:128 <- head 2p+1 output
        out_p = (jnp.dot(p0, (vp * m_lo).astype(jnp.bfloat16),
                         preferred_element_type=jnp.float32) +
                 jnp.dot(p1, (vp * m_hi).astype(jnp.bfloat16),
                         preferred_element_type=jnp.float32))
        # per-pair partial of the folded double projection (no concat / full cast)
        acc = acc + jnp.dot(out_p.astype(jnp.bfloat16), wp2_ref[lo:lo + PAIR, :],
                            preferred_element_type=jnp.float32)

    o_ref[...] = (acc + bp2_ref[...]).astype(o_ref.dtype)


def mha_forward(x, wqkv_bf16, wp2_bf16, bp2_f32):
    B, T, C = x.shape
    assert T == BLOCK_SIZE and C == N_EMBD
    # fold batch into the matmul M dimension; cast activations to bf16 once here
    x2d = x.reshape(B * T, C).astype(jnp.bfloat16)

    vspec = pl.BlockSpec(memory_space=pltpu.MemorySpace.VMEM)
    out2d = pl.pallas_call(
        mha_kernel,
        out_shape=jax.ShapeDtypeStruct((B * T, C), x.dtype),
        in_specs=[vspec, vspec, vspec, vspec],     # whole arrays resident in VMEM,
        out_specs=vspec,                           # single kernel invocation (no grid)
        compiler_params=pltpu.CompilerParams(
            vmem_limit_bytes=8 << 20,              # ~1.2 MB actual residency
        ),
    )(x2d, wqkv_bf16, wp2_bf16, bp2_f32)
    return out2d.reshape(B, T, C)


def prepare_params(wq, wk, wv, wp, bp):
    """One-time host-side weight prep: fold scale into Q, fuse QKV, fold the
    double projection, cast weights to bf16 (portable across v5e/v6e/v7x)."""
    scale = N_EMBD ** (-0.5)                       # C**-0.5, per reference
    wqkv = jnp.concatenate([wq * scale, wk, wv], axis=1).astype(jnp.bfloat16)  # (C,3C)
    wp2 = (wp @ wp).astype(jnp.bfloat16)                                       # (C,C)
    bp2 = (bp @ wp + bp).astype(jnp.float32)                                   # (1,C)
    return wqkv, wp2, bp2


def make_params(key):
    C = N_EMBD
    ks = jax.random.split(key, 5)
    s = 0.02
    # weights stored as (in_features, out_features): kernel computes x @ W.
    # columns h*64:(h+1)*64 of wq/wk/wv correspond to head h (concat order).
    wq = s * jax.random.normal(ks[0], (C, C), jnp.float32)
    wk = s * jax.random.normal(ks[1], (C, C), jnp.float32)
    wv = s * jax.random.normal(ks[2], (C, C), jnp.float32)
    wp = s * jax.random.normal(ks[3], (C, C), jnp.float32)
    bp = s * jax.random.normal(ks[4], (1, C), jnp.float32)
    return wq, wk, wv, wp, bp


def mha_reference(x, wq, wk, wv, wp, bp):
    """Pure-JAX f32 reference mirroring the PyTorch MultiHeadAttention (eval)."""
    B, T, C = x.shape
    q = x @ wq
    k = x @ wk
    v = x @ wv
    qh = q.reshape(B, T, N_HEAD, HEAD_SIZE)
    kh = k.reshape(B, T, N_HEAD, HEAD_SIZE)
    vh = v.reshape(B, T, N_HEAD, HEAD_SIZE)
    wei = jnp.einsum("bthd,bshd->bhts", qh, kh) * (C ** -0.5)
    mask = jnp.tril(jnp.ones((T, T), bool))
    wei = jnp.where(mask, wei, -jnp.inf)
    p = jax.nn.softmax(wei, axis=-1)
    out = jnp.einsum("bhts,bshd->bthd", p, vh).reshape(B, T, C)
    out = out @ wp + bp
    out = out @ wp + bp        # proj applied twice, as in the reference forward
    return out


if __name__ == "__main__":
    key = jax.random.PRNGKey(0)
    kx, kp = jax.random.split(key)
    B, T, C = 2, BLOCK_SIZE, N_EMBD
    x = jax.random.normal(kx, (B, T, C), jnp.float32)

    wq, wk, wv, wp, bp = make_params(kp)
    wqkv, wp2, bp2 = prepare_params(wq, wk, wv, wp, bp)

    out = mha_forward(x, wqkv, wp2, bp2)
    out = jax.block_until_ready(out)

    ref = mha_reference(x, wq, wk, wv, wp, bp)
    assert out.shape == (B, T, C)
    # bf16 activations/weights, folded double-proj and approx reciprocal shift
    # rounding slightly vs the f32 reference.
    assert jnp.allclose(out, ref, atol=1e-2, rtol=5e-2), "mismatch vs JAX reference"
    print("KERNEL_OK")
</pallas_src>

<mosaic_0001>
module attributes {stable_mosaic.version = 11 : i64} {
  func.func @mha_kernel(%arg0: memref<16x384xbf16, #tpu.memory_space<vmem>>, %arg1: memref<384x1152xbf16, #tpu.memory_space<vmem>>, %arg2: memref<384x384xbf16, #tpu.memory_space<vmem>>, %arg3: memref<1x384xf32, #tpu.memory_space<vmem>>, %arg4: memref<16x384xf32, #tpu.memory_space<vmem>>) attributes {dimension_semantics = [], scalar_prefetch = 0 : i64, scratch_operands = 0 : i64, tpu.core_type = #tpu.core_type<tc>} {
    %c0 = arith.constant 0 : index
    %c0_0 = arith.constant 0 : index
    %0 = vector.load %arg0[%c0, %c0_0] : memref<16x384xbf16, #tpu.memory_space<vmem>>, vector<16x384xbf16>
    %c0_1 = arith.constant 0 : index
    %c0_2 = arith.constant 0 : index
    %1 = vector.load %arg1[%c0_1, %c0_2] : memref<384x1152xbf16, #tpu.memory_space<vmem>>, vector<384x1152xbf16>
    %cst = arith.constant dense<0.000000e+00> : vector<16x1152xf32>
    %2 = tpu.matmul %0, %1, %cst {dimension_numbers = #tpu.dot_dimension_numbers<[1], [0], [0], [1], [0, 0, 1, 1], [], []>} : vector<16x384xbf16>, vector<384x1152xbf16>, vector<16x1152xf32> -> vector<16x1152xf32>
    %3 = vector.extract_strided_slice %2 {offsets = [0, 0], sizes = [16, 384], strides = [1, 1]} : vector<16x1152xf32> to vector<16x384xf32>
    %4 = vector.extract_strided_slice %2 {offsets = [0, 384], sizes = [16, 384], strides = [1, 1]} : vector<16x1152xf32> to vector<16x384xf32>
    %5 = vector.extract_strided_slice %2 {offsets = [0, 768], sizes = [16, 384], strides = [1, 1]} : vector<16x1152xf32> to vector<16x384xf32>
    %6 = tpu.iota {dimensions = array<i32: 1>} : vector<1x128xi32>
    %c64_i32 = arith.constant 64 : i32
    %7 = vector.broadcast %c64_i32 : i32 to vector<1x128xi32>
    %8 = arith.cmpi slt, %6, %7 : vector<1x128xi32>
    %9 = arith.extui %8 : vector<1x128xi1> to vector<1x128xi32>
    %10 = arith.sitofp %9 : vector<1x128xi32> to vector<1x128xf32>
    %cst_3 = arith.constant 1.000000e+00 : f32
    %11 = vector.broadcast %cst_3 : f32 to vector<1x128xf32>
    %12 = arith.subf %11, %10 : vector<1x128xf32>
    %13 = tpu.iota {dimensions = array<i32: 0>} : vector<16x16xi32>
    %14 = tpu.iota {dimensions = array<i32: 1>} : vector<16x16xi32>
    %c7_i32 = arith.constant 7 : i32
    %15 = vector.broadcast %c7_i32 : i32 to vector<16x16xi32>
    %16 = arith.andi %13, %15 : vector<16x16xi32>
    %17 = arith.subi %13, %16 : vector<16x16xi32>
    %18 = arith.cmpi sge, %14, %17 : vector<16x16xi32>
    %19 = arith.cmpi sle, %14, %13 : vector<16x16xi32>
    %20 = arith.andi %18, %19 : vector<16x16xi1>
    %cst_4 = arith.constant 0.000000e+00 : f32
    %21 = vector.broadcast %cst_4 : f32 to vector<16x384xf32>
    %22 = vector.extract_strided_slice %3 {offsets = [0, 0], sizes = [16, 128], strides = [1, 1]} : vector<16x384xf32> to vector<16x128xf32>
    %23 = vector.extract_strided_slice %4 {offsets = [0, 0], sizes = [16, 128], strides = [1, 1]} : vector<16x384xf32> to vector<16x128xf32>
    %24 = arith.truncf %23 : vector<16x128xf32> to vector<16x128xbf16>
    %25 = vector.extract_strided_slice %5 {offsets = [0, 0], sizes = [16, 128], strides = [1, 1]} : vector<16x384xf32> to vector<16x128xf32>
    %26 = vector.broadcast %10 : vector<1x128xf32> to vector<16x128xf32>
    %27 = arith.mulf %22, %26 : vector<16x128xf32>
    %28 = arith.truncf %27 : vector<16x128xf32> to vector<16x128xbf16>
    %cst_5 = arith.constant dense<0.000000e+00> : vector<16x16xf32>
    %29 = tpu.matmul %28, %24, %cst_5 {dimension_numbers = #tpu.dot_dimension_numbers<[1], [1], [0], [0], [0, 0, 1, 0], [], []>} : vector<16x128xbf16>, vector<16x128xbf16>, vector<16x16xf32> -> vector<16x16xf32>
    %30 = vector.broadcast %12 : vector<1x128xf32> to vector<16x128xf32>
    %31 = arith.mulf %22, %30 : vector<16x128xf32>
    %32 = arith.truncf %31 : vector<16x128xf32> to vector<16x128xbf16>
    %cst_6 = arith.constant dense<0.000000e+00> : vector<16x16xf32>
    %33 = tpu.matmul %32, %24, %cst_6 {dimension_numbers = #tpu.dot_dimension_numbers<[1], [1], [0], [0], [0, 0, 1, 0], [], []>} : vector<16x128xbf16>, vector<16x128xbf16>, vector<16x16xf32> -> vector<16x16xf32>
    %cst_7 = arith.constant 0xFF800000 : f32
    %34 = vector.broadcast %cst_7 : f32 to vector<16x16xf32>
    %35 = arith.select %20, %29, %34 : vector<16x16xi1>, vector<16x16xf32>
    %cst_8 = arith.constant dense<0xFF800000> : vector<16xf32>
    %36 = vector.multi_reduction <maximumf>, %35, %cst_8 [1] : vector<16x16xf32> to vector<16xf32>
    %37 = vector.shape_cast %36 : vector<16xf32> to vector<16x1xf32>
    %38 = vector.broadcast %37 : vector<16x1xf32> to vector<16x16xf32>
    %39 = arith.subf %35, %38 : vector<16x16xf32>
    %40 = math.exp %39 : vector<16x16xf32>
    %cst_9 = arith.constant dense<0.000000e+00> : vector<16xf32>
    %41 = vector.multi_reduction <add>, %40, %cst_9 [1] : vector<16x16xf32> to vector<16xf32>
    %42 = vector.shape_cast %41 : vector<16xf32> to vector<16x1xf32>
    %43 = tpu.reciprocal %42 {approx = true} : vector<16x1xf32> -> vector<16x1xf32>
    %44 = vector.broadcast %43 : vector<16x1xf32> to vector<16x16xf32>
    %45 = arith.mulf %40, %44 : vector<16x16xf32>
    %46 = arith.truncf %45 : vector<16x16xf32> to vector<16x16xbf16>
    %cst_10 = arith.constant 0xFF800000 : f32
    %47 = vector.broadcast %cst_10 : f32 to vector<16x16xf32>
    %48 = arith.select %20, %33, %47 : vector<16x16xi1>, vector<16x16xf32>
    %cst_11 = arith.constant dense<0xFF800000> : vector<16xf32>
    %49 = vector.multi_reduction <maximumf>, %48, %cst_11 [1] : vector<16x16xf32> to vector<16xf32>
    %50 = vector.shape_cast %49 : vector<16xf32> to vector<16x1xf32>
    %51 = vector.broadcast %50 : vector<16x1xf32> to vector<16x16xf32>
    %52 = arith.subf %48, %51 : vector<16x16xf32>
    %53 = math.exp %52 : vector<16x16xf32>
    %cst_12 = arith.constant dense<0.000000e+00> : vector<16xf32>
    %54 = vector.multi_reduction <add>, %53, %cst_12 [1] : vector<16x16xf32> to vector<16xf32>
    %55 = vector.shape_cast %54 : vector<16xf32> to vector<16x1xf32>
    %56 = tpu.reciprocal %55 {approx = true} : vector<16x1xf32> -> vector<16x1xf32>
    %57 = vector.broadcast %56 : vector<16x1xf32> to vector<16x16xf32>
    %58 = arith.mulf %53, %57 : vector<16x16xf32>
    %59 = arith.truncf %58 : vector<16x16xf32> to vector<16x16xbf16>
    %60 = vector.broadcast %10 : vector<1x128xf32> to vector<16x128xf32>
    %61 = arith.mulf %25, %60 : vector<16x128xf32>
    %62 = arith.truncf %61 : vector<16x128xf32> to vector<16x128xbf16>
    %cst_13 = arith.constant dense<0.000000e+00> : vector<16x128xf32>
    %63 = tpu.matmul %46, %62, %cst_13 {dimension_numbers = #tpu.dot_dimension_numbers<[1], [0], [0], [1], [0, 0, 1, 1], [], []>} : vector<16x16xbf16>, vector<16x128xbf16>, vector<16x128xf32> -> vector<16x128xf32>
    %64 = vector.broadcast %12 : vector<1x128xf32> to vector<16x128xf32>
    %65 = arith.mulf %25, %64 : vector<16x128xf32>
    %66 = arith.truncf %65 : vector<16x128xf32> to vector<16x128xbf16>
    %cst_14 = arith.constant dense<0.000000e+00> : vector<16x128xf32>
    %67 = tpu.matmul %59, %66, %cst_14 {dimension_numbers = #tpu.dot_dimension_numbers<[1], [0], [0], [1], [0, 0, 1, 1], [], []>} : vector<16x16xbf16>, vector<16x128xbf16>, vector<16x128xf32> -> vector<16x128xf32>
    %68 = arith.addf %63, %67 : vector<16x128xf32>
    %69 = arith.truncf %68 : vector<16x128xf32> to vector<16x128xbf16>
    %c0_15 = arith.constant 0 : index
    %c0_16 = arith.constant 0 : index
    %70 = vector.load %arg2[%c0_15, %c0_16] : memref<384x384xbf16, #tpu.memory_space<vmem>>, vector<128x384xbf16>
    %cst_17 = arith.constant dense<0.000000e+00> : vector<16x384xf32>
    %71 = tpu.matmul %69, %70, %cst_17 {dimension_numbers = #tpu.dot_dimension_numbers<[1], [0], [0], [1], [0, 0, 1, 1], [], []>} : vector<16x128xbf16>, vector<128x384xbf16>, vector<16x384xf32> -> vector<16x384xf32>
    %72 = arith.addf %21, %71 : vector<16x384xf32>
    %73 = vector.extract_strided_slice %3 {offsets = [0, 128], sizes = [16, 128], strides = [1, 1]} : vector<16x384xf32> to vector<16x128xf32>
    %74 = vector.extract_strided_slice %4 {offsets = [0, 128], sizes = [16, 128], strides = [1, 1]} : vector<16x384xf32> to vector<16x128xf32>
    %75 = arith.truncf %74 : vector<16x128xf32> to vector<16x128xbf16>
    %76 = vector.extract_strided_slice %5 {offsets = [0, 128], sizes = [16, 128], strides = [1, 1]} : vector<16x384xf32> to vector<16x128xf32>
    %77 = vector.broadcast %10 : vector<1x128xf32> to vector<16x128xf32>
    %78 = arith.mulf %73, %77 : vector<16x128xf32>
    %79 = arith.truncf %78 : vector<16x128xf32> to vector<16x128xbf16>
    %cst_18 = arith.constant dense<0.000000e+00> : vector<16x16xf32>
    %80 = tpu.matmul %79, %75, %cst_18 {dimension_numbers = #tpu.dot_dimension_numbers<[1], [1], [0], [0], [0, 0, 1, 0], [], []>} : vector<16x128xbf16>, vector<16x128xbf16>, vector<16x16xf32> -> vector<16x16xf32>
    %81 = vector.broadcast %12 : vector<1x128xf32> to vector<16x128xf32>
    %82 = arith.mulf %73, %81 : vector<16x128xf32>
    %83 = arith.truncf %82 : vector<16x128xf32> to vector<16x128xbf16>
    %cst_19 = arith.constant dense<0.000000e+00> : vector<16x16xf32>
    %84 = tpu.matmul %83, %75, %cst_19 {dimension_numbers = #tpu.dot_dimension_numbers<[1], [1], [0], [0], [0, 0, 1, 0], [], []>} : vector<16x128xbf16>, vector<16x128xbf16>, vector<16x16xf32> -> vector<16x16xf32>
    %cst_20 = arith.constant 0xFF800000 : f32
    %85 = vector.broadcast %cst_20 : f32 to vector<16x16xf32>
    %86 = arith.select %20, %80, %85 : vector<16x16xi1>, vector<16x16xf32>
    %cst_21 = arith.constant dense<0xFF800000> : vector<16xf32>
    %87 = vector.multi_reduction <maximumf>, %86, %cst_21 [1] : vector<16x16xf32> to vector<16xf32>
    %88 = vector.shape_cast %87 : vector<16xf32> to vector<16x1xf32>
    %89 = vector.broadcast %88 : vector<16x1xf32> to vector<16x16xf32>
    %90 = arith.subf %86, %89 : vector<16x16xf32>
    %91 = math.exp %90 : vector<16x16xf32>
    %cst_22 = arith.constant dense<0.000000e+00> : vector<16xf32>
    %92 = vector.multi_reduction <add>, %91, %cst_22 [1] : vector<16x16xf32> to vector<16xf32>
    %93 = vector.shape_cast %92 : vector<16xf32> to vector<16x1xf32>
    %94 = tpu.reciprocal %93 {approx = true} : vector<16x1xf32> -> vector<16x1xf32>
    %95 = vector.broadcast %94 : vector<16x1xf32> to vector<16x16xf32>
    %96 = arith.mulf %91, %95 : vector<16x16xf32>
    %97 = arith.truncf %96 : vector<16x16xf32> to vector<16x16xbf16>
    %cst_23 = arith.constant 0xFF800000 : f32
    %98 = vector.broadcast %cst_23 : f32 to vector<16x16xf32>
    %99 = arith.select %20, %84, %98 : vector<16x16xi1>, vector<16x16xf32>
    %cst_24 = arith.constant dense<0xFF800000> : vector<16xf32>
    %100 = vector.multi_reduction <maximumf>, %99, %cst_24 [1] : vector<16x16xf32> to vector<16xf32>
    %101 = vector.shape_cast %100 : vector<16xf32> to vector<16x1xf32>
    %102 = vector.broadcast %101 : vector<16x1xf32> to vector<16x16xf32>
    %103 = arith.subf %99, %102 : vector<16x16xf32>
    %104 = math.exp %103 : vector<16x16xf32>
    %cst_25 = arith.constant dense<0.000000e+00> : vector<16xf32>
    %105 = vector.multi_reduction <add>, %104, %cst_25 [1] : vector<16x16xf32> to vector<16xf32>
    %106 = vector.shape_cast %105 : vector<16xf32> to vector<16x1xf32>
    %107 = tpu.reciprocal %106 {approx = true} : vector<16x1xf32> -> vector<16x1xf32>
    %108 = vector.broadcast %107 : vector<16x1xf32> to vector<16x16xf32>
    %109 = arith.mulf %104, %108 : vector<16x16xf32>
    %110 = arith.truncf %109 : vector<16x16xf32> to vector<16x16xbf16>
    %111 = vector.broadcast %10 : vector<1x128xf32> to vector<16x128xf32>
    %112 = arith.mulf %76, %111 : vector<16x128xf32>
    %113 = arith.truncf %112 : vector<16x128xf32> to vector<16x128xbf16>
    %cst_26 = arith.constant dense<0.000000e+00> : vector<16x128xf32>
    %114 = tpu.matmul %97, %113, %cst_26 {dimension_numbers = #tpu.dot_dimension_numbers<[1], [0], [0], [1], [0, 0, 1, 1], [], []>} : vector<16x16xbf16>, vector<16x128xbf16>, vector<16x128xf32> -> vector<16x128xf32>
    %115 = vector.broadcast %12 : vector<1x128xf32> to vector<16x128xf32>
    %116 = arith.mulf %76, %115 : vector<16x128xf32>
    %117 = arith.truncf %116 : vector<16x128xf32> to vector<16x128xbf16>
    %cst_27 = arith.constant dense<0.000000e+00> : vector<16x128xf32>
    %118 = tpu.matmul %110, %117, %cst_27 {dimension_numbers = #tpu.dot_dimension_numbers<[1], [0], [0], [1], [0, 0, 1, 1], [], []>} : vector<16x16xbf16>, vector<16x128xbf16>, vector<16x128xf32> -> vector<16x128xf32>
    %119 = arith.addf %114, %118 : vector<16x128xf32>
    %120 = arith.truncf %119 : vector<16x128xf32> to vector<16x128xbf16>
    %c128 = arith.constant 128 : index
    %c0_28 = arith.constant 0 : index
    %121 = vector.load %arg2[%c128, %c0_28] : memref<384x384xbf16, #tpu.memory_space<vmem>>, vector<128x384xbf16>
    %cst_29 = arith.constant dense<0.000000e+00> : vector<16x384xf32>
    %122 = tpu.matmul %120, %121, %cst_29 {dimension_numbers = #tpu.dot_dimension_numbers<[1], [0], [0], [1], [0, 0, 1, 1], [], []>} : vector<16x128xbf16>, vector<128x384xbf16>, vector<16x384xf32> -> vector<16x384xf32>
    %123 = arith.addf %72, %122 : vector<16x384xf32>
    %124 = vector.extract_strided_slice %3 {offsets = [0, 256], sizes = [16, 128], strides = [1, 1]} : vector<16x384xf32> to vector<16x128xf32>
    %125 = vector.extract_strided_slice %4 {offsets = [0, 256], sizes = [16, 128], strides = [1, 1]} : vector<16x384xf32> to vector<16x128xf32>
    %126 = arith.truncf %125 : vector<16x128xf32> to vector<16x128xbf16>
    %127 = vector.extract_strided_slice %5 {offsets = [0, 256], sizes = [16, 128], strides = [1, 1]} : vector<16x384xf32> to vector<16x128xf32>
    %128 = vector.broadcast %10 : vector<1x128xf32> to vector<16x128xf32>
    %129 = arith.mulf %124, %128 : vector<16x128xf32>
    %130 = arith.truncf %129 : vector<16x128xf32> to vector<16x128xbf16>
    %cst_30 = arith.constant dense<0.000000e+00> : vector<16x16xf32>
    %131 = tpu.matmul %130, %126, %cst_30 {dimension_numbers = #tpu.dot_dimension_numbers<[1], [1], [0], [0], [0, 0, 1, 0], [], []>} : vector<16x128xbf16>, vector<16x128xbf16>, vector<16x16xf32> -> vector<16x16xf32>
    %132 = vector.broadcast %12 : vector<1x128xf32> to vector<16x128xf32>
    %133 = arith.mulf %124, %132 : vector<16x128xf32>
    %134 = arith.truncf %133 : vector<16x128xf32> to vector<16x128xbf16>
    %cst_31 = arith.constant dense<0.000000e+00> : vector<16x16xf32>
    %135 = tpu.matmul %134, %126, %cst_31 {dimension_numbers = #tpu.dot_dimension_numbers<[1], [1], [0], [0], [0, 0, 1, 0], [], []>} : vector<16x128xbf16>, vector<16x128xbf16>, vector<16x16xf32> -> vector<16x16xf32>
    %cst_32 = arith.constant 0xFF800000 : f32
    %136 = vector.broadcast %cst_32 : f32 to vector<16x16xf32>
    %137 = arith.select %20, %131, %136 : vector<16x16xi1>, vector<16x16xf32>
    %cst_33 = arith.constant dense<0xFF800000> : vector<16xf32>
    %138 = vector.multi_reduction <maximumf>, %137, %cst_33 [1] : vector<16x16xf32> to vector<16xf32>
    %139 = vector.shape_cast %138 : vector<16xf32> to vector<16x1xf32>
    %140 = vector.broadcast %139 : vector<16x1xf32> to vector<16x16xf32>
    %141 = arith.subf %137, %140 : vector<16x16xf32>
    %142 = math.exp %141 : vector<16x16xf32>
    %cst_34 = arith.constant dense<0.000000e+00> : vector<16xf32>
    %143 = vector.multi_reduction <add>, %142, %cst_34 [1] : vector<16x16xf32> to vector<16xf32>
    %144 = vector.shape_cast %143 : vector<16xf32> to vector<16x1xf32>
    %145 = tpu.reciprocal %144 {approx = true} : vector<16x1xf32> -> vector<16x1xf32>
    %146 = vector.broadcast %145 : vector<16x1xf32> to vector<16x16xf32>
    %147 = arith.mulf %142, %146 : vector<16x16xf32>
    %148 = arith.truncf %147 : vector<16x16xf32> to vector<16x16xbf16>
    %cst_35 = arith.constant 0xFF800000 : f32
    %149 = vector.broadcast %cst_35 : f32 to vector<16x16xf32>
    %150 = arith.select %20, %135, %149 : vector<16x16xi1>, vector<16x16xf32>
    %cst_36 = arith.constant dense<0xFF800000> : vector<16xf32>
    %151 = vector.multi_reduction <maximumf>, %150, %cst_36 [1] : vector<16x16xf32> to vector<16xf32>
    %152 = vector.shape_cast %151 : vector<16xf32> to vector<16x1xf32>
    %153 = vector.broadcast %152 : vector<16x1xf32> to vector<16x16xf32>
    %154 = arith.subf %150, %153 : vector<16x16xf32>
    %155 = math.exp %154 : vector<16x16xf32>
    %cst_37 = arith.constant dense<0.000000e+00> : vector<16xf32>
    %156 = vector.multi_reduction <add>, %155, %cst_37 [1] : vector<16x16xf32> to vector<16xf32>
    %157 = vector.shape_cast %156 : vector<16xf32> to vector<16x1xf32>
    %158 = tpu.reciprocal %157 {approx = true} : vector<16x1xf32> -> vector<16x1xf32>
    %159 = vector.broadcast %158 : vector<16x1xf32> to vector<16x16xf32>
    %160 = arith.mulf %155, %159 : vector<16x16xf32>
    %161 = arith.truncf %160 : vector<16x16xf32> to vector<16x16xbf16>
    %162 = vector.broadcast %10 : vector<1x128xf32> to vector<16x128xf32>
    %163 = arith.mulf %127, %162 : vector<16x128xf32>
    %164 = arith.truncf %163 : vector<16x128xf32> to vector<16x128xbf16>
    %cst_38 = arith.constant dense<0.000000e+00> : vector<16x128xf32>
    %165 = tpu.matmul %148, %164, %cst_38 {dimension_numbers = #tpu.dot_dimension_numbers<[1], [0], [0], [1], [0, 0, 1, 1], [], []>} : vector<16x16xbf16>, vector<16x128xbf16>, vector<16x128xf32> -> vector<16x128xf32>
    %166 = vector.broadcast %12 : vector<1x128xf32> to vector<16x128xf32>
    %167 = arith.mulf %127, %166 : vector<16x128xf32>
    %168 = arith.truncf %167 : vector<16x128xf32> to vector<16x128xbf16>
    %cst_39 = arith.constant dense<0.000000e+00> : vector<16x128xf32>
    %169 = tpu.matmul %161, %168, %cst_39 {dimension_numbers = #tpu.dot_dimension_numbers<[1], [0], [0], [1], [0, 0, 1, 1], [], []>} : vector<16x16xbf16>, vector<16x128xbf16>, vector<16x128xf32> -> vector<16x128xf32>
    %170 = arith.addf %165, %169 : vector<16x128xf32>
    %171 = arith.truncf %170 : vector<16x128xf32> to vector<16x128xbf16>
    %c256 = arith.constant 256 : index
    %c0_40 = arith.constant 0 : index
    %172 = vector.load %arg2[%c256, %c0_40] : memref<384x384xbf16, #tpu.memory_space<vmem>>, vector<128x384xbf16>
    %cst_41 = arith.constant dense<0.000000e+00> : vector<16x384xf32>
    %173 = tpu.matmul %171, %172, %cst_41 {dimension_numbers = #tpu.dot_dimension_numbers<[1], [0], [0], [1], [0, 0, 1, 1], [], []>} : vector<16x128xbf16>, vector<128x384xbf16>, vector<16x384xf32> -> vector<16x384xf32>
    %174 = arith.addf %123, %173 : vector<16x384xf32>
    %c0_42 = arith.constant 0 : index
    %c0_43 = arith.constant 0 : index
    %175 = vector.load %arg3[%c0_42, %c0_43] : memref<1x384xf32, #tpu.memory_space<vmem>>, vector<1x384xf32>
    %176 = vector.broadcast %175 : vector<1x384xf32> to vector<16x384xf32>
    %177 = arith.addf %174, %176 : vector<16x384xf32>
    %c0_44 = arith.constant 0 : index
    %c0_45 = arith.constant 0 : index
    %178 = vector.load %arg4[%c0_44, %c0_45] : memref<16x384xf32, #tpu.memory_space<vmem>>, vector<16x384xf32>
    tpu.vector_store %arg4[%c0_44, %c0_45], %177 {strides = array<i32>} : memref<16x384xf32, #tpu.memory_space<vmem>>, vector<16x384xf32>,
    return
  }
}

</mosaic_0001>

<llo_original>
// kernel: tpu_custom_call.1
$region0: #{tpu_custom_call.1}
  #allocation0 [shape = 'u32[]', space=smem, size = 0x4, offset = 0x4, fixed_abs, tag = 'smem constant byte address 0x4 - core index']
  #allocation1 [shape = 'u32[144,128]{1,0:T(1,128)}', space=vmem, size = 0x12000, scoped, tag = 'internal scratch']
  %s0 = inlined_call_operand.hbm [shape: bf16[16,384], index: 0, kind: input, shape index: {}]
  %s1 = inlined_call_operand.hbm [shape: bf16[384,1152], index: 1, kind: input, shape index: {}]
  %s2 = inlined_call_operand.hbm [shape: bf16[384,384], index: 2, kind: input, shape index: {}]
  %s3 = inlined_call_operand.vmem [shape: f32[1,384], index: 3, kind: input, shape index: {}]
  %s4 = inlined_call_operand.hbm [shape: f32[16,384], index: 4, kind: output, shape index: {}]
  %s5 = sld [smem:[#allocation0]]
  $region38: #{tpu_custom_call.1} parent=0
    _
  %s7 = ssub.s32 1, %s5
  %s8 = scalar_select 0, %s7, %s5
  $region1: #{tpu_custom_call.1} parent=0
    #allocation2 [shape = 'u8[12288]{0}', space=vmem, size = 0x3000, scoped, tag = 'input window, operand 0, single buffered']
    #allocation3 [shape = 's32[1]{0}', space=sflag, size = 0x4, scoped, tag = 'scoped memory for tpu_custom_call.1']
    #allocation4 [shape = 's32[1]{0}', space=sflag, size = 0x4, scoped, tag = 'scoped memory for tpu_custom_call.1']
    #allocation5 [shape = 'u8[884736]{0}', space=vmem, size = 0xd8000, scoped, tag = 'input window, operand 1, single buffered']
    #allocation6 [shape = 's32[1]{0}', space=sflag, size = 0x4, scoped, tag = 'scoped memory for tpu_custom_call.1']
    #allocation7 [shape = 'u8[294912]{0}', space=vmem, size = 0x48000, scoped, tag = 'input window, operand 2, single buffered']
    #allocation8 [shape = 'u8[24576]{0}', space=vmem, size = 0x6000, scoped, tag = 'output window, operand 0, single buffered']
    %9 = vsyncpa [#allocation3], 0
    %10 = vsyncpa [#allocation6], 0
    %11 = vsyncpa [#allocation4], 0
    // Predicated region
    $region2: #{tpu_custom_call.1} parent=1 // pred_check
      _
    $region3: #{tpu_custom_call.1} parent=1 // pred_check_branch
      %13 = sbr.rel (0) target = $region5
    $region4: #{tpu_custom_call.1} parent=1 // pred_region
      %s15 = ssub.s32 384, 384
      %16 = vsyncadd [#allocation3], %s15
      %s17 = sshll.u32 [#allocation2], 4
      %s18 = int_to_ptr.vmem [resolvable:$true] %s17
      %23 = dma.hbm_to_vmem [thread:$0]  %s0, 384, %s18, [#allocation3], 192, 192, 12
    $region5: #{tpu_custom_call.1} parent=1 // pred_fallthru
      _
    // Predicated region
    $region6: #{tpu_custom_call.1} parent=1 // pred_check
      _
    $region7: #{tpu_custom_call.1} parent=1 // pred_check_branch
      %25 = sbr.rel (0) target = $region9
    $region8: #{tpu_custom_call.1} parent=1 // pred_region
      %s27 = ssub.s32 27648, 27648
      %28 = vsyncadd [#allocation6], %s27
      %s29 = sshll.u32 [#allocation5], 4
      %s30 = int_to_ptr.vmem [resolvable:$true] %s29
      %35 = dma.hbm_to_vmem [thread:$0]  %s1, 27648, %s30, [#allocation6], 576, 576, 36
    $region9: #{tpu_custom_call.1} parent=1 // pred_fallthru
      _
    // Predicated region
    $region10: #{tpu_custom_call.1} parent=1 // pred_check
      _
    $region11: #{tpu_custom_call.1} parent=1 // pred_check_branch
      %37 = sbr.rel (0) target = $region13
    $region12: #{tpu_custom_call.1} parent=1 // pred_region
      %s39 = ssub.s32 9216, 9216
      %40 = vsyncadd [#allocation6], %s39
      %s41 = sshll.u32 [#allocation7], 4
      %s42 = int_to_ptr.vmem [resolvable:$true] %s41
      %47 = dma.hbm_to_vmem [thread:$0]  %s2, 9216, %s42, [#allocation6], 192, 192, 12
    $region13: #{tpu_custom_call.1} parent=1 // pred_fallthru
      _
    // Predicated region
    $region14: #{tpu_custom_call.1} parent=1 // pred_check
      _
    $region15: #{tpu_custom_call.1} parent=1 // pred_check_branch
      %49 = sbr.rel (0) target = $region17
    $region16: #{tpu_custom_call.1} parent=1 // pred_region
      _
    $region17: #{tpu_custom_call.1} parent=1 // pred_fallthru
      _
    // Predicated region
    $region18: #{tpu_custom_call.1} parent=1 // pred_check
      _
    $region19: #{tpu_custom_call.1} parent=1 // pred_check_branch
      %51 = sbr.rel (0) target = $region21
    $region20: #{tpu_custom_call.1} parent=1 // pred_region
      %52 = dma.done [#allocation3], 384
    $region21: #{tpu_custom_call.1} parent=1 // pred_fallthru
      _
    // Predicated region
    $region22: #{tpu_custom_call.1} parent=1 // pred_check
      _
    $region23: #{tpu_custom_call.1} parent=1 // pred_check_branch
      %54 = sbr.rel (0) target = $region25
    $region24: #{tpu_custom_call.1} parent=1 // pred_region
      %55 = dma.done [#allocation6], 27648
    $region25: #{tpu_custom_call.1} parent=1 // pred_fallthru
      _
    // Predicated region
    $region26: #{tpu_custom_call.1} parent=1 // pred_check
      _
    $region27: #{tpu_custom_call.1} parent=1 // pred_check_branch
      %57 = sbr.rel (0) target = $region29
    $region28: #{tpu_custom_call.1} parent=1 // pred_region
      %58 = dma.done [#allocation6], 9216
    $region29: #{tpu_custom_call.1} parent=1 // pred_fallthru
      _
    %v60 = vld [vmem:[#allocation2] sm:$0xff]
    %v61 = vld [vmem:[#allocation2 + $0x8] sm:$0xf]
    %v62 = vld [vmem:[#allocation2 + $0xc] sm:$0xff]
    %v63 = vld [vmem:[#allocation2 + $0x14] sm:$0xf]
    %v64 = vld [vmem:[#allocation5] sm:$0xff]
    %v65 = vld [vmem:[#allocation5 + $0x8] sm:$0xff]
    %v66 = vld [vmem:[#allocation5 + $0x10] sm:$0xff]
    %v67 = vld [vmem:[#allocation5 + $0x18] sm:$0xff]
    %v68 = vld [vmem:[#allocation5 + $0x20] sm:$0xf]
    %v69 = vld [vmem:[#allocation5 + $0x24] sm:$0xff]
    %v70 = vld [vmem:[#allocation5 + $0x2c] sm:$0xff]
    %v71 = vld [vmem:[#allocation5 + $0x34] sm:$0xff]
    %v72 = vld [vmem:[#allocation5 + $0x3c] sm:$0xff]
    %v73 = vld [vmem:[#allocation5 + $0x44] sm:$0xf]
    %v74 = vld [vmem:[#allocation5 + $0x48] sm:$0xff]
    %v75 = vld [vmem:[#allocation5 + $0x50] sm:$0xff]
    %v76 = vld [vmem:[#allocation5 + $0x58] sm:$0xff]
    %v77 = vld [vmem:[#allocation5 + $0x60] sm:$0xff]
    %v78 = vld [vmem:[#allocation5 + $0x68] sm:$0xf]
    %v79 = vld [vmem:[#allocation5 + $0x6c] sm:$0xff]
    %v80 = vld [vmem:[#allocation5 + $0x74] sm:$0xff]
    %v81 = vld [vmem:[#allocation5 + $0x7c] sm:$0xff]
    %v82 = vld [vmem:[#allocation5 + $0x84] sm:$0xff]
    %v83 = vld [vmem:[#allocation5 + $0x8c] sm:$0xf]
    %v84 = vld [vmem:[#allocation5 + $0x90] sm:$0xff]
    %v85 = vld [vmem:[#allocation5 + $0x98] sm:$0xff]
    %v86 = vld [vmem:[#allocation5 + $0xa0] sm:$0xff]
    %v87 = vld [vmem:[#allocation5 + $0xa8] sm:$0xff]
    %v88 = vld [vmem:[#allocation5 + $0xb0] sm:$0xf]
    %v89 = vld [vmem:[#allocation5 + $0xb4] sm:$0xff]
    %v90 = vld [vmem:[#allocation5 + $0xbc] sm:$0xff]
    %v91 = vld [vmem:[#allocation5 + $0xc4] sm:$0xff]
    %v92 = vld [vmem:[#allocation5 + $0xcc] sm:$0xff]
    %v93 = vld [vmem:[#allocation5 + $0xd4] sm:$0xf]
    %v94 = vld [vmem:[#allocation5 + $0xd8] sm:$0xff]
    %v95 = vld [vmem:[#allocation5 + $0xe0] sm:$0xff]
    %v96 = vld [vmem:[#allocation5 + $0xe8] sm:$0xff]
    %v97 = vld [vmem:[#allocation5 + $0xf0] sm:$0xff]
    %v98 = vld [vmem:[#allocation5 + $0xf8] sm:$0xf]
    %v99 = vld [vmem:[#allocation5 + $0xfc] sm:$0xff]
    %v100 = vld [vmem:[#allocation5 + $0x104] sm:$0xff]
    %v101 = vld [vmem:[#allocation5 + $0x10c] sm:$0xff]
    %v102 = vld [vmem:[#allocation5 + $0x114] sm:$0xff]
    %v103 = vld [vmem:[#allocation5 + $0x11c] sm:$0xf]
    %v104 = vld [vmem:[#allocation5 + $0x120] sm:$0xff]
    %v105 = vld [vmem:[#allocation5 + $0x128] sm:$0xff]
    %v106 = vld [vmem:[#allocation5 + $0x130] sm:$0xff]
    %v107 = vld [vmem:[#allocation5 + $0x138] sm:$0xff]
    %v108 = vld [vmem:[#allocation5 + $0x140] sm:$0xf]
    %v109 = vld [vmem:[#allocation5 + $0x144] sm:$0xff]
    %v110 = vld [vmem:[#allocation5 + $0x14c] sm:$0xff]
    %v111 = vld [vmem:[#allocation5 + $0x154] sm:$0xff]
    %v112 = vld [vmem:[#allocation5 + $0x15c] sm:$0xff]
    %v113 = vld [vmem:[#allocation5 + $0x164] sm:$0xf]
    %v114 = vld [vmem:[#allocation5 + $0x168] sm:$0xff]
    %v115 = vld [vmem:[#allocation5 + $0x170] sm:$0xff]
    %v116 = vld [vmem:[#allocation5 + $0x178] sm:$0xff]
    %v117 = vld [vmem:[#allocation5 + $0x180] sm:$0xff]
    %v118 = vld [vmem:[#allocation5 + $0x188] sm:$0xf]
    %v119 = vld [vmem:[#allocation5 + $0x18c] sm:$0xff]
    %v120 = vld [vmem:[#allocation5 + $0x194] sm:$0xff]
    %v121 = vld [vmem:[#allocation5 + $0x19c] sm:$0xff]
    %v122 = vld [vmem:[#allocation5 + $0x1a4] sm:$0xff]
    %v123 = vld [vmem:[#allocation5 + $0x1ac] sm:$0xf]
    %v124 = vld [vmem:[#allocation5 + $0x1b0] sm:$0xff]
    %v125 = vld [vmem:[#allocation5 + $0x1b8] sm:$0xff]
    %v126 = vld [vmem:[#allocation5 + $0x1c0] sm:$0xff]
    %v127 = vld [vmem:[#allocation5 + $0x1c8] sm:$0xff]
    %v128 = vld [vmem:[#allocation5 + $0x1d0] sm:$0xf]
    %v129 = vld [vmem:[#allocation5 + $0x1d4] sm:$0xff]
    %v130 = vld [vmem:[#allocation5 + $0x1dc] sm:$0xff]
    %v131 = vld [vmem:[#allocation5 + $0x1e4] sm:$0xff]
    %v132 = vld [vmem:[#allocation5 + $0x1ec] sm:$0xff]
    %v133 = vld [vmem:[#allocation5 + $0x1f4] sm:$0xf]
    %v134 = vld [vmem:[#allocation5 + $0x1f8] sm:$0xff]
    %v135 = vld [vmem:[#allocation5 + $0x200] sm:$0xff]
    %v136 = vld [vmem:[#allocation5 + $0x208] sm:$0xff]
    %v137 = vld [vmem:[#allocation5 + $0x210] sm:$0xff]
    %v138 = vld [vmem:[#allocation5 + $0x218] sm:$0xf]
    %v139 = vld [vmem:[#allocation5 + $0x21c] sm:$0xff]
    %v140 = vld [vmem:[#allocation5 + $0x224] sm:$0xff]
    %v141 = vld [vmem:[#allocation5 + $0x22c] sm:$0xff]
    %v142 = vld [vmem:[#allocation5 + $0x234] sm:$0xff]
    %v143 = vld [vmem:[#allocation5 + $0x23c] sm:$0xf]
    %v144 = vld [vmem:[#allocation5 + $0x240] sm:$0xff]
    %v145 = vld [vmem:[#allocation5 + $0x248] sm:$0xff]
    %v146 = vld [vmem:[#allocation5 + $0x250] sm:$0xff]
    %v147 = vld [vmem:[#allocation5 + $0x258] sm:$0xff]
    %v148 = vld [vmem:[#allocation5 + $0x260] sm:$0xf]
    %v149 = vld [vmem:[#allocation5 + $0x264] sm:$0xff]
    %v150 = vld [vmem:[#allocation5 + $0x26c] sm:$0xff]
    %v151 = vld [vmem:[#allocation5 + $0x274] sm:$0xff]
    %v152 = vld [vmem:[#allocation5 + $0x27c] sm:$0xff]
    %v153 = vld [vmem:[#allocation5 + $0x284] sm:$0xf]
    %v154 = vld [vmem:[#allocation5 + $0x288] sm:$0xff]
    %v155 = vld [vmem:[#allocation5 + $0x290] sm:$0xff]
    %v156 = vld [vmem:[#allocation5 + $0x298] sm:$0xff]
    %v157 = vld [vmem:[#allocation5 + $0x2a0] sm:$0xff]
    %v158 = vld [vmem:[#allocation5 + $0x2a8] sm:$0xf]
    %v159 = vld [vmem:[#allocation5 + $0x2ac] sm:$0xff]
    %v160 = vld [vmem:[#allocation5 + $0x2b4] sm:$0xff]
    %v161 = vld [vmem:[#allocation5 + $0x2bc] sm:$0xff]
    %v162 = vld [vmem:[#allocation5 + $0x2c4] sm:$0xff]
    %v163 = vld [vmem:[#allocation5 + $0x2cc] sm:$0xf]
    %v164 = vld [vmem:[#allocation5 + $0x2d0] sm:$0xff]
    %v165 = vld [vmem:[#allocation5 + $0x2d8] sm:$0xff]
    %v166 = vld [vmem:[#allocation5 + $0x2e0] sm:$0xff]
    %v167 = vld [vmem:[#allocation5 + $0x2e8] sm:$0xff]
    %v168 = vld [vmem:[#allocation5 + $0x2f0] sm:$0xf]
    %v169 = vld [vmem:[#allocation5 + $0x2f4] sm:$0xff]
    %v170 = vld [vmem:[#allocation5 + $0x2fc] sm:$0xff]
    %v171 = vld [vmem:[#allocation5 + $0x304] sm:$0xff]
    %v172 = vld [vmem:[#allocation5 + $0x30c] sm:$0xff]
    %v173 = vld [vmem:[#allocation5 + $0x314] sm:$0xf]
    %v174 = vld [vmem:[#allocation5 + $0x318] sm:$0xff]
    %v175 = vld [vmem:[#allocation5 + $0x320] sm:$0xff]
    %v176 = vld [vmem:[#allocation5 + $0x328] sm:$0xff]
    %v177 = vld [vmem:[#allocation5 + $0x330] sm:$0xff]
    %v178 = vld [vmem:[#allocation5 + $0x338] sm:$0xf]
    %v179 = vld [vmem:[#allocation5 + $0x33c] sm:$0xff]
    %v180 = vld [vmem:[#allocation5 + $0x344] sm:$0xff]
    %v181 = vld [vmem:[#allocation5 + $0x34c] sm:$0xff]
    %v182 = vld [vmem:[#allocation5 + $0x354] sm:$0xff]
    %v183 = vld [vmem:[#allocation5 + $0x35c] sm:$0xf]
    %v184 = vld [vmem:[#allocation5 + $0x360] sm:$0xff]
    %v185 = vld [vmem:[#allocation5 + $0x368] sm:$0xff]
    %v186 = vld [vmem:[#allocation5 + $0x370] sm:$0xff]
    %v187 = vld [vmem:[#allocation5 + $0x378] sm:$0xff]
    %v188 = vld [vmem:[#allocation5 + $0x380] sm:$0xf]
    %v189 = vld [vmem:[#allocation5 + $0x384] sm:$0xff]
    %v190 = vld [vmem:[#allocation5 + $0x38c] sm:$0xff]
    %v191 = vld [vmem:[#allocation5 + $0x394] sm:$0xff]
    %v192 = vld [vmem:[#allocation5 + $0x39c] sm:$0xff]
    %v193 = vld [vmem:[#allocation5 + $0x3a4] sm:$0xf]
    %v194 = vld [vmem:[#allocation5 + $0x3a8] sm:$0xff]
    %v195 = vld [vmem:[#allocation5 + $0x3b0] sm:$0xff]
    %v196 = vld [vmem:[#allocation5 + $0x3b8] sm:$0xff]
    %v197 = vld [vmem:[#allocation5 + $0x3c0] sm:$0xff]
    %v198 = vld [vmem:[#allocation5 + $0x3c8] sm:$0xf]
    %v199 = vld [vmem:[#allocation5 + $0x3cc] sm:$0xff]
    %v200 = vld [vmem:[#allocation5 + $0x3d4] sm:$0xff]
    %v201 = vld [vmem:[#allocation5 + $0x3dc] sm:$0xff]
    %v202 = vld [vmem:[#allocation5 + $0x3e4] sm:$0xff]
    %v203 = vld [vmem:[#allocation5 + $0x3ec] sm:$0xf]
    %v204 = vld [vmem:[#allocation5 + $0x3f0] sm:$0xff]
    %v205 = vld [vmem:[#allocation5 + $0x3f8] sm:$0xff]
    %v206 = vld [vmem:[#allocation5 + $0x400] sm:$0xff]
    %v207 = vld [vmem:[#allocation5 + $0x408] sm:$0xff]
    %v208 = vld [vmem:[#allocation5 + $0x410] sm:$0xf]
    %v209 = vld [vmem:[#allocation5 + $0x414] sm:$0xff]
    %v210 = vld [vmem:[#allocation5 + $0x41c] sm:$0xff]
    %v211 = vld [vmem:[#allocation5 + $0x424] sm:$0xff]
    %v212 = vld [vmem:[#allocation5 + $0x42c] sm:$0xff]
    %v213 = vld [vmem:[#allocation5 + $0x434] sm:$0xf]
    %v214 = vld [vmem:[#allocation5 + $0x438] sm:$0xff]
    %v215 = vld [vmem:[#allocation5 + $0x440] sm:$0xff]
    %v216 = vld [vmem:[#allocation5 + $0x448] sm:$0xff]
    %v217 = vld [vmem:[#allocation5 + $0x450] sm:$0xff]
    %v218 = vld [vmem:[#allocation5 + $0x458] sm:$0xf]
    %v219 = vld [vmem:[#allocation5 + $0x45c] sm:$0xff]
    %v220 = vld [vmem:[#allocation5 + $0x464] sm:$0xff]
    %v221 = vld [vmem:[#allocation5 + $0x46c] sm:$0xff]
    %v222 = vld [vmem:[#allocation5 + $0x474] sm:$0xff]
    %v223 = vld [vmem:[#allocation5 + $0x47c] sm:$0xf]
    %v224 = vld [vmem:[#allocation5 + $0x480] sm:$0xff]
    %v225 = vld [vmem:[#allocation5 + $0x488] sm:$0xff]
    %v226 = vld [vmem:[#allocation5 + $0x490] sm:$0xff]
    %v227 = vld [vmem:[#allocation5 + $0x498] sm:$0xff]
    %v228 = vld [vmem:[#allocation5 + $0x4a0] sm:$0xf]
    %v229 = vld [vmem:[#allocation5 + $0x4a4] sm:$0xff]
    %v230 = vld [vmem:[#allocation5 + $0x4ac] sm:$0xff]
    %v231 = vld [vmem:[#allocation5 + $0x4b4] sm:$0xff]
    %v232 = vld [vmem:[#allocation5 + $0x4bc] sm:$0xff]
    %v233 = vld [vmem:[#allocation5 + $0x4c4] sm:$0xf]
    %v234 = vld [vmem:[#allocation5 + $0x4c8] sm:$0xff]
    %v235 = vld [vmem:[#allocation5 + $0x4d0] sm:$0xff]
    %v236 = vld [vmem:[#allocation5 + $0x4d8] sm:$0xff]
    %v237 = vld [vmem:[#allocation5 + $0x4e0] sm:$0xff]
    %v238 = vld [vmem:[#allocation5 + $0x4e8] sm:$0xf]
    %v239 = vld [vmem:[#allocation5 + $0x4ec] sm:$0xff]
    %v240 = vld [vmem:[#allocation5 + $0x4f4] sm:$0xff]
    %v241 = vld [vmem:[#allocation5 + $0x4fc] sm:$0xff]
    %v242 = vld [vmem:[#allocation5 + $0x504] sm:$0xff]
    %v243 = vld [vmem:[#allocation5 + $0x50c] sm:$0xf]
    %v244 = vld [vmem:[#allocation5 + $0x510] sm:$0xff]
    %v245 = vld [vmem:[#allocation5 + $0x518] sm:$0xff]
    %v246 = vld [vmem:[#allocation5 + $0x520] sm:$0xff]
    %v247 = vld [vmem:[#allocation5 + $0x528] sm:$0xff]
    %v248 = vld [vmem:[#allocation5 + $0x530] sm:$0xf]
    %v249 = vld [vmem:[#allocation5 + $0x534] sm:$0xff]
    %v250 = vld [vmem:[#allocation5 + $0x53c] sm:$0xff]
    %v251 = vld [vmem:[#allocation5 + $0x544] sm:$0xff]
    %v252 = vld [vmem:[#allocation5 + $0x54c] sm:$0xff]
    %v253 = vld [vmem:[#allocation5 + $0x554] sm:$0xf]
    %v254 = vld [vmem:[#allocation5 + $0x558] sm:$0xff]
    %v255 = vld [vmem:[#allocation5 + $0x560] sm:$0xff]
    %v256 = vld [vmem:[#allocation5 + $0x568] sm:$0xff]
    %v257 = vld [vmem:[#allocation5 + $0x570] sm:$0xff]
    %v258 = vld [vmem:[#allocation5 + $0x578] sm:$0xf]
    %v259 = vld [vmem:[#allocation5 + $0x57c] sm:$0xff]
    %v260 = vld [vmem:[#allocation5 + $0x584] sm:$0xff]
    %v261 = vld [vmem:[#allocation5 + $0x58c] sm:$0xff]
    %v262 = vld [vmem:[#allocation5 + $0x594] sm:$0xff]
    %v263 = vld [vmem:[#allocation5 + $0x59c] sm:$0xf]
    %v264 = vld [vmem:[#allocation5 + $0x5a0] sm:$0xff]
    %v265 = vld [vmem:[#allocation5 + $0x5a8] sm:$0xff]
    %v266 = vld [vmem:[#allocation5 + $0x5b0] sm:$0xff]
    %v267 = vld [vmem:[#allocation5 + $0x5b8] sm:$0xff]
    %v268 = vld [vmem:[#allocation5 + $0x5c0] sm:$0xf]
    %v269 = vld [vmem:[#allocation5 + $0x5c4] sm:$0xff]
    %v270 = vld [vmem:[#allocation5 + $0x5cc] sm:$0xff]
    %v271 = vld [vmem:[#allocation5 + $0x5d4] sm:$0xff]
    %v272 = vld [vmem:[#allocation5 + $0x5dc] sm:$0xff]
    %v273 = vld [vmem:[#allocation5 + $0x5e4] sm:$0xf]
    %v274 = vld [vmem:[#allocation5 + $0x5e8] sm:$0xff]
    %v275 = vld [vmem:[#allocation5 + $0x5f0] sm:$0xff]
    %v276 = vld [vmem:[#allocation5 + $0x5f8] sm:$0xff]
    %v277 = vld [vmem:[#allocation5 + $0x600] sm:$0xff]
    %v278 = vld [vmem:[#allocation5 + $0x608] sm:$0xf]
    %v279 = vld [vmem:[#allocation5 + $0x60c] sm:$0xff]
    %v280 = vld [vmem:[#allocation5 + $0x614] sm:$0xff]
    %v281 = vld [vmem:[#allocation5 + $0x61c] sm:$0xff]
    %v282 = vld [vmem:[#allocation5 + $0x624] sm:$0xff]
    %v283 = vld [vmem:[#allocation5 + $0x62c] sm:$0xf]
    %v284 = vld [vmem:[#allocation5 + $0x630] sm:$0xff]
    %v285 = vld [vmem:[#allocation5 + $0x638] sm:$0xff]
    %v286 = vld [vmem:[#allocation5 + $0x640] sm:$0xff]
    %v287 = vld [vmem:[#allocation5 + $0x648] sm:$0xff]
    %v288 = vld [vmem:[#allocation5 + $0x650] sm:$0xf]
    %v289 = vld [vmem:[#allocation5 + $0x654] sm:$0xff]
    %v290 = vld [vmem:[#allocation5 + $0x65c] sm:$0xff]
    %v291 = vld [vmem:[#allocation5 + $0x664] sm:$0xff]
    %v292 = vld [vmem:[#allocation5 + $0x66c] sm:$0xff]
    %v293 = vld [vmem:[#allocation5 + $0x674] sm:$0xf]
    %v294 = vld [vmem:[#allocation5 + $0x678] sm:$0xff]
    %v295 = vld [vmem:[#allocation5 + $0x680] sm:$0xff]
    %v296 = vld [vmem:[#allocation5 + $0x688] sm:$0xff]
    %v297 = vld [vmem:[#allocation5 + $0x690] sm:$0xff]
    %v298 = vld [vmem:[#allocation5 + $0x698] sm:$0xf]
    %v299 = vld [vmem:[#allocation5 + $0x69c] sm:$0xff]
    %v300 = vld [vmem:[#allocation5 + $0x6a4] sm:$0xff]
    %v301 = vld [vmem:[#allocation5 + $0x6ac] sm:$0xff]
    %v302 = vld [vmem:[#allocation5 + $0x6b4] sm:$0xff]
    %v303 = vld [vmem:[#allocation5 + $0x6bc] sm:$0xf]
    %v308 = vunpack.c.l.b16 %v60
    %v309 = vunpack.c.h.b16 %v60
    %v310 = vunpack.c.l.b16 %v61
    %v311 = vunpack.c.l.b16 %v62
    %v312 = vunpack.c.h.b16 %v62
    %v313 = vunpack.c.l.b16 %v63
    %v314 = vpack.c.b16 %v311, %v308
    %v315 = vpack.c.b16 %v312, %v309
    %v316 = vpack.c.b16 %v313, %v310
    %v560 = vunpack.c.l.b16 %v64
    %v561 = vunpack.c.h.b16 %v64
    %v562 = vunpack.c.l.b16 %v65
    %v563 = vunpack.c.h.b16 %v65
    %v564 = vunpack.c.l.b16 %v66
    %v565 = vunpack.c.h.b16 %v66
    %v566 = vunpack.c.l.b16 %v67
    %v567 = vunpack.c.h.b16 %v67
    %v568 = vunpack.c.l.b16 %v68
    %v569 = vunpack.c.l.b16 %v69
    %v570 = vunpack.c.h.b16 %v69
    %v571 = vunpack.c.l.b16 %v70
    %v572 = vunpack.c.h.b16 %v70
    %v573 = vunpack.c.l.b16 %v71
    %v574 = vunpack.c.h.b16 %v71
    %v575 = vunpack.c.l.b16 %v72
    %v576 = vunpack.c.h.b16 %v72
    %v577 = vunpack.c.l.b16 %v73
    %v578 = vunpack.c.l.b16 %v74
    %v579 = vunpack.c.h.b16 %v74
    %v580 = vunpack.c.l.b16 %v75
    %v581 = vunpack.c.h.b16 %v75
    %v582 = vunpack.c.l.b16 %v76
    %v583 = vunpack.c.h.b16 %v76
    %v584 = vunpack.c.l.b16 %v77
    %v585 = vunpack.c.h.b16 %v77
    %v586 = vunpack.c.l.b16 %v78
    %v587 = vunpack.c.l.b16 %v79
    %v588 = vunpack.c.h.b16 %v79
    %v589 = vunpack.c.l.b16 %v80
    %v590 = vunpack.c.h.b16 %v80
    %v591 = vunpack.c.l.b16 %v81
    %v592 = vunpack.c.h.b16 %v81
    %v593 = vunpack.c.l.b16 %v82
    %v594 = vunpack.c.h.b16 %v82
    %v595 = vunpack.c.l.b16 %v83
    %v596 = vunpack.c.l.b16 %v84
    %v597 = vunpack.c.h.b16 %v84
    %v598 = vunpack.c.l.b16 %v85
    %v599 = vunpack.c.h.b16 %v85
    %v600 = vunpack.c.l.b16 %v86
    %v601 = vunpack.c.h.b16 %v86
    %v602 = vunpack.c.l.b16 %v87
    %v603 = vunpack.c.h.b16 %v87
    %v604 = vunpack.c.l.b16 %v88
    %v605 = vunpack.c.l.b16 %v89
    %v606 = vunpack.c.h.b16 %v89
    %v607 = vunpack.c.l.b16 %v90
    %v608 = vunpack.c.h.b16 %v90
    %v609 = vunpack.c.l.b16 %v91
    %v610 = vunpack.c.h.b16 %v91
    %v611 = vunpack.c.l.b16 %v92
    %v612 = vunpack.c.h.b16 %v92
    %v613 = vunpack.c.l.b16 %v93
    %v614 = vunpack.c.l.b16 %v94
    %v615 = vunpack.c.h.b16 %v94
    %v616 = vunpack.c.l.b16 %v95
    %v617 = vunpack.c.h.b16 %v95
    %v618 = vunpack.c.l.b16 %v96
    %v619 = vunpack.c.h.b16 %v96
    %v620 = vunpack.c.l.b16 %v97
    %v621 = vunpack.c.h.b16 %v97
    %v622 = vunpack.c.l.b16 %v98
    %v623 = vunpack.c.l.b16 %v99
    %v624 = vunpack.c.h.b16 %v99
    %v625 = vunpack.c.l.b16 %v100
    %v626 = vunpack.c.h.b16 %v100
    %v627 = vunpack.c.l.b16 %v101
    %v628 = vunpack.c.h.b16 %v101
    %v629 = vunpack.c.l.b16 %v102
    %v630 = vunpack.c.h.b16 %v102
    %v631 = vunpack.c.l.b16 %v103
    %v632 = vunpack.c.l.b16 %v104
    %v633 = vunpack.c.h.b16 %v104
    %v634 = vunpack.c.l.b16 %v105
    %v635 = vunpack.c.h.b16 %v105
    %v636 = vunpack.c.l.b16 %v106
    %v637 = vunpack.c.h.b16 %v106
    %v638 = vunpack.c.l.b16 %v107
    %v639 = vunpack.c.h.b16 %v107
    %v640 = vunpack.c.l.b16 %v108
    %v641 = vunpack.c.l.b16 %v109
    %v642 = vunpack.c.h.b16 %v109
    %v643 = vunpack.c.l.b16 %v110
    %v644 = vunpack.c.h.b16 %v110
    %v645 = vunpack.c.l.b16 %v111
    %v646 = vunpack.c.h.b16 %v111
    %v647 = vunpack.c.l.b16 %v112
    %v648 = vunpack.c.h.b16 %v112
    %v649 = vunpack.c.l.b16 %v113
    %v650 = vunpack.c.l.b16 %v114
    %v651 = vunpack.c.h.b16 %v114
    %v652 = vunpack.c.l.b16 %v115
    %v653 = vunpack.c.h.b16 %v115
    %v654 = vunpack.c.l.b16 %v116
    %v655 = vunpack.c.h.b16 %v116
    %v656 = vunpack.c.l.b16 %v117
    %v657 = vunpack.c.h.b16 %v117
    %v658 = vunpack.c.l.b16 %v118
    %v659 = vunpack.c.l.b16 %v119
    %v660 = vunpack.c.h.b16 %v119
    %v661 = vunpack.c.l.b16 %v120
    %v662 = vunpack.c.h.b16 %v120
    %v663 = vunpack.c.l.b16 %v121
    %v664 = vunpack.c.h.b16 %v121
    %v665 = vunpack.c.l.b16 %v122
    %v666 = vunpack.c.h.b16 %v122
    %v667 = vunpack.c.l.b16 %v123
    %v668 = vunpack.c.l.b16 %v124
    %v669 = vunpack.c.h.b16 %v124
    %v670 = vunpack.c.l.b16 %v125
    %v671 = vunpack.c.h.b16 %v125
    %v672 = vunpack.c.l.b16 %v126
    %v673 = vunpack.c.h.b16 %v126
    %v674 = vunpack.c.l.b16 %v127
    %v675 = vunpack.c.h.b16 %v127
    %v676 = vunpack.c.l.b16 %v128
    %v677 = vunpack.c.l.b16 %v129
    %v678 = vunpack.c.h.b16 %v129
    %v679 = vunpack.c.l.b16 %v130
    %v680 = vunpack.c.h.b16 %v130
    %v681 = vunpack.c.l.b16 %v131
    %v682 = vunpack.c.h.b16 %v131
    %v683 = vunpack.c.l.b16 %v132
    %v684 = vunpack.c.h.b16 %v132
    %v685 = vunpack.c.l.b16 %v133
    %v686 = vunpack.c.l.b16 %v134
    %v687 = vunpack.c.h.b16 %v134
    %v688 = vunpack.c.l.b16 %v135
    %v689 = vunpack.c.h.b16 %v135
    %v690 = vunpack.c.l.b16 %v136
    %v691 = vunpack.c.h.b16 %v136
    %v692 = vunpack.c.l.b16 %v137
    %v693 = vunpack.c.h.b16 %v137
    %v694 = vunpack.c.l.b16 %v138
    %v695 = vunpack.c.l.b16 %v139
    %v696 = vunpack.c.h.b16 %v139
    %v697 = vunpack.c.l.b16 %v140
    %v698 = vunpack.c.h.b16 %v140
    %v699 = vunpack.c.l.b16 %v141
    %v700 = vunpack.c.h.b16 %v141
    %v701 = vunpack.c.l.b16 %v142
    %v702 = vunpack.c.h.b16 %v142
    %v703 = vunpack.c.l.b16 %v143
    %v704 = vunpack.c.l.b16 %v144
    %v705 = vunpack.c.h.b16 %v144
    %v706 = vunpack.c.l.b16 %v145
    %v707 = vunpack.c.h.b16 %v145
    %v708 = vunpack.c.l.b16 %v146
    %v709 = vunpack.c.h.b16 %v146
    %v710 = vunpack.c.l.b16 %v147
    %v711 = vunpack.c.h.b16 %v147
    %v712 = vunpack.c.l.b16 %v148
    %v713 = vunpack.c.l.b16 %v149
    %v714 = vunpack.c.h.b16 %v149
    %v715 = vunpack.c.l.b16 %v150
    %v716 = vunpack.c.h.b16 %v150
    %v717 = vunpack.c.l.b16 %v151
    %v718 = vunpack.c.h.b16 %v151
    %v719 = vunpack.c.l.b16 %v152
    %v720 = vunpack.c.h.b16 %v152
    %v721 = vunpack.c.l.b16 %v153
    %v722 = vunpack.c.l.b16 %v154
    %v723 = vunpack.c.h.b16 %v154
    %v724 = vunpack.c.l.b16 %v155
    %v725 = vunpack.c.h.b16 %v155
    %v726 = vunpack.c.l.b16 %v156
    %v727 = vunpack.c.h.b16 %v156
    %v728 = vunpack.c.l.b16 %v157
    %v729 = vunpack.c.h.b16 %v157
    %v730 = vunpack.c.l.b16 %v158
    %v731 = vunpack.c.l.b16 %v159
    %v732 = vunpack.c.h.b16 %v159
    %v733 = vunpack.c.l.b16 %v160
    %v734 = vunpack.c.h.b16 %v160
    %v735 = vunpack.c.l.b16 %v161
    %v736 = vunpack.c.h.b16 %v161
    %v737 = vunpack.c.l.b16 %v162
    %v738 = vunpack.c.h.b16 %v162
    %v739 = vunpack.c.l.b16 %v163
    %v740 = vunpack.c.l.b16 %v164
    %v741 = vunpack.c.h.b16 %v164
    %v742 = vunpack.c.l.b16 %v165
    %v743 = vunpack.c.h.b16 %v165
    %v744 = vunpack.c.l.b16 %v166
    %v745 = vunpack.c.h.b16 %v166
    %v746 = vunpack.c.l.b16 %v167
    %v747 = vunpack.c.h.b16 %v167
    %v748 = vunpack.c.l.b16 %v168
    %v749 = vunpack.c.l.b16 %v169
    %v750 = vunpack.c.h.b16 %v169
    %v751 = vunpack.c.l.b16 %v170
    %v752 = vunpack.c.h.b16 %v170
    %v753 = vunpack.c.l.b16 %v171
    %v754 = vunpack.c.h.b16 %v171
    %v755 = vunpack.c.l.b16 %v172
    %v756 = vunpack.c.h.b16 %v172
    %v757 = vunpack.c.l.b16 %v173
    %v758 = vunpack.c.l.b16 %v174
    %v759 = vunpack.c.h.b16 %v174
    %v760 = vunpack.c.l.b16 %v175
    %v761 = vunpack.c.h.b16 %v175
    %v762 = vunpack.c.l.b16 %v176
    %v763 = vunpack.c.h.b16 %v176
    %v764 = vunpack.c.l.b16 %v177
    %v765 = vunpack.c.h.b16 %v177
    %v766 = vunpack.c.l.b16 %v178
    %v767 = vunpack.c.l.b16 %v179
    %v768 = vunpack.c.h.b16 %v179
    %v769 = vunpack.c.l.b16 %v180
    %v770 = vunpack.c.h.b16 %v180
    %v771 = vunpack.c.l.b16 %v181
    %v772 = vunpack.c.h.b16 %v181
    %v773 = vunpack.c.l.b16 %v182
    %v774 = vunpack.c.h.b16 %v182
    %v775 = vunpack.c.l.b16 %v183
    %v776 = vunpack.c.l.b16 %v184
    %v777 = vunpack.c.h.b16 %v184
    %v778 = vunpack.c.l.b16 %v185
    %v779 = vunpack.c.h.b16 %v185
    %v780 = vunpack.c.l.b16 %v186
    %v781 = vunpack.c.h.b16 %v186
    %v782 = vunpack.c.l.b16 %v187
    %v783 = vunpack.c.h.b16 %v187
    %v784 = vunpack.c.l.b16 %v188
    %v785 = vunpack.c.l.b16 %v189
    %v786 = vunpack.c.h.b16 %v189
    %v787 = vunpack.c.l.b16 %v190
    %v788 = vunpack.c.h.b16 %v190
    %v789 = vunpack.c.l.b16 %v191
    %v790 = vunpack.c.h.b16 %v191
    %v791 = vunpack.c.l.b16 %v192
    %v792 = vunpack.c.h.b16 %v192
    %v793 = vunpack.c.l.b16 %v193
    %v794 = vunpack.c.l.b16 %v194
    %v795 = vunpack.c.h.b16 %v194
    %v796 = vunpack.c.l.b16 %v195
    %v797 = vunpack.c.h.b16 %v195
    %v798 = vunpack.c.l.b16 %v196
    %v799 = vunpack.c.h.b16 %v196
    %v800 = vunpack.c.l.b16 %v197
    %v801 = vunpack.c.h.b16 %v197
    %v802 = vunpack.c.l.b16 %v198
    %v803 = vunpack.c.l.b16 %v199
    %v804 = vunpack.c.h.b16 %v199
    %v805 = vunpack.c.l.b16 %v200
    %v806 = vunpack.c.h.b16 %v200
    %v807 = vunpack.c.l.b16 %v201
    %v808 = vunpack.c.h.b16 %v201
    %v809 = vunpack.c.l.b16 %v202
    %v810 = vunpack.c.h.b16 %v202
    %v811 = vunpack.c.l.b16 %v203
    %v812 = vunpack.c.l.b16 %v204
    %v813 = vunpack.c.h.b16 %v204
    %v814 = vunpack.c.l.b16 %v205
    %v815 = vunpack.c.h.b16 %v205
    %v816 = vunpack.c.l.b16 %v206
    %v817 = vunpack.c.h.b16 %v206
    %v818 = vunpack.c.l.b16 %v207
    %v819 = vunpack.c.h.b16 %v207
    %v820 = vunpack.c.l.b16 %v208
    %v821 = vunpack.c.l.b16 %v209
    %v822 = vunpack.c.h.b16 %v209
    %v823 = vunpack.c.l.b16 %v210
    %v824 = vunpack.c.h.b16 %v210
    %v825 = vunpack.c.l.b16 %v211
    %v826 = vunpack.c.h.b16 %v211
    %v827 = vunpack.c.l.b16 %v212
    %v828 = vunpack.c.h.b16 %v212
    %v829 = vunpack.c.l.b16 %v213
    %v830 = vunpack.c.l.b16 %v214
    %v831 = vunpack.c.h.b16 %v214
    %v832 = vunpack.c.l.b16 %v215
    %v833 = vunpack.c.h.b16 %v215
    %v834 = vunpack.c.l.b16 %v216
    %v835 = vunpack.c.h.b16 %v216
    %v836 = vunpack.c.l.b16 %v217
    %v837 = vunpack.c.h.b16 %v217
    %v838 = vunpack.c.l.b16 %v218
    %v839 = vunpack.c.l.b16 %v219
    %v840 = vunpack.c.h.b16 %v219
    %v841 = vunpack.c.l.b16 %v220
    %v842 = vunpack.c.h.b16 %v220
    %v843 = vunpack.c.l.b16 %v221
    %v844 = vunpack.c.h.b16 %v221
    %v845 = vunpack.c.l.b16 %v222
    %v846 = vunpack.c.h.b16 %v222
    %v847 = vunpack.c.l.b16 %v223
    %v848 = vunpack.c.l.b16 %v224
    %v849 = vunpack.c.h.b16 %v224
    %v850 = vunpack.c.l.b16 %v225
    %v851 = vunpack.c.h.b16 %v225
    %v852 = vunpack.c.l.b16 %v226
    %v853 = vunpack.c.h.b16 %v226
    %v854 = vunpack.c.l.b16 %v227
    %v855 = vunpack.c.h.b16 %v227
    %v856 = vunpack.c.l.b16 %v228
    %v857 = vunpack.c.l.b16 %v229
    %v858 = vunpack.c.h.b16 %v229
    %v859 = vunpack.c.l.b16 %v230
    %v860 = vunpack.c.h.b16 %v230
    %v861 = vunpack.c.l.b16 %v231
    %v862 = vunpack.c.h.b16 %v231
    %v863 = vunpack.c.l.b16 %v232
    %v864 = vunpack.c.h.b16 %v232
    %v865 = vunpack.c.l.b16 %v233
    %v866 = vunpack.c.l.b16 %v234
    %v867 = vunpack.c.h.b16 %v234
    %v868 = vunpack.c.l.b16 %v235
    %v869 = vunpack.c.h.b16 %v235
    %v870 = vunpack.c.l.b16 %v236
    %v871 = vunpack.c.h.b16 %v236
    %v872 = vunpack.c.l.b16 %v237
    %v873 = vunpack.c.h.b16 %v237
    %v874 = vunpack.c.l.b16 %v238
    %v875 = vunpack.c.l.b16 %v239
    %v876 = vunpack.c.h.b16 %v239
    %v877 = vunpack.c.l.b16 %v240
    %v878 = vunpack.c.h.b16 %v240
    %v879 = vunpack.c.l.b16 %v241
    %v880 = vunpack.c.h.b16 %v241
    %v881 = vunpack.c.l.b16 %v242
    %v882 = vunpack.c.h.b16 %v242
    %v883 = vunpack.c.l.b16 %v243
    %v884 = vunpack.c.l.b16 %v244
    %v885 = vunpack.c.h.b16 %v244
    %v886 = vunpack.c.l.b16 %v245
    %v887 = vunpack.c.h.b16 %v245
    %v888 = vunpack.c.l.b16 %v246
    %v889 = vunpack.c.h.b16 %v246
    %v890 = vunpack.c.l.b16 %v247
    %v891 = vunpack.c.h.b16 %v247
    %v892 = vunpack.c.l.b16 %v248
    %v893 = vunpack.c.l.b16 %v249
    %v894 = vunpack.c.h.b16 %v249
    %v895 = vunpack.c.l.b16 %v250
    %v896 = vunpack.c.h.b16 %v250
    %v897 = vunpack.c.l.b16 %v251
    %v898 = vunpack.c.h.b16 %v251
    %v899 = vunpack.c.l.b16 %v252
    %v900 = vunpack.c.h.b16 %v252
    %v901 = vunpack.c.l.b16 %v253
    %v902 = vunpack.c.l.b16 %v254
    %v903 = vunpack.c.h.b16 %v254
    %v904 = vunpack.c.l.b16 %v255
    %v905 = vunpack.c.h.b16 %v255
    %v906 = vunpack.c.l.b16 %v256
    %v907 = vunpack.c.h.b16 %v256
    %v908 = vunpack.c.l.b16 %v257
    %v909 = vunpack.c.h.b16 %v257
    %v910 = vunpack.c.l.b16 %v258
    %v911 = vunpack.c.l.b16 %v259
    %v912 = vunpack.c.h.b16 %v259
    %v913 = vunpack.c.l.b16 %v260
    %v914 = vunpack.c.h.b16 %v260
    %v915 = vunpack.c.l.b16 %v261
    %v916 = vunpack.c.h.b16 %v261
    %v917 = vunpack.c.l.b16 %v262
    %v918 = vunpack.c.h.b16 %v262
    %v919 = vunpack.c.l.b16 %v263
    %v920 = vunpack.c.l.b16 %v264
    %v921 = vunpack.c.h.b16 %v264
    %v922 = vunpack.c.l.b16 %v265
    %v923 = vunpack.c.h.b16 %v265
    %v924 = vunpack.c.l.b16 %v266
    %v925 = vunpack.c.h.b16 %v266
    %v926 = vunpack.c.l.b16 %v267
    %v927 = vunpack.c.h.b16 %v267
    %v928 = vunpack.c.l.b16 %v268
    %v929 = vunpack.c.l.b16 %v269
    %v930 = vunpack.c.h.b16 %v269
    %v931 = vunpack.c.l.b16 %v270
    %v932 = vunpack.c.h.b16 %v270
    %v933 = vunpack.c.l.b16 %v271
    %v934 = vunpack.c.h.b16 %v271
    %v935 = vunpack.c.l.b16 %v272
    %v936 = vunpack.c.h.b16 %v272
    %v937 = vunpack.c.l.b16 %v273
    %v938 = vunpack.c.l.b16 %v274
    %v939 = vunpack.c.h.b16 %v274
    %v940 = vunpack.c.l.b16 %v275
    %v941 = vunpack.c.h.b16 %v275
    %v942 = vunpack.c.l.b16 %v276
    %v943 = vunpack.c.h.b16 %v276
    %v944 = vunpack.c.l.b16 %v277
    %v945 = vunpack.c.h.b16 %v277
    %v946 = vunpack.c.l.b16 %v278
    %v947 = vunpack.c.l.b16 %v279
    %v948 = vunpack.c.h.b16 %v279
    %v949 = vunpack.c.l.b16 %v280
    %v950 = vunpack.c.h.b16 %v280
    %v951 = vunpack.c.l.b16 %v281
    %v952 = vunpack.c.h.b16 %v281
    %v953 = vunpack.c.l.b16 %v282
    %v954 = vunpack.c.h.b16 %v282
    %v955 = vunpack.c.l.b16 %v283
    %v956 = vunpack.c.l.b16 %v284
    %v957 = vunpack.c.h.b16 %v284
    %v958 = vunpack.c.l.b16 %v285
    %v959 = vunpack.c.h.b16 %v285
    %v960 = vunpack.c.l.b16 %v286
    %v961 = vunpack.c.h.b16 %v286
    %v962 = vunpack.c.l.b16 %v287
    %v963 = vunpack.c.h.b16 %v287
    %v964 = vunpack.c.l.b16 %v288
    %v965 = vunpack.c.l.b16 %v289
    %v966 = vunpack.c.h.b16 %v289
    %v967 = vunpack.c.l.b16 %v290
    %v968 = vunpack.c.h.b16 %v290
    %v969 = vunpack.c.l.b16 %v291
    %v970 = vunpack.c.h.b16 %v291
    %v971 = vunpack.c.l.b16 %v292
    %v972 = vunpack.c.h.b16 %v292
    %v973 = vunpack.c.l.b16 %v293
    %v974 = vunpack.c.l.b16 %v294
    %v975 = vunpack.c.h.b16 %v294
    %v976 = vunpack.c.l.b16 %v295
    %v977 = vunpack.c.h.b16 %v295
    %v978 = vunpack.c.l.b16 %v296
    %v979 = vunpack.c.h.b16 %v296
    %v980 = vunpack.c.l.b16 %v297
    %v981 = vunpack.c.h.b16 %v297
    %v982 = vunpack.c.l.b16 %v298
    %v983 = vunpack.c.l.b16 %v299
    %v984 = vunpack.c.h.b16 %v299
    %v985 = vunpack.c.l.b16 %v300
    %v986 = vunpack.c.h.b16 %v300
    %v987 = vunpack.c.l.b16 %v301
    %v988 = vunpack.c.h.b16 %v301
    %v989 = vunpack.c.l.b16 %v302
    %v990 = vunpack.c.h.b16 %v302
    %v991 = vunpack.c.l.b16 %v303
    %v992 = vpack.c.b16 %v569, %v560
    %v993 = vpack.c.b16 %v570, %v561
    %v994 = vpack.c.b16 %v571, %v562
    %v995 = vpack.c.b16 %v572, %v563
    %v996 = vpack.c.b16 %v573, %v564
    %v997 = vpack.c.b16 %v574, %v565
    %v998 = vpack.c.b16 %v575, %v566
    %v999 = vpack.c.b16 %v576, %v567
    %v1000 = vpack.c.b16 %v577, %v568
    %v1001 = vpack.c.b16 %v587, %v578
    %v1002 = vpack.c.b16 %v588, %v579
    %v1003 = vpack.c.b16 %v589, %v580
    %v1004 = vpack.c.b16 %v590, %v581
    %v1005 = vpack.c.b16 %v591, %v582
    %v1006 = vpack.c.b16 %v592, %v583
    %v1007 = vpack.c.b16 %v593, %v584
    %v1008 = vpack.c.b16 %v594, %v585
    %v1009 = vpack.c.b16 %v595, %v586
    %v1010 = vpack.c.b16 %v605, %v596
    %v1011 = vpack.c.b16 %v606, %v597
    %v1012 = vpack.c.b16 %v607, %v598
    %v1013 = vpack.c.b16 %v608, %v599
    %v1014 = vpack.c.b16 %v609, %v600
    %v1015 = vpack.c.b16 %v610, %v601
    %v1016 = vpack.c.b16 %v611, %v602
    %v1017 = vpack.c.b16 %v612, %v603
    %v1018 = vpack.c.b16 %v613, %v604
    %v1019 = vpack.c.b16 %v623, %v614
    %v1020 = vpack.c.b16 %v624, %v615
    %v1021 = vpack.c.b16 %v625, %v616
    %v1022 = vpack.c.b16 %v626, %v617
    %v1023 = vpack.c.b16 %v627, %v618
    %v1024 = vpack.c.b16 %v628, %v619
    %v1025 = vpack.c.b16 %v629, %v620
    %v1026 = vpack.c.b16 %v630, %v621
    %v1027 = vpack.c.b16 %v631, %v622
    %v1028 = vpack.c.b16 %v641, %v632
    %v1029 = vpack.c.b16 %v642, %v633
    %v1030 = vpack.c.b16 %v643, %v634
    %v1031 = vpack.c.b16 %v644, %v635
    %v1032 = vpack.c.b16 %v645, %v636
    %v1033 = vpack.c.b16 %v646, %v637
    %v1034 = vpack.c.b16 %v647, %v638
    %v1035 = vpack.c.b16 %v648, %v639
    %v1036 = vpack.c.b16 %v649, %v640
    %v1037 = vpack.c.b16 %v659, %v650
    %v1038 = vpack.c.b16 %v660, %v651
    %v1039 = vpack.c.b16 %v661, %v652
    %v1040 = vpack.c.b16 %v662, %v653
    %v1041 = vpack.c.b16 %v663, %v654
    %v1042 = vpack.c.b16 %v664, %v655
    %v1043 = vpack.c.b16 %v665, %v656
    %v1044 = vpack.c.b16 %v666, %v657
    %v1045 = vpack.c.b16 %v667, %v658
    %v1046 = vpack.c.b16 %v677, %v668
    %v1047 = vpack.c.b16 %v678, %v669
    %v1048 = vpack.c.b16 %v679, %v670
    %v1049 = vpack.c.b16 %v680, %v671
    %v1050 = vpack.c.b16 %v681, %v672
    %v1051 = vpack.c.b16 %v682, %v673
    %v1052 = vpack.c.b16 %v683, %v674
    %v1053 = vpack.c.b16 %v684, %v675
    %v1054 = vpack.c.b16 %v685, %v676
    %v1055 = vpack.c.b16 %v695, %v686
    %v1056 = vpack.c.b16 %v696, %v687
    %v1057 = vpack.c.b16 %v697, %v688
    %v1058 = vpack.c.b16 %v698, %v689
    %v1059 = vpack.c.b16 %v699, %v690
    %v1060 = vpack.c.b16 %v700, %v691
    %v1061 = vpack.c.b16 %v701, %v692
    %v1062 = vpack.c.b16 %v702, %v693
    %v1063 = vpack.c.b16 %v703, %v694
    %v1064 = vpack.c.b16 %v713, %v704
    %v1065 = vpack.c.b16 %v714, %v705
    %v1066 = vpack.c.b16 %v715, %v706
    %v1067 = vpack.c.b16 %v716, %v707
    %v1068 = vpack.c.b16 %v717, %v708
    %v1069 = vpack.c.b16 %v718, %v709
    %v1070 = vpack.c.b16 %v719, %v710
    %v1071 = vpack.c.b16 %v720, %v711
    %v1072 = vpack.c.b16 %v721, %v712
    %v1073 = vpack.c.b16 %v731, %v722
    %v1074 = vpack.c.b16 %v732, %v723
    %v1075 = vpack.c.b16 %v733, %v724
    %v1076 = vpack.c.b16 %v734, %v725
    %v1077 = vpack.c.b16 %v735, %v726
    %v1078 = vpack.c.b16 %v736, %v727
    %v1079 = vpack.c.b16 %v737, %v728
    %v1080 = vpack.c.b16 %v738, %v729
    %v1081 = vpack.c.b16 %v739, %v730
    %v1082 = vpack.c.b16 %v749, %v740
    %v1083 = vpack.c.b16 %v750, %v741
    %v1084 = vpack.c.b16 %v751, %v742
    %v1085 = vpack.c.b16 %v752, %v743
    %v1086 = vpack.c.b16 %v753, %v744
    %v1087 = vpack.c.b16 %v754, %v745
    %v1088 = vpack.c.b16 %v755, %v746
    %v1089 = vpack.c.b16 %v756, %v747
    %v1090 = vpack.c.b16 %v757, %v748
    %v1091 = vpack.c.b16 %v767, %v758
    %v1092 = vpack.c.b16 %v768, %v759
    %v1093 = vpack.c.b16 %v769, %v760
    %v1094 = vpack.c.b16 %v770, %v761
    %v1095 = vpack.c.b16 %v771, %v762
    %v1096 = vpack.c.b16 %v772, %v763
    %v1097 = vpack.c.b16 %v773, %v764
    %v1098 = vpack.c.b16 %v774, %v765
    %v1099 = vpack.c.b16 %v775, %v766
    %v1100 = vpack.c.b16 %v785, %v776
    %v1101 = vpack.c.b16 %v786, %v777
    %v1102 = vpack.c.b16 %v787, %v778
    %v1103 = vpack.c.b16 %v788, %v779
    %v1104 = vpack.c.b16 %v789, %v780
    %v1105 = vpack.c.b16 %v790, %v781
    %v1106 = vpack.c.b16 %v791, %v782
    %v1107 = vpack.c.b16 %v792, %v783
    %v1108 = vpack.c.b16 %v793, %v784
    %v1109 = vpack.c.b16 %v803, %v794
    %v1110 = vpack.c.b16 %v804, %v795
    %v1111 = vpack.c.b16 %v805, %v796
    %v1112 = vpack.c.b16 %v806, %v797
    %v1113 = vpack.c.b16 %v807, %v798
    %v1114 = vpack.c.b16 %v808, %v799
    %v1115 = vpack.c.b16 %v809, %v800
    %v1116 = vpack.c.b16 %v810, %v801
    %v1117 = vpack.c.b16 %v811, %v802
    %v1118 = vpack.c.b16 %v821, %v812
    %v1119 = vpack.c.b16 %v822, %v813
    %v1120 = vpack.c.b16 %v823, %v814
    %v1121 = vpack.c.b16 %v824, %v815
    %v1122 = vpack.c.b16 %v825, %v816
    %v1123 = vpack.c.b16 %v826, %v817
    %v1124 = vpack.c.b16 %v827, %v818
    %v1125 = vpack.c.b16 %v828, %v819
    %v1126 = vpack.c.b16 %v829, %v820
    %v1127 = vpack.c.b16 %v839, %v830
    %v1128 = vpack.c.b16 %v840, %v831
    %v1129 = vpack.c.b16 %v841, %v832
    %v1130 = vpack.c.b16 %v842, %v833
    %v1131 = vpack.c.b16 %v843, %v834
    %v1132 = vpack.c.b16 %v844, %v835
    %v1133 = vpack.c.b16 %v845, %v836
    %v1134 = vpack.c.b16 %v846, %v837
    %v1135 = vpack.c.b16 %v847, %v838
    %v1136 = vpack.c.b16 %v857, %v848
    %v1137 = vpack.c.b16 %v858, %v849
    %v1138 = vpack.c.b16 %v859, %v850
    %v1139 = vpack.c.b16 %v860, %v851
    %v1140 = vpack.c.b16 %v861, %v852
    %v1141 = vpack.c.b16 %v862, %v853
    %v1142 = vpack.c.b16 %v863, %v854
    %v1143 = vpack.c.b16 %v864, %v855
    %v1144 = vpack.c.b16 %v865, %v856
    %v1145 = vpack.c.b16 %v875, %v866
    %v1146 = vpack.c.b16 %v876, %v867
    %v1147 = vpack.c.b16 %v877, %v868
    %v1148 = vpack.c.b16 %v878, %v869
    %v1149 = vpack.c.b16 %v879, %v870
    %v1150 = vpack.c.b16 %v880, %v871
    %v1151 = vpack.c.b16 %v881, %v872
    %v1152 = vpack.c.b16 %v882, %v873
    %v1153 = vpack.c.b16 %v883, %v874
    %v1154 = vpack.c.b16 %v893, %v884
    %v1155 = vpack.c.b16 %v894, %v885
    %v1156 = vpack.c.b16 %v895, %v886
    %v1157 = vpack.c.b16 %v896, %v887
    %v1158 = vpack.c.b16 %v897, %v888
    %v1159 = vpack.c.b16 %v898, %v889
    %v1160 = vpack.c.b16 %v899, %v890
    %v1161 = vpack.c.b16 %v900, %v891
    %v1162 = vpack.c.b16 %v901, %v892
    %v1163 = vpack.c.b16 %v911, %v902
    %v1164 = vpack.c.b16 %v912, %v903
    %v1165 = vpack.c.b16 %v913, %v904
    %v1166 = vpack.c.b16 %v914, %v905
    %v1167 = vpack.c.b16 %v915, %v906
    %v1168 = vpack.c.b16 %v916, %v907
    %v1169 = vpack.c.b16 %v917, %v908
    %v1170 = vpack.c.b16 %v918, %v909
    %v1171 = vpack.c.b16 %v919, %v910
    %v1172 = vpack.c.b16 %v929, %v920
    %v1173 = vpack.c.b16 %v930, %v921
    %v1174 = vpack.c.b16 %v931, %v922
    %v1175 = vpack.c.b16 %v932, %v923
    %v1176 = vpack.c.b16 %v933, %v924
    %v1177 = vpack.c.b16 %v934, %v925
    %v1178 = vpack.c.b16 %v935, %v926
    %v1179 = vpack.c.b16 %v936, %v927
    %v1180 = vpack.c.b16 %v937, %v928
    %v1181 = vpack.c.b16 %v947, %v938
    %v1182 = vpack.c.b16 %v948, %v939
    %v1183 = vpack.c.b16 %v949, %v940
    %v1184 = vpack.c.b16 %v950, %v941
    %v1185 = vpack.c.b16 %v951, %v942
    %v1186 = vpack.c.b16 %v952, %v943
    %v1187 = vpack.c.b16 %v953, %v944
    %v1188 = vpack.c.b16 %v954, %v945
    %v1189 = vpack.c.b16 %v955, %v946
    %v1190 = vpack.c.b16 %v965, %v956
    %v1191 = vpack.c.b16 %v966, %v957
    %v1192 = vpack.c.b16 %v967, %v958
    %v1193 = vpack.c.b16 %v968, %v959
    %v1194 = vpack.c.b16 %v969, %v960
    %v1195 = vpack.c.b16 %v970, %v961
    %v1196 = vpack.c.b16 %v971, %v962
    %v1197 = vpack.c.b16 %v972, %v963
    %v1198 = vpack.c.b16 %v973, %v964
    %v1199 = vpack.c.b16 %v983, %v974
    %v1200 = vpack.c.b16 %v984, %v975
    %v1201 = vpack.c.b16 %v985, %v976
    %v1202 = vpack.c.b16 %v986, %v977
    %v1203 = vpack.c.b16 %v987, %v978
    %v1204 = vpack.c.b16 %v988, %v979
    %v1205 = vpack.c.b16 %v989, %v980
    %v1206 = vpack.c.b16 %v990, %v981
    %v1207 = vpack.c.b16 %v991, %v982
    %1424 = vmatprep.subr.bf16.mxu0 %v993
    %1425 = vmatpush1.bf16.msra.mxu0 %v992
    %1426 = vmatprep.subr.bf16.mxu0 %v1002
    %1427 = vmatpush1.bf16.msra.mxu0 %v1001
    %1428 = vmatprep.subr.bf16.mxu0 %v1011
    %1429 = vmatpush1.bf16.msra.mxu0 %v1010
    %1430 = vmatprep.subr.bf16.mxu0 %v1020
    %1431 = vmatpush1.bf16.msra.mxu0 %v1019
    %1432 = vmatprep.subr.bf16.mxu0 %v1029
    %1433 = vmatpush1.bf16.msra.mxu0 %v1028
    %1434 = vmatprep.subr.bf16.mxu0 %v1038
    %1435 = vmatpush1.bf16.msra.mxu0 %v1037
    %1436 = vmatprep.subr.bf16.mxu0 %v1047
    %1437 = vmatpush1.bf16.msra.mxu0 %v1046
    %1438 = vmatprep.subr.bf16.mxu0 %v1056
    %1439 = vmatpush1.bf16.msra.mxu0 %v1055
    %1440 = vmatprep.subr.bf16.mxu0 %v1065
    %1441 = vmatpush1.bf16.msra.mxu0 %v1064
    %1442 = vmatprep.subr.bf16.mxu0 %v1074
    %1443 = vmatpush1.bf16.msra.mxu0 %v1073
    %1444 = vmatprep.subr.bf16.mxu0 %v1083
    %1445 = vmatpush1.bf16.msra.mxu0 %v1082
    %1446 = vmatprep.subr.bf16.mxu0 %v1092
    %1447 = vmatpush1.bf16.msra.mxu0 %v1091
    %1448 = vmatprep.subr.bf16.mxu0 %v1101
    %1449 = vmatpush1.bf16.msra.mxu0 %v1100
    %1450 = vmatprep.subr.bf16.mxu0 %v1110
    %1451 = vmatpush1.bf16.msra.mxu0 %v1109
    %1452 = vmatprep.subr.bf16.mxu0 %v1119
    %1453 = vmatpush1.bf16.msra.mxu0 %v1118
    %1454 = vmatprep.subr.bf16.mxu0 %v1128
    %1455 = vmatpush1.bf16.msra.mxu0 %v1127
    %1456 = vmatprep.mubr.bf16.mxu0 %v315
    %1457 = vmatmul.mubr.bf16.gmra.mrb[0].mxu0 %v314
    %v1458 = vpop.f32.mrb[0].mxu0
    %v1459 = vadd.f32 0.0, %v1458
    %v1460 = vpop.f32.mrb[0].mxu0
    %v1461 = vadd.f32 0.0, %v1460
    %v1462 = vpop.f32.mrb[0].mxu0
    %v1463 = vadd.f32 0.0, %v1462
    %v1464 = vpop.f32.mrb[0].mxu0
    %v1465 = vadd.f32 0.0, %v1464
    %1466 = vdwg.mxu0
    %1467 = vmatprep.subr.bf16.mxu0 %v1137
    %1468 = vmatpush1.bf16.msra.mxu0 %v1136
    %1469 = vmatprep.subr.bf16.mxu0 %v1146
    %1470 = vmatpush1.bf16.msra.mxu0 %v1145
    %1471 = vmatprep.subr.bf16.mxu0 %v1155
    %1472 = vmatpush1.bf16.msra.mxu0 %v1154
    %1473 = vmatprep.subr.bf16.mxu0 %v1164
    %1474 = vmatpush1.bf16.msra.mxu0 %v1163
    %1475 = vmatprep.subr.bf16.mxu0 %v1173
    %1476 = vmatpush1.bf16.msra.mxu0 %v1172
    %1477 = vmatprep.subr.bf16.mxu0 %v1182
    %1478 = vmatpush1.bf16.msra.mxu0 %v1181
    %1479 = vmatprep.subr.bf16.mxu0 %v1191
    %1480 = vmatpush1.bf16.msra.mxu0 %v1190
    %1481 = vmatprep.subr.bf16.mxu0 %v1200
    %1482 = vmatpush1.bf16.msra.mxu0 %v1199
    %1483 = vmatprep.subr.bf16.mxu0 0
    %1484 = vmatpush1.bf16.msra.mxu0 0
    %1485 = vmatprep.subr.bf16.mxu0 0
    %1486 = vmatpush1.bf16.msra.mxu0 0
    %1487 = vmatprep.subr.bf16.mxu0 0
    %1488 = vmatpush1.bf16.msra.mxu0 0
    %1489 = vmatprep.subr.bf16.mxu0 0
    %1490 = vmatpush1.bf16.msra.mxu0 0
    %1491 = vmatprep.subr.bf16.mxu0 0
    %1492 = vmatpush1.bf16.msra.mxu0 0
    %1493 = vmatprep.subr.bf16.mxu0 0
    %1494 = vmatpush1.bf16.msra.mxu0 0
    %1495 = vmatprep.subr.bf16.mxu0 0
    %1496 = vmatpush1.bf16.msra.mxu0 0
    %1497 = vmatprep.subr.bf16.mxu0 0
    %1498 = vmatpush1.bf16.msra.mxu0 0
    %1499 = vmatprep.mubr.bf16.mxu0 0
    %1500 = vmatmul.mubr.bf16.gmra.mrb[0].mxu0 %v316
    %v1501 = vpop.f32.mrb[0].mxu0
    %v1502 = vadd.f32 %v1459, %v1501
    %v1503 = vpop.f32.mrb[0].mxu0
    %v1504 = vadd.f32 %v1461, %v1503
    %v1505 = vpop.f32.mrb[0].mxu0
    %v1506 = vadd.f32 %v1463, %v1505
    %v1507 = vpop.f32.mrb[0].mxu0
    %v1508 = vadd.f32 %v1465, %v1507
    %1509 = vdwg.mxu0
    %1510 = vmatprep.subr.bf16.mxu0 %v995
    %1511 = vmatpush1.bf16.msra.mxu0 %v994
    %1512 = vmatprep.subr.bf16.mxu0 %v1004
    %1513 = vmatpush1.bf16.msra.mxu0 %v1003
    %1514 = vmatprep.subr.bf16.mxu0 %v1013
    %1515 = vmatpush1.bf16.msra.mxu0 %v1012
    %1516 = vmatprep.subr.bf16.mxu0 %v1022
    %1517 = vmatpush1.bf16.msra.mxu0 %v1021
    %1518 = vmatprep.subr.bf16.mxu0 %v1031
    %1519 = vmatpush1.bf16.msra.mxu0 %v1030
    %1520 = vmatprep.subr.bf16.mxu0 %v1040
    %1521 = vmatpush1.bf16.msra.mxu0 %v1039
    %1522 = vmatprep.subr.bf16.mxu0 %v1049
    %1523 = vmatpush1.bf16.msra.mxu0 %v1048
    %1524 = vmatprep.subr.bf16.mxu0 %v1058
    %1525 = vmatpush1.bf16.msra.mxu0 %v1057
    %1526 = vmatprep.subr.bf16.mxu0 %v1067
    %1527 = vmatpush1.bf16.msra.mxu0 %v1066
    %1528 = vmatprep.subr.bf16.mxu0 %v1076
    %1529 = vmatpush1.bf16.msra.mxu0 %v1075
    %1530 = vmatprep.subr.bf16.mxu0 %v1085
    %1531 = vmatpush1.bf16.msra.mxu0 %v1084
    %1532 = vmatprep.subr.bf16.mxu0 %v1094
    %1533 = vmatpush1.bf16.msra.mxu0 %v1093
    %1534 = vmatprep.subr.bf16.mxu0 %v1103
    %1535 = vmatpush1.bf16.msra.mxu0 %v1102
    %1536 = vmatprep.subr.bf16.mxu0 %v1112
    %1537 = vmatpush1.bf16.msra.mxu0 %v1111
    %1538 = vmatprep.subr.bf16.mxu0 %v1121
    %1539 = vmatpush1.bf16.msra.mxu0 %v1120
    %1540 = vmatprep.subr.bf16.mxu0 %v1130
    %1541 = vmatpush1.bf16.msra.mxu0 %v1129
    %1542 = vmatprep.mubr.bf16.mxu0 %v315
    %1543 = vmatmul.mubr.bf16.gmra.mrb[0].mxu0 %v314
    %v1544 = vpop.f32.mrb[0].mxu0
    %v1545 = vadd.f32 0.0, %v1544
    %v1546 = vpop.f32.mrb[0].mxu0
    %v1547 = vadd.f32 0.0, %v1546
    %v1548 = vpop.f32.mrb[0].mxu0
    %v1549 = vadd.f32 0.0, %v1548
    %v1550 = vpop.f32.mrb[0].mxu0
    %v1551 = vadd.f32 0.0, %v1550
    %1552 = vdwg.mxu0
    %1553 = vmatprep.subr.bf16.mxu0 %v1139
    %1554 = vmatpush1.bf16.msra.mxu0 %v1138
    %1555 = vmatprep.subr.bf16.mxu0 %v1148
    %1556 = vmatpush1.bf16.msra.mxu0 %v1147
    %1557 = vmatprep.subr.bf16.mxu0 %v1157
    %1558 = vmatpush1.bf16.msra.mxu0 %v1156
    %1559 = vmatprep.subr.bf16.mxu0 %v1166
    %1560 = vmatpush1.bf16.msra.mxu0 %v1165
    %1561 = vmatprep.subr.bf16.mxu0 %v1175
    %1562 = vmatpush1.bf16.msra.mxu0 %v1174
    %1563 = vmatprep.subr.bf16.mxu0 %v1184
    %1564 = vmatpush1.bf16.msra.mxu0 %v1183
    %1565 = vmatprep.subr.bf16.mxu0 %v1193
    %1566 = vmatpush1.bf16.msra.mxu0 %v1192
    %1567 = vmatprep.subr.bf16.mxu0 %v1202
    %1568 = vmatpush1.bf16.msra.mxu0 %v1201
    %1569 = vmatprep.subr.bf16.mxu0 0
    %1570 = vmatpush1.bf16.msra.mxu0 0
    %1571 = vmatprep.subr.bf16.mxu0 0
    %1572 = vmatpush1.bf16.msra.mxu0 0
    %1573 = vmatprep.subr.bf16.mxu0 0
    %1574 = vmatpush1.bf16.msra.mxu0 0
    %1575 = vmatprep.subr.bf16.mxu0 0
    %1576 = vmatpush1.bf16.msra.mxu0 0
    %1577 = vmatprep.subr.bf16.mxu0 0
    %1578 = vmatpush1.bf16.msra.mxu0 0
    %1579 = vmatprep.subr.bf16.mxu0 0
    %1580 = vmatpush1.bf16.msra.mxu0 0
    %1581 = vmatprep.subr.bf16.mxu0 0
    %1582 = vmatpush1.bf16.msra.mxu0 0
    %1583 = vmatprep.subr.bf16.mxu0 0
    %1584 = vmatpush1.bf16.msra.mxu0 0
    %1585 = vmatprep.mubr.bf16.mxu0 0
    %1586 = vmatmul.mubr.bf16.gmra.mrb[0].mxu0 %v316
    %v1587 = vpop.f32.mrb[0].mxu0
    %v1588 = vadd.f32 %v1545, %v1587
    %v1589 = vpop.f32.mrb[0].mxu0
    %v1590 = vadd.f32 %v1547, %v1589
    %v1591 = vpop.f32.mrb[0].mxu0
    %v1592 = vadd.f32 %v1549, %v1591
    %v1593 = vpop.f32.mrb[0].mxu0
    %v1594 = vadd.f32 %v1551, %v1593
    %1595 = vdwg.mxu0
    %1596 = vmatprep.subr.bf16.mxu0 %v997
    %1597 = vmatpush1.bf16.msra.mxu0 %v996
    %1598 = vmatprep.subr.bf16.mxu0 %v1006
    %1599 = vmatpush1.bf16.msra.mxu0 %v1005
    %1600 = vmatprep.subr.bf16.mxu0 %v1015
    %1601 = vmatpush1.bf16.msra.mxu0 %v1014
    %1602 = vmatprep.subr.bf16.mxu0 %v1024
    %1603 = vmatpush1.bf16.msra.mxu0 %v1023
    %1604 = vmatprep.subr.bf16.mxu0 %v1033
    %1605 = vmatpush1.bf16.msra.mxu0 %v1032
    %1606 = vmatprep.subr.bf16.mxu0 %v1042
    %1607 = vmatpush1.bf16.msra.mxu0 %v1041
    %1608 = vmatprep.subr.bf16.mxu0 %v1051
    %1609 = vmatpush1.bf16.msra.mxu0 %v1050
    %1610 = vmatprep.subr.bf16.mxu0 %v1060
    %1611 = vmatpush1.bf16.msra.mxu0 %v1059
    %1612 = vmatprep.subr.bf16.mxu0 %v1069
    %1613 = vmatpush1.bf16.msra.mxu0 %v1068
    %1614 = vmatprep.subr.bf16.mxu0 %v1078
    %1615 = vmatpush1.bf16.msra.mxu0 %v1077
    %1616 = vmatprep.subr.bf16.mxu0 %v1087
    %1617 = vmatpush1.bf16.msra.mxu0 %v1086
    %1618 = vmatprep.subr.bf16.mxu0 %v1096
    %1619 = vmatpush1.bf16.msra.mxu0 %v1095
    %1620 = vmatprep.subr.bf16.mxu0 %v1105
    %1621 = vmatpush1.bf16.msra.mxu0 %v1104
    %1622 = vmatprep.subr.bf16.mxu0 %v1114
    %1623 = vmatpush1.bf16.msra.mxu0 %v1113
    %1624 = vmatprep.subr.bf16.mxu0 %v1123
    %1625 = vmatpush1.bf16.msra.mxu0 %v1122
    %1626 = vmatprep.subr.bf16.mxu0 %v1132
    %1627 = vmatpush1.bf16.msra.mxu0 %v1131
    %1628 = vmatprep.mubr.bf16.mxu0 %v315
    %1629 = vmatmul.mubr.bf16.gmra.mrb[0].mxu0 %v314
    %v1630 = vpop.f32.mrb[0].mxu0
    %v1631 = vadd.f32 0.0, %v1630
    %v1632 = vpop.f32.mrb[0].mxu0
    %v1633 = vadd.f32 0.0, %v1632
    %v1634 = vpop.f32.mrb[0].mxu0
    %v1635 = vadd.f32 0.0, %v1634
    %v1636 = vpop.f32.mrb[0].mxu0
    %v1637 = vadd.f32 0.0, %v1636
    %1638 = vdwg.mxu0
    %1639 = vmatprep.subr.bf16.mxu0 %v1141
    %1640 = vmatpush1.bf16.msra.mxu0 %v1140
    %1641 = vmatprep.subr.bf16.mxu0 %v1150
    %1642 = vmatpush1.bf16.msra.mxu0 %v1149
    %1643 = vmatprep.subr.bf16.mxu0 %v1159
    %1644 = vmatpush1.bf16.msra.mxu0 %v1158
    %1645 = vmatprep.subr.bf16.mxu0 %v1168
    %1646 = vmatpush1.bf16.msra.mxu0 %v1167
    %1647 = vmatprep.subr.bf16.mxu0 %v1177
    %1648 = vmatpush1.bf16.msra.mxu0 %v1176
    %1649 = vmatprep.subr.bf16.mxu0 %v1186
    %1650 = vmatpush1.bf16.msra.mxu0 %v1185
    %1651 = vmatprep.subr.bf16.mxu0 %v1195
    %1652 = vmatpush1.bf16.msra.mxu0 %v1194
    %1653 = vmatprep.subr.bf16.mxu0 %v1204
    %1654 = vmatpush1.bf16.msra.mxu0 %v1203
    %1655 = vmatprep.subr.bf16.mxu0 0
    %1656 = vmatpush1.bf16.msra.mxu0 0
    %1657 = vmatprep.subr.bf16.mxu0 0
    %1658 = vmatpush1.bf16.msra.mxu0 0
    %1659 = vmatprep.subr.bf16.mxu0 0
    %1660 = vmatpush1.bf16.msra.mxu0 0
    %1661 = vmatprep.subr.bf16.mxu0 0
    %1662 = vmatpush1.bf16.msra.mxu0 0
    %1663 = vmatprep.subr.bf16.mxu0 0
    %1664 = vmatpush1.bf16.msra.mxu0 0
    %1665 = vmatprep.subr.bf16.mxu0 0
    %1666 = vmatpush1.bf16.msra.mxu0 0
    %1667 = vmatprep.subr.bf16.mxu0 0
    %1668 = vmatpush1.bf16.msra.mxu0 0
    %1669 = vmatprep.subr.bf16.mxu0 0
    %1670 = vmatpush1.bf16.msra.mxu0 0
    %1671 = vmatprep.mubr.bf16.mxu0 0
    %1672 = vmatmul.mubr.bf16.gmra.mrb[0].mxu0 %v316
    %v1673 = vpop.f32.mrb[0].mxu0
    %v1674 = vadd.f32 %v1631, %v1673
    %v1675 = vpop.f32.mrb[0].mxu0
    %v1676 = vadd.f32 %v1633, %v1675
    %v1677 = vpop.f32.mrb[0].mxu0
    %v1678 = vadd.f32 %v1635, %v1677
    %v1679 = vpop.f32.mrb[0].mxu0
    %v1680 = vadd.f32 %v1637, %v1679
    %1681 = vdwg.mxu0
    %1682 = vmatprep.subr.bf16.mxu0 %v999
    %1683 = vmatpush1.bf16.msra.mxu0 %v998
    %1684 = vmatprep.subr.bf16.mxu0 %v1008
    %1685 = vmatpush1.bf16.msra.mxu0 %v1007
    %1686 = vmatprep.subr.bf16.mxu0 %v1017
    %1687 = vmatpush1.bf16.msra.mxu0 %v1016
    %1688 = vmatprep.subr.bf16.mxu0 %v1026
    %1689 = vmatpush1.bf16.msra.mxu0 %v1025
    %1690 = vmatprep.subr.bf16.mxu0 %v1035
    %1691 = vmatpush1.bf16.msra.mxu0 %v1034
    %1692 = vmatprep.subr.bf16.mxu0 %v1044
    %1693 = vmatpush1.bf16.msra.mxu0 %v1043
    %1694 = vmatprep.subr.bf16.mxu0 %v1053
    %1695 = vmatpush1.bf16.msra.mxu0 %v1052
    %1696 = vmatprep.subr.bf16.mxu0 %v1062
    %1697 = vmatpush1.bf16.msra.mxu0 %v1061
    %1698 = vmatprep.subr.bf16.mxu0 %v1071
    %1699 = vmatpush1.bf16.msra.mxu0 %v1070
    %1700 = vmatprep.subr.bf16.mxu0 %v1080
    %1701 = vmatpush1.bf16.msra.mxu0 %v1079
    %1702 = vmatprep.subr.bf16.mxu0 %v1089
    %1703 = vmatpush1.bf16.msra.mxu0 %v1088
    %1704 = vmatprep.subr.bf16.mxu0 %v1098
    %1705 = vmatpush1.bf16.msra.mxu0 %v1097
    %1706 = vmatprep.subr.bf16.mxu0 %v1107
    %1707 = vmatpush1.bf16.msra.mxu0 %v1106
    %1708 = vmatprep.subr.bf16.mxu0 %v1116
    %1709 = vmatpush1.bf16.msra.mxu0 %v1115
    %1710 = vmatprep.subr.bf16.mxu0 %v1125
    %1711 = vmatpush1.bf16.msra.mxu0 %v1124
    %1712 = vmatprep.subr.bf16.mxu0 %v1134
    %1713 = vmatpush1.bf16.msra.mxu0 %v1133
    %1714 = vmatprep.mubr.bf16.mxu0 %v315
    %1715 = vmatmul.mubr.bf16.gmra.mrb[0].mxu0 %v314
    %v1716 = vpop.f32.mrb[0].mxu0
    %v1717 = vadd.f32 0.0, %v1716
    %v1718 = vpop.f32.mrb[0].mxu0
    %v1719 = vadd.f32 0.0, %v1718
    %v1720 = vpop.f32.mrb[0].mxu0
    %v1721 = vadd.f32 0.0, %v1720
    %v1722 = vpop.f32.mrb[0].mxu0
    %v1723 = vadd.f32 0.0, %v1722
    %1724 = vdwg.mxu0
    %1725 = vmatprep.subr.bf16.mxu0 %v1143
    %1726 = vmatpush1.bf16.msra.mxu0 %v1142
    %1727 = vmatprep.subr.bf16.mxu0 %v1152
    %1728 = vmatpush1.bf16.msra.mxu0 %v1151
    %1729 = vmatprep.subr.bf16.mxu0 %v1161
    %1730 = vmatpush1.bf16.msra.mxu0 %v1160
    %1731 = vmatprep.subr.bf16.mxu0 %v1170
    %1732 = vmatpush1.bf16.msra.mxu0 %v1169
    %1733 = vmatprep.subr.bf16.mxu0 %v1179
    %1734 = vmatpush1.bf16.msra.mxu0 %v1178
    %1735 = vmatprep.subr.bf16.mxu0 %v1188
    %1736 = vmatpush1.bf16.msra.mxu0 %v1187
    %1737 = vmatprep.subr.bf16.mxu0 %v1197
    %1738 = vmatpush1.bf16.msra.mxu0 %v1196
    %1739 = vmatprep.subr.bf16.mxu0 %v1206
    %1740 = vmatpush1.bf16.msra.mxu0 %v1205
    %1741 = vmatprep.subr.bf16.mxu0 0
    %1742 = vmatpush1.bf16.msra.mxu0 0
    %1743 = vmatprep.subr.bf16.mxu0 0
    %1744 = vmatpush1.bf16.msra.mxu0 0
    %1745 = vmatprep.subr.bf16.mxu0 0
    %1746 = vmatpush1.bf16.msra.mxu0 0
    %1747 = vmatprep.subr.bf16.mxu0 0
    %1748 = vmatpush1.bf16.msra.mxu0 0
    %1749 = vmatprep.subr.bf16.mxu0 0
    %1750 = vmatpush1.bf16.msra.mxu0 0
    %1751 = vmatprep.subr.bf16.mxu0 0
    %1752 = vmatpush1.bf16.msra.mxu0 0
    %1753 = vmatprep.subr.bf16.mxu0 0
    %1754 = vmatpush1.bf16.msra.mxu0 0
    %1755 = vmatprep.subr.bf16.mxu0 0
    %1756 = vmatpush1.bf16.msra.mxu0 0
    %1757 = vmatprep.mubr.bf16.mxu0 0
    %1758 = vmatmul.mubr.bf16.gmra.mrb[0].mxu0 %v316
    %v1759 = vpop.f32.mrb[0].mxu0
    %v1760 = vadd.f32 %v1717, %v1759
    %v1761 = vpop.f32.mrb[0].mxu0
    %v1762 = vadd.f32 %v1719, %v1761
    %v1763 = vpop.f32.mrb[0].mxu0
    %v1764 = vadd.f32 %v1721, %v1763
    %v1765 = vpop.f32.mrb[0].mxu0
    %v1766 = vadd.f32 %v1723, %v1765
    %1767 = vdwg.mxu0
    %1768 = vmatprep.subr.bf16.mxu0 0
    %1769 = vmatpush1.bf16.msra.mxu0 %v1000
    %1770 = vmatprep.subr.bf16.mxu0 0
    %1771 = vmatpush1.bf16.msra.mxu0 %v1009
    %1772 = vmatprep.subr.bf16.mxu0 0
    %1773 = vmatpush1.bf16.msra.mxu0 %v1018
    %1774 = vmatprep.subr.bf16.mxu0 0
    %1775 = vmatpush1.bf16.msra.mxu0 %v1027
    %1776 = vmatprep.subr.bf16.mxu0 0
    %1777 = vmatpush1.bf16.msra.mxu0 %v1036
    %1778 = vmatprep.subr.bf16.mxu0 0
    %1779 = vmatpush1.bf16.msra.mxu0 %v1045
    %1780 = vmatprep.subr.bf16.mxu0 0
    %1781 = vmatpush1.bf16.msra.mxu0 %v1054
    %1782 = vmatprep.subr.bf16.mxu0 0
    %1783 = vmatpush1.bf16.msra.mxu0 %v1063
    %1784 = vmatprep.subr.bf16.mxu0 0
    %1785 = vmatpush1.bf16.msra.mxu0 %v1072
    %1786 = vmatprep.subr.bf16.mxu0 0
    %1787 = vmatpush1.bf16.msra.mxu0 %v1081
    %1788 = vmatprep.subr.bf16.mxu0 0
    %1789 = vmatpush1.bf16.msra.mxu0 %v1090
    %1790 = vmatprep.subr.bf16.mxu0 0
    %1791 = vmatpush1.bf16.msra.mxu0 %v1099
    %1792 = vmatprep.subr.bf16.mxu0 0
    %1793 = vmatpush1.bf16.msra.mxu0 %v1108
    %1794 = vmatprep.subr.bf16.mxu0 0
    %1795 = vmatpush1.bf16.msra.mxu0 %v1117
    %1796 = vmatprep.subr.bf16.mxu0 0
    %1797 = vmatpush1.bf16.msra.mxu0 %v1126
    %1798 = vmatprep.subr.bf16.mxu0 0
    %1799 = vmatpush1.bf16.msra.mxu0 %v1135
    %1800 = vmatprep.mubr.bf16.mxu0 %v315
    %1801 = vmatmul.mubr.bf16.gmra.mrb[0].mxu0 %v314
    %v1802 = vpop.f32.mrb[0].mxu0
    %v1803 = vadd.f32 0.0, %v1802
    %v1804 = vpop.f32.mrb[0].mxu0
    %v1805 = vpop.f32.mrb[0].mxu0
    %v1806 = vadd.f32 0.0, %v1805
    %v1807 = vpop.f32.mrb[0].mxu0
    %1808 = vdwg.mxu0
    %1809 = vmatprep.subr.bf16.mxu0 0
    %1810 = vmatpush1.bf16.msra.mxu0 %v1144
    %1811 = vmatprep.subr.bf16.mxu0 0
    %1812 = vmatpush1.bf16.msra.mxu0 %v1153
    %1813 = vmatprep.subr.bf16.mxu0 0
    %1814 = vmatpush1.bf16.msra.mxu0 %v1162
    %1815 = vmatprep.subr.bf16.mxu0 0
    %1816 = vmatpush1.bf16.msra.mxu0 %v1171
    %1817 = vmatprep.subr.bf16.mxu0 0
    %1818 = vmatpush1.bf16.msra.mxu0 %v1180
    %1819 = vmatprep.subr.bf16.mxu0 0
    %1820 = vmatpush1.bf16.msra.mxu0 %v1189
    %1821 = vmatprep.subr.bf16.mxu0 0
    %1822 = vmatpush1.bf16.msra.mxu0 %v1198
    %1823 = vmatprep.subr.bf16.mxu0 0
    %1824 = vmatpush1.bf16.msra.mxu0 %v1207
    %1825 = vmatprep.subr.bf16.mxu0 0
    %1826 = vmatpush1.bf16.msra.mxu0 0
    %1827 = vmatprep.subr.bf16.mxu0 0
    %1828 = vmatpush1.bf16.msra.mxu0 0
    %1829 = vmatprep.subr.bf16.mxu0 0
    %1830 = vmatpush1.bf16.msra.mxu0 0
    %1831 = vmatprep.subr.bf16.mxu0 0
    %1832 = vmatpush1.bf16.msra.mxu0 0
    %1833 = vmatprep.subr.bf16.mxu0 0
    %1834 = vmatpush1.bf16.msra.mxu0 0
    %1835 = vmatprep.subr.bf16.mxu0 0
    %1836 = vmatpush1.bf16.msra.mxu0 0
    %1837 = vmatprep.subr.bf16.mxu0 0
    %1838 = vmatpush1.bf16.msra.mxu0 0
    %1839 = vmatprep.subr.bf16.mxu0 0
    %1840 = vmatpush1.bf16.msra.mxu0 0
    %1841 = vmatprep.mubr.bf16.mxu0 0
    %1842 = vmatmul.mubr.bf16.gmra.mrb[0].mxu0 %v316
    %v1843 = vpop.f32.mrb[0].mxu0
    %v1844 = vadd.f32 %v1803, %v1843
    %v1845 = vpop.f32.mrb[0].mxu0
    %v1846 = vpop.f32.mrb[0].mxu0
    %v1847 = vadd.f32 %v1806, %v1846
    %v1848 = vpop.f32.mrb[0].mxu0
    %1849 = vdwg.mxu0
    %v1850 = vlaneseq
    %v1851 = vand.u32 %v1850, 127
    %vm1852 = vcmp.lt.s32.totalorder %v1851, 64
    %v1853 = vsel %vm1852, 1, 0
    %v1854 = vcvt.s32.f32 %v1853
    %v1855 = vsub.f32 1.0, %v1854
    %v1856 = vlaneseq
    %v1857 = vshrl.u32 %v1856, 7
    %v1858 = vadd.s32 %v1857, 8
    %v1859 = vand.u32 %v1857, 7
    %v1860 = vand.u32 %v1858, 7
    %v1861 = vsub.s32 %v1857, %v1859
    %v1862 = vsub.s32 %v1858, %v1860
    %vm1863 = vcmp.ge.s32.totalorder %v1851, %v1861
    %vm1864 = vcmp.ge.s32.totalorder %v1851, %v1862
    %vm1865 = vcmp.le.s32.totalorder %v1851, %v1857
    %vm1866 = vcmp.le.s32.totalorder %v1851, %v1858
    %vm1867 = vmand %vm1863, %vm1865
    %vm1868 = vmand %vm1864, %vm1866
    %v1869 = vpack.c.bf16 %v1594, %v1590
    %v1870 = vmul.f32 %v1502, %v1854
    %v1871 = vmul.f32 %v1506, %v1854
    %v1872 = vpack.c.bf16 %v1871, %v1870
    %1873 = vmatprep.subr.bf16.mxu0 0
    %1874 = vmatpush1.bf16.xpose.msra.mxu0 %v1869
    %1875 = vmatprep.subr.bf16.mxu0 0
    %1876 = vmatpush1.bf16.xpose.msra.mxu0 0
    %1877 = vmatprep.subr.bf16.mxu0 0
    %1878 = vmatpush1.bf16.xpose.msra.mxu0 0
    %1879 = vmatprep.subr.bf16.mxu0 0
    %1880 = vmatpush1.bf16.xpose.msra.mxu0 0
    %1881 = vmatprep.subr.bf16.mxu0 0
    %1882 = vmatpush1.bf16.xpose.msra.mxu0 0
    %1883 = vmatprep.subr.bf16.mxu0 0
    %1884 = vmatpush1.bf16.xpose.msra.mxu0 0
    %1885 = vmatprep.subr.bf16.mxu0 0
    %1886 = vmatpush1.bf16.xpose.msra.mxu0 0
    %1887 = vmatprep.subr.bf16.mxu0 0
    %1888 = vmatpush1.bf16.xpose.msra.mxu0 0
    %1889 = vmatprep.subr.bf16.mxu0 0
    %1890 = vmatpush1.bf16.xpose.msra.mxu0 0
    %1891 = vmatprep.subr.bf16.mxu0 0
    %1892 = vmatpush1.bf16.xpose.msra.mxu0 0
    %1893 = vmatprep.subr.bf16.mxu0 0
    %1894 = vmatpush1.bf16.xpose.msra.mxu0 0
    %1895 = vmatprep.subr.bf16.mxu0 0
    %1896 = vmatpush1.bf16.xpose.msra.mxu0 0
    %1897 = vmatprep.subr.bf16.mxu0 0
    %1898 = vmatpush1.bf16.xpose.msra.mxu0 0
    %1899 = vmatprep.subr.bf16.mxu0 0
    %1900 = vmatpush1.bf16.xpose.msra.mxu0 0
    %1901 = vmatprep.subr.bf16.mxu0 0
    %1902 = vmatpush1.bf16.xpose.msra.mxu0 0
    %1903 = vmatprep.subr.bf16.mxu0 0
    %1904 = vmatpush1.bf16.xpose.msra.mxu0 0
    %1905 = vmatprep.mubr.bf16.mxu0 0
    %1906 = vmatmul.mubr.bf16.gmra.mrb[0].mxu0 %v1872
    %v1907 = vpop.f32.mrb[0].mxu0
    %v1908 = vadd.f32 0.0, %v1907
    %v1909 = vpop.f32.mrb[0].mxu0
    %v1910 = vpop.f32.mrb[0].mxu0
    %v1911 = vadd.f32 0.0, %v1910
    %v1912 = vpop.f32.mrb[0].mxu0
    %1913 = vdwg.mxu0
    %v1914 = vmul.f32 %v1502, %v1855
    %v1915 = vmul.f32 %v1506, %v1855
    %v1916 = vpack.c.bf16 %v1915, %v1914
    %1917 = vmatprep.subr.bf16.mxu0 0
    %1918 = vmatpush1.bf16.xpose.msra.mxu0 %v1869
    %1919 = vmatprep.subr.bf16.mxu0 0
    %1920 = vmatpush1.bf16.xpose.msra.mxu0 0
    %1921 = vmatprep.subr.bf16.mxu0 0
    %1922 = vmatpush1.bf16.xpose.msra.mxu0 0
    %1923 = vmatprep.subr.bf16.mxu0 0
    %1924 = vmatpush1.bf16.xpose.msra.mxu0 0
    %1925 = vmatprep.subr.bf16.mxu0 0
    %1926 = vmatpush1.bf16.xpose.msra.mxu0 0
    %1927 = vmatprep.subr.bf16.mxu0 0
    %1928 = vmatpush1.bf16.xpose.msra.mxu0 0
    %1929 = vmatprep.subr.bf16.mxu0 0
    %1930 = vmatpush1.bf16.xpose.msra.mxu0 0
    %1931 = vmatprep.subr.bf16.mxu0 0
    %1932 = vmatpush1.bf16.xpose.msra.mxu0 0
    %1933 = vmatprep.subr.bf16.mxu0 0
    %1934 = vmatpush1.bf16.xpose.msra.mxu0 0
    %1935 = vmatprep.subr.bf16.mxu0 0
    %1936 = vmatpush1.bf16.xpose.msra.mxu0 0
    %1937 = vmatprep.subr.bf16.mxu0 0
    %1938 = vmatpush1.bf16.xpose.msra.mxu0 0
    %1939 = vmatprep.subr.bf16.mxu0 0
    %1940 = vmatpush1.bf16.xpose.msra.mxu0 0
    %1941 = vmatprep.subr.bf16.mxu0 0
    %1942 = vmatpush1.bf16.xpose.msra.mxu0 0
    %1943 = vmatprep.subr.bf16.mxu0 0
    %1944 = vmatpush1.bf16.xpose.msra.mxu0 0
    %1945 = vmatprep.subr.bf16.mxu0 0
    %1946 = vmatpush1.bf16.xpose.msra.mxu0 0
    %1947 = vmatprep.subr.bf16.mxu0 0
    %1948 = vmatpush1.bf16.xpose.msra.mxu0 0
    %1949 = vmatprep.mubr.bf16.mxu0 0
    %1950 = vmatmul.mubr.bf16.gmra.mrb[0].mxu0 %v1916
    %v1951 = vpop.f32.mrb[0].mxu0
    %v1952 = vadd.f32 0.0, %v1951
    %v1953 = vpop.f32.mrb[0].mxu0
    %v1954 = vpop.f32.mrb[0].mxu0
    %v1955 = vadd.f32 0.0, %v1954
    %v1956 = vpop.f32.mrb[0].mxu0
    %1957 = vdwg.mxu0
    %v1958 = vsel %vm1867, %v1908, -inf
    %v1959 = vsel %vm1868, %v1911, -inf
    %vm1960 = vcmask 130048
    %v1961 = vsel %vm1960, %v1958, -inf
    %1962 = vmax.xlane.f32.xlu0 %v1961
    %v1963 = vpop.xlane.xlu0 %1962
    %v1964 = vsel %vm1960, %v1959, -inf
    %1965 = vmax.xlane.f32.xlu0 %v1964
    %v1966 = vpop.xlane.xlu0 %1965
    %v1967 = vsub.f32 %v1958, %v1963
    %v1968 = vsub.f32 %v1959, %v1966
    %v1969 = vmul.f32 %v1967, 1.442695
    %v1970 = vpow.pop %v1969
    %v1971 = vmul.f32 %v1968, 1.442695
    %v1972 = vpow.pop %v1971
    %v1973 = vsel %vm1960, %v1970, 0.0
    %1974 = vadd.xlane.f32.xlu0 %v1973
    %v1975 = vpop.xlane.xlu0 %1974
    %v1976 = vsel %vm1960, %v1972, 0.0
    %1977 = vadd.xlane.f32.xlu0 %v1976
    %v1978 = vpop.xlane.xlu0 %1977
    %v1979 = vrcp.pop %v1975
    %v1980 = vrcp.pop %v1978
    %v1981 = vmul.f32 %v1970, %v1979
    %v1982 = vmul.f32 %v1972, %v1980
    %v1983 = vpack.c.bf16 %v1982, %v1981
    %v1984 = vsel %vm1867, %v1952, -inf
    %v1985 = vsel %vm1868, %v1955, -inf
    %v1986 = vsel %vm1960, %v1984, -inf
    %1987 = vmax.xlane.f32.xlu0 %v1986
    %v1988 = vpop.xlane.xlu0 %1987
    %v1989 = vsel %vm1960, %v1985, -inf
    %1990 = vmax.xlane.f32.xlu0 %v1989
    %v1991 = vpop.xlane.xlu0 %1990
    %v1992 = vsub.f32 %v1984, %v1988
    %v1993 = vsub.f32 %v1985, %v1991
    %v1994 = vmul.f32 %v1992, 1.442695
    %v1995 = vpow.pop %v1994
    %v1996 = vmul.f32 %v1993, 1.442695
    %v1997 = vpow.pop %v1996
    %v1998 = vsel %vm1960, %v1995, 0.0
    %1999 = vadd.xlane.f32.xlu0 %v1998
    %v2000 = vpop.xlane.xlu0 %1999
    %v2001 = vsel %vm1960, %v1997, 0.0
    %2002 = vadd.xlane.f32.xlu0 %v2001
    %v2003 = vpop.xlane.xlu0 %2002
    %v2004 = vrcp.pop %v2000
    %v2005 = vrcp.pop %v2003
    %v2006 = vmul.f32 %v1995, %v2004
    %v2007 = vmul.f32 %v1997, %v2005
    %v2008 = vpack.c.bf16 %v2007, %v2006
    %v2009 = vmul.f32 %v1760, %v1854
    %v2010 = vmul.f32 %v1764, %v1854
    %v2011 = vpack.c.bf16 %v2010, %v2009
    %v2012 = vmul.f32 %v1760, %v1855
    %v2013 = vmul.f32 %v1764, %v1855
    %v2014 = vpack.c.bf16 %v2013, %v2012
    %v2016 = vsel %vm1960, %v2008, 0
    %2018 = vmatprep.subr.bf16.mxu0 0
    %2019 = vmatpush1.bf16.msra.mxu0 %v2014
    %2020 = vmatprep.subr.bf16.mxu0 0
    %2021 = vmatpush1.bf16.msra.mxu0 0
    %2022 = vmatprep.subr.bf16.mxu0 0
    %2023 = vmatpush1.bf16.msra.mxu0 0
    %2024 = vmatprep.subr.bf16.mxu0 0
    %2025 = vmatpush1.bf16.msra.mxu0 0
    %2026 = vmatprep.subr.bf16.mxu0 0
    %2027 = vmatpush1.bf16.msra.mxu0 0
    %2028 = vmatprep.subr.bf16.mxu0 0
    %2029 = vmatpush1.bf16.msra.mxu0 0
    %2030 = vmatprep.subr.bf16.mxu0 0
    %2031 = vmatpush1.bf16.msra.mxu0 0
    %2032 = vmatprep.subr.bf16.mxu0 0
    %2033 = vmatpush1.bf16.msra.mxu0 0
    %2034 = vmatprep.subr.bf16.mxu0 0
    %2035 = vmatpush1.bf16.msra.mxu0 0
    %2036 = vmatprep.subr.bf16.mxu0 0
    %2037 = vmatpush1.bf16.msra.mxu0 0
    %2038 = vmatprep.subr.bf16.mxu0 0
    %2039 = vmatpush1.bf16.msra.mxu0 0
    %2040 = vmatprep.subr.bf16.mxu0 0
    %2041 = vmatpush1.bf16.msra.mxu0 0
    %2042 = vmatprep.subr.bf16.mxu0 0
    %2043 = vmatpush1.bf16.msra.mxu0 0
    %2044 = vmatprep.subr.bf16.mxu0 0
    %2045 = vmatpush1.bf16.msra.mxu0 0
    %2046 = vmatprep.subr.bf16.mxu0 0
    %2047 = vmatpush1.bf16.msra.mxu0 0
    %2048 = vmatprep.subr.bf16.mxu0 0
    %2049 = vmatpush1.bf16.msra.mxu0 0
    %2050 = vmatprep.mubr.bf16.mxu0 0
    %2051 = vmatmul.mubr.bf16.gmra.mrb[0].mxu0 %v2016
    %v2052 = vpop.f32.mrb[0].mxu0
    %v2053 = vadd.f32 0.0, %v2052
    %v2054 = vpop.f32.mrb[0].mxu0
    %v2055 = vpop.f32.mrb[0].mxu0
    %v2056 = vadd.f32 0.0, %v2055
    %v2057 = vpop.f32.mrb[0].mxu0
    %2058 = vdwg.mxu0
    %v2060 = vsel %vm1960, %v1983, 0
    %2062 = vmatprep.subr.bf16.mxu0 0
    %2063 = vmatpush1.bf16.msra.mxu0 %v2011
    %2064 = vmatprep.subr.bf16.mxu0 0
    %2065 = vmatpush1.bf16.msra.mxu0 0
    %2066 = vmatprep.subr.bf16.mxu0 0
    %2067 = vmatpush1.bf16.msra.mxu0 0
    %2068 = vmatprep.subr.bf16.mxu0 0
    %2069 = vmatpush1.bf16.msra.mxu0 0
    %2070 = vmatprep.subr.bf16.mxu0 0
    %2071 = vmatpush1.bf16.msra.mxu0 0
    %2072 = vmatprep.subr.bf16.mxu0 0
    %2073 = vmatpush1.bf16.msra.mxu0 0
    %2074 = vmatprep.subr.bf16.mxu0 0
    %2075 = vmatpush1.bf16.msra.mxu0 0
    %2076 = vmatprep.subr.bf16.mxu0 0
    %2077 = vmatpush1.bf16.msra.mxu0 0
    %2078 = vmatprep.subr.bf16.mxu0 0
    %2079 = vmatpush1.bf16.msra.mxu0 0
    %2080 = vmatprep.subr.bf16.mxu0 0
    %2081 = vmatpush1.bf16.msra.mxu0 0
    %2082 = vmatprep.subr.bf16.mxu0 0
    %2083 = vmatpush1.bf16.msra.mxu0 0
    %2084 = vmatprep.subr.bf16.mxu0 0
    %2085 = vmatpush1.bf16.msra.mxu0 0
    %2086 = vmatprep.subr.bf16.mxu0 0
    %2087 = vmatpush1.bf16.msra.mxu0 0
    %2088 = vmatprep.subr.bf16.mxu0 0
    %2089 = vmatpush1.bf16.msra.mxu0 0
    %2090 = vmatprep.subr.bf16.mxu0 0
    %2091 = vmatpush1.bf16.msra.mxu0 0
    %2092 = vmatprep.subr.bf16.mxu0 0
    %2093 = vmatpush1.bf16.msra.mxu0 0
    %2094 = vmatprep.mubr.bf16.mxu0 0
    %2095 = vmatmul.mubr.bf16.gmra.mrb[0].mxu0 %v2060
    %v2096 = vpop.f32.mrb[0].mxu0
    %v2097 = vadd.f32 %v2053, %v2096
    %v2098 = vpop.f32.mrb[0].mxu0
    %v2099 = vpop.f32.mrb[0].mxu0
    %v2100 = vadd.f32 %v2056, %v2099
    %v2101 = vpop.f32.mrb[0].mxu0
    %2102 = vdwg.mxu0
    %v2103 = vpack.c.bf16 %v2100, %v2097
    %v2104 = vld [vmem:[#allocation7] sm:$0xff]
    %v2105 = vld [vmem:[#allocation7 + $0x8] sm:$0xf]
    %v2106 = vld [vmem:[#allocation7 + $0xc] sm:$0xff]
    %v2107 = vld [vmem:[#allocation7 + $0x14] sm:$0xf]
    %v2108 = vld [vmem:[#allocation7 + $0x18] sm:$0xff]
    %v2109 = vld [vmem:[#allocation7 + $0x20] sm:$0xf]
    %v2110 = vld [vmem:[#allocation7 + $0x24] sm:$0xff]
    %v2111 = vld [vmem:[#allocation7 + $0x2c] sm:$0xf]
    %v2112 = vld [vmem:[#allocation7 + $0x30] sm:$0xff]
    %v2113 = vld [vmem:[#allocation7 + $0x38] sm:$0xf]
    %v2114 = vld [vmem:[#allocation7 + $0x3c] sm:$0xff]
    %v2115 = vld [vmem:[#allocation7 + $0x44] sm:$0xf]
    %v2116 = vld [vmem:[#allocation7 + $0x48] sm:$0xff]
    %v2117 = vld [vmem:[#allocation7 + $0x50] sm:$0xf]
    %v2118 = vld [vmem:[#allocation7 + $0x54] sm:$0xff]
    %v2119 = vld [vmem:[#allocation7 + $0x5c] sm:$0xf]
    %v2120 = vld [vmem:[#allocation7 + $0x60] sm:$0xff]
    %v2121 = vld [vmem:[#allocation7 + $0x68] sm:$0xf]
    %v2122 = vld [vmem:[#allocation7 + $0x6c] sm:$0xff]
    %v2123 = vld [vmem:[#allocation7 + $0x74] sm:$0xf]
    %v2124 = vld [vmem:[#allocation7 + $0x78] sm:$0xff]
    %v2125 = vld [vmem:[#allocation7 + $0x80] sm:$0xf]
    %v2126 = vld [vmem:[#allocation7 + $0x84] sm:$0xff]
    %v2127 = vld [vmem:[#allocation7 + $0x8c] sm:$0xf]
    %v2128 = vld [vmem:[#allocation7 + $0x90] sm:$0xff]
    %v2129 = vld [vmem:[#allocation7 + $0x98] sm:$0xf]
    %v2130 = vld [vmem:[#allocation7 + $0x9c] sm:$0xff]
    %v2131 = vld [vmem:[#allocation7 + $0xa4] sm:$0xf]
    %v2132 = vld [vmem:[#allocation7 + $0xa8] sm:$0xff]
    %v2133 = vld [vmem:[#allocation7 + $0xb0] sm:$0xf]
    %v2134 = vld [vmem:[#allocation7 + $0xb4] sm:$0xff]
    %v2135 = vld [vmem:[#allocation7 + $0xbc] sm:$0xf]
    %v2136 = vpack.c.bf16 %v1678, %v1674
    %v2137 = vmul.f32 %v1504, %v1854
    %v2138 = vmul.f32 %v1508, %v1854
    %v2139 = vpack.c.bf16 %v2138, %v2137
    %2140 = vmatprep.subr.bf16.mxu0 0
    %2141 = vmatpush1.bf16.xpose.msra.mxu0 %v2136
    %2142 = vmatprep.subr.bf16.mxu0 0
    %2143 = vmatpush1.bf16.xpose.msra.mxu0 0
    %2144 = vmatprep.subr.bf16.mxu0 0
    %2145 = vmatpush1.bf16.xpose.msra.mxu0 0
    %2146 = vmatprep.subr.bf16.mxu0 0
    %2147 = vmatpush1.bf16.xpose.msra.mxu0 0
    %2148 = vmatprep.subr.bf16.mxu0 0
    %2149 = vmatpush1.bf16.xpose.msra.mxu0 0
    %2150 = vmatprep.subr.bf16.mxu0 0
    %2151 = vmatpush1.bf16.xpose.msra.mxu0 0
    %2152 = vmatprep.subr.bf16.mxu0 0
    %2153 = vmatpush1.bf16.xpose.msra.mxu0 0
    %2154 = vmatprep.subr.bf16.mxu0 0
    %2155 = vmatpush1.bf16.xpose.msra.mxu0 0
    %2156 = vmatprep.subr.bf16.mxu0 0
    %2157 = vmatpush1.bf16.xpose.msra.mxu0 0
    %2158 = vmatprep.subr.bf16.mxu0 0
    %2159 = vmatpush1.bf16.xpose.msra.mxu0 0
    %2160 = vmatprep.subr.bf16.mxu0 0
    %2161 = vmatpush1.bf16.xpose.msra.mxu0 0
    %2162 = vmatprep.subr.bf16.mxu0 0
    %2163 = vmatpush1.bf16.xpose.msra.mxu0 0
    %2164 = vmatprep.subr.bf16.mxu0 0
    %2165 = vmatpush1.bf16.xpose.msra.mxu0 0
    %2166 = vmatprep.subr.bf16.mxu0 0
    %2167 = vmatpush1.bf16.xpose.msra.mxu0 0
    %2168 = vmatprep.subr.bf16.mxu0 0
    %2169 = vmatpush1.bf16.xpose.msra.mxu0 0
    %2170 = vmatprep.subr.bf16.mxu0 0
    %2171 = vmatpush1.bf16.xpose.msra.mxu0 0
    %2172 = vmatprep.mubr.bf16.mxu0 0
    %2173 = vmatmul.mubr.bf16.gmra.mrb[0].mxu0 %v2139
    %v2174 = vpop.f32.mrb[0].mxu0
    %v2175 = vadd.f32 0.0, %v2174
    %v2176 = vpop.f32.mrb[0].mxu0
    %v2177 = vpop.f32.mrb[0].mxu0
    %v2178 = vadd.f32 0.0, %v2177
    %v2179 = vpop.f32.mrb[0].mxu0
    %2180 = vdwg.mxu0
    %v2181 = vmul.f32 %v1504, %v1855
    %v2182 = vmul.f32 %v1508, %v1855
    %v2183 = vpack.c.bf16 %v2182, %v2181
    %2184 = vmatprep.subr.bf16.mxu0 0
    %2185 = vmatpush1.bf16.xpose.msra.mxu0 %v2136
    %2186 = vmatprep.subr.bf16.mxu0 0
    %2187 = vmatpush1.bf16.xpose.msra.mxu0 0
    %2188 = vmatprep.subr.bf16.mxu0 0
    %2189 = vmatpush1.bf16.xpose.msra.mxu0 0
    %2190 = vmatprep.subr.bf16.mxu0 0
    %2191 = vmatpush1.bf16.xpose.msra.mxu0 0
    %2192 = vmatprep.subr.bf16.mxu0 0
    %2193 = vmatpush1.bf16.xpose.msra.mxu0 0
    %2194 = vmatprep.subr.bf16.mxu0 0
    %2195 = vmatpush1.bf16.xpose.msra.mxu0 0
    %2196 = vmatprep.subr.bf16.mxu0 0
    %2197 = vmatpush1.bf16.xpose.msra.mxu0 0
    %2198 = vmatprep.subr.bf16.mxu0 0
    %2199 = vmatpush1.bf16.xpose.msra.mxu0 0
    %2200 = vmatprep.subr.bf16.mxu0 0
    %2201 = vmatpush1.bf16.xpose.msra.mxu0 0
    %2202 = vmatprep.subr.bf16.mxu0 0
    %2203 = vmatpush1.bf16.xpose.msra.mxu0 0
    %2204 = vmatprep.subr.bf16.mxu0 0
    %2205 = vmatpush1.bf16.xpose.msra.mxu0 0
    %2206 = vmatprep.subr.bf16.mxu0 0
    %2207 = vmatpush1.bf16.xpose.msra.mxu0 0
    %2208 = vmatprep.subr.bf16.mxu0 0
    %2209 = vmatpush1.bf16.xpose.msra.mxu0 0
    %2210 = vmatprep.subr.bf16.mxu0 0
    %2211 = vmatpush1.bf16.xpose.msra.mxu0 0
    %2212 = vmatprep.subr.bf16.mxu0 0
    %2213 = vmatpush1.bf16.xpose.msra.mxu0 0
    %2214 = vmatprep.subr.bf16.mxu0 0
    %2215 = vmatpush1.bf16.xpose.msra.mxu0 0
    %2216 = vmatprep.mubr.bf16.mxu0 0
    %2217 = vmatmul.mubr.bf16.gmra.mrb[0].mxu0 %v2183
    %v2218 = vpop.f32.mrb[0].mxu0
    %v2219 = vadd.f32 0.0, %v2218
    %v2220 = vpop.f32.mrb[0].mxu0
    %v2221 = vpop.f32.mrb[0].mxu0
    %v2222 = vadd.f32 0.0, %v2221
    %v2223 = vpop.f32.mrb[0].mxu0
    %2224 = vdwg.mxu0
    %v2225 = vsel %vm1867, %v2175, -inf
    %v2226 = vsel %vm1868, %v2178, -inf
    %v2227 = vsel %vm1960, %v2225, -inf
    %2228 = vmax.xlane.f32.xlu0 %v2227
    %v2229 = vpop.xlane.xlu0 %2228
    %v2230 = vsel %vm1960, %v2226, -inf
    %2231 = vmax.xlane.f32.xlu0 %v2230
    %v2232 = vpop.xlane.xlu0 %2231
    %v2233 = vsub.f32 %v2225, %v2229
    %v2234 = vsub.f32 %v2226, %v2232
    %v2235 = vmul.f32 %v2233, 1.442695
    %v2236 = vpow.pop %v2235
    %v2237 = vmul.f32 %v2234, 1.442695
    %v2238 = vpow.pop %v2237
    %v2239 = vsel %vm1960, %v2236, 0.0
    %2240 = vadd.xlane.f32.xlu0 %v2239
    %v2241 = vpop.xlane.xlu0 %2240
    %v2242 = vsel %vm1960, %v2238, 0.0
    %2243 = vadd.xlane.f32.xlu0 %v2242
    %v2244 = vpop.xlane.xlu0 %2243
    %v2245 = vrcp.pop %v2241
    %v2246 = vrcp.pop %v2244
    %v2247 = vmul.f32 %v2236, %v2245
    %v2248 = vmul.f32 %v2238, %v2246
    %v2249 = vpack.c.bf16 %v2248, %v2247
    %v2250 = vsel %vm1867, %v2219, -inf
    %v2251 = vsel %vm1868, %v2222, -inf
    %v2252 = vsel %vm1960, %v2250, -inf
    %2253 = vmax.xlane.f32.xlu0 %v2252
    %v2254 = vpop.xlane.xlu0 %2253
    %v2255 = vsel %vm1960, %v2251, -inf
    %2256 = vmax.xlane.f32.xlu0 %v2255
    %v2257 = vpop.xlane.xlu0 %2256
    %v2258 = vsub.f32 %v2250, %v2254
    %v2259 = vsub.f32 %v2251, %v2257
    %v2260 = vmul.f32 %v2258, 1.442695
    %v2261 = vpow.pop %v2260
    %v2262 = vmul.f32 %v2259, 1.442695
    %v2263 = vpow.pop %v2262
    %v2264 = vsel %vm1960, %v2261, 0.0
    %2265 = vadd.xlane.f32.xlu0 %v2264
    %v2266 = vpop.xlane.xlu0 %2265
    %v2267 = vsel %vm1960, %v2263, 0.0
    %2268 = vadd.xlane.f32.xlu0 %v2267
    %v2269 = vpop.xlane.xlu0 %2268
    %v2270 = vrcp.pop %v2266
    %v2271 = vrcp.pop %v2269
    %v2272 = vmul.f32 %v2261, %v2270
    %v2273 = vmul.f32 %v2263, %v2271
    %v2274 = vpack.c.bf16 %v2273, %v2272
    %v2275 = vmul.f32 %v1762, %v1854
    %v2276 = vmul.f32 %v1766, %v1854
    %v2277 = vpack.c.bf16 %v2276, %v2275
    %v2278 = vmul.f32 %v1762, %v1855
    %v2279 = vmul.f32 %v1766, %v1855
    %v2280 = vpack.c.bf16 %v2279, %v2278
    %v2282 = vsel %vm1960, %v2274, 0
    %2284 = vmatprep.subr.bf16.mxu0 0
    %2285 = vmatpush1.bf16.msra.mxu0 %v2280
    %2286 = vmatprep.subr.bf16.mxu0 0
    %2287 = vmatpush1.bf16.msra.mxu0 0
    %2288 = vmatprep.subr.bf16.mxu0 0
    %2289 = vmatpush1.bf16.msra.mxu0 0
    %2290 = vmatprep.subr.bf16.mxu0 0
    %2291 = vmatpush1.bf16.msra.mxu0 0
    %2292 = vmatprep.subr.bf16.mxu0 0
    %2293 = vmatpush1.bf16.msra.mxu0 0
    %2294 = vmatprep.subr.bf16.mxu0 0
    %2295 = vmatpush1.bf16.msra.mxu0 0
    %2296 = vmatprep.subr.bf16.mxu0 0
    %2297 = vmatpush1.bf16.msra.mxu0 0
    %2298 = vmatprep.subr.bf16.mxu0 0
    %2299 = vmatpush1.bf16.msra.mxu0 0
    %2300 = vmatprep.subr.bf16.mxu0 0
    %2301 = vmatpush1.bf16.msra.mxu0 0
    %2302 = vmatprep.subr.bf16.mxu0 0
    %2303 = vmatpush1.bf16.msra.mxu0 0
    %2304 = vmatprep.subr.bf16.mxu0 0
    %2305 = vmatpush1.bf16.msra.mxu0 0
    %2306 = vmatprep.subr.bf16.mxu0 0
    %2307 = vmatpush1.bf16.msra.mxu0 0
    %2308 = vmatprep.subr.bf16.mxu0 0
    %2309 = vmatpush1.bf16.msra.mxu0 0
    %2310 = vmatprep.subr.bf16.mxu0 0
    %2311 = vmatpush1.bf16.msra.mxu0 0
    %2312 = vmatprep.subr.bf16.mxu0 0
    %2313 = vmatpush1.bf16.msra.mxu0 0
    %2314 = vmatprep.subr.bf16.mxu0 0
    %2315 = vmatpush1.bf16.msra.mxu0 0
    %2316 = vmatprep.mubr.bf16.mxu0 0
    %2317 = vmatmul.mubr.bf16.gmra.mrb[0].mxu0 %v2282
    %v2318 = vpop.f32.mrb[0].mxu0
    %v2319 = vadd.f32 0.0, %v2318
    %v2320 = vpop.f32.mrb[0].mxu0
    %v2321 = vpop.f32.mrb[0].mxu0
    %v2322 = vadd.f32 0.0, %v2321
    %v2323 = vpop.f32.mrb[0].mxu0
    %2324 = vdwg.mxu0
    %v2326 = vsel %vm1960, %v2249, 0
    %2328 = vmatprep.subr.bf16.mxu0 0
    %2329 = vmatpush1.bf16.msra.mxu0 %v2277
    %2330 = vmatprep.subr.bf16.mxu0 0
    %2331 = vmatpush1.bf16.msra.mxu0 0
    %2332 = vmatprep.subr.bf16.mxu0 0
    %2333 = vmatpush1.bf16.msra.mxu0 0
    %2334 = vmatprep.subr.bf16.mxu0 0
    %2335 = vmatpush1.bf16.msra.mxu0 0
    %2336 = vmatprep.subr.bf16.mxu0 0
    %2337 = vmatpush1.bf16.msra.mxu0 0
    %2338 = vmatprep.subr.bf16.mxu0 0
    %2339 = vmatpush1.bf16.msra.mxu0 0
    %2340 = vmatprep.subr.bf16.mxu0 0
    %2341 = vmatpush1.bf16.msra.mxu0 0
    %2342 = vmatprep.subr.bf16.mxu0 0
    %2343 = vmatpush1.bf16.msra.mxu0 0
    %2344 = vmatprep.subr.bf16.mxu0 0
    %2345 = vmatpush1.bf16.msra.mxu0 0
    %2346 = vmatprep.subr.bf16.mxu0 0
    %2347 = vmatpush1.bf16.msra.mxu0 0
    %2348 = vmatprep.subr.bf16.mxu0 0
    %2349 = vmatpush1.bf16.msra.mxu0 0
    %2350 = vmatprep.subr.bf16.mxu0 0
    %2351 = vmatpush1.bf16.msra.mxu0 0
    %2352 = vmatprep.subr.bf16.mxu0 0
    %2353 = vmatpush1.bf16.msra.mxu0 0
    %2354 = vmatprep.subr.bf16.mxu0 0
    %2355 = vmatpush1.bf16.msra.mxu0 0
    %2356 = vmatprep.subr.bf16.mxu0 0
    %2357 = vmatpush1.bf16.msra.mxu0 0
    %2358 = vmatprep.subr.bf16.mxu0 0
    %2359 = vmatpush1.bf16.msra.mxu0 0
    %2360 = vmatprep.mubr.bf16.mxu0 0
    %2361 = vmatmul.mubr.bf16.gmra.mrb[0].mxu0 %v2326
    %v2362 = vpop.f32.mrb[0].mxu0
    %v2363 = vadd.f32 %v2319, %v2362
    %v2364 = vpop.f32.mrb[0].mxu0
    %v2365 = vpop.f32.mrb[0].mxu0
    %v2366 = vadd.f32 %v2322, %v2365
    %v2367 = vpop.f32.mrb[0].mxu0
    %2368 = vdwg.mxu0
    %v2369 = vpack.c.bf16 %v2366, %v2363
    %v2370 = vld [vmem:[#allocation7 + $0xc0] sm:$0xff]
    %v2371 = vld [vmem:[#allocation7 + $0xc8] sm:$0xf]
    %v2372 = vld [vmem:[#allocation7 + $0xcc] sm:$0xff]
    %v2373 = vld [vmem:[#allocation7 + $0xd4] sm:$0xf]
    %v2374 = vld [vmem:[#allocation7 + $0xd8] sm:$0xff]
    %v2375 = vld [vmem:[#allocation7 + $0xe0] sm:$0xf]
    %v2376 = vld [vmem:[#allocation7 + $0xe4] sm:$0xff]
    %v2377 = vld [vmem:[#allocation7 + $0xec] sm:$0xf]
    %v2378 = vld [vmem:[#allocation7 + $0xf0] sm:$0xff]
    %v2379 = vld [vmem:[#allocation7 + $0xf8] sm:$0xf]
    %v2380 = vld [vmem:[#allocation7 + $0xfc] sm:$0xff]
    %v2381 = vld [vmem:[#allocation7 + $0x104] sm:$0xf]
    %v2382 = vld [vmem:[#allocation7 + $0x108] sm:$0xff]
    %v2383 = vld [vmem:[#allocation7 + $0x110] sm:$0xf]
    %v2384 = vld [vmem:[#allocation7 + $0x114] sm:$0xff]
    %v2385 = vld [vmem:[#allocation7 + $0x11c] sm:$0xf]
    %v2386 = vld [vmem:[#allocation7 + $0x120] sm:$0xff]
    %v2387 = vld [vmem:[#allocation7 + $0x128] sm:$0xf]
    %v2388 = vld [vmem:[#allocation7 + $0x12c] sm:$0xff]
    %v2389 = vld [vmem:[#allocation7 + $0x134] sm:$0xf]
    %v2390 = vld [vmem:[#allocation7 + $0x138] sm:$0xff]
    %v2391 = vld [vmem:[#allocation7 + $0x140] sm:$0xf]
    %v2392 = vld [vmem:[#allocation7 + $0x144] sm:$0xff]
    %v2393 = vld [vmem:[#allocation7 + $0x14c] sm:$0xf]
    %v2394 = vld [vmem:[#allocation7 + $0x150] sm:$0xff]
    %v2395 = vld [vmem:[#allocation7 + $0x158] sm:$0xf]
    %v2396 = vld [vmem:[#allocation7 + $0x15c] sm:$0xff]
    %v2397 = vld [vmem:[#allocation7 + $0x164] sm:$0xf]
    %v2398 = vld [vmem:[#allocation7 + $0x168] sm:$0xff]
    %v2399 = vld [vmem:[#allocation7 + $0x170] sm:$0xf]
    %v2400 = vld [vmem:[#allocation7 + $0x174] sm:$0xff]
    %v2401 = vld [vmem:[#allocation7 + $0x17c] sm:$0xf]
    %v2434 = vunpack.c.l.b16 %v2370
    %v2435 = vunpack.c.h.b16 %v2370
    %v2436 = vunpack.c.l.b16 %v2371
    %v2437 = vunpack.c.l.b16 %v2372
    %v2438 = vunpack.c.h.b16 %v2372
    %v2439 = vunpack.c.l.b16 %v2373
    %v2440 = vunpack.c.l.b16 %v2374
    %v2441 = vunpack.c.h.b16 %v2374
    %v2442 = vunpack.c.l.b16 %v2375
    %v2443 = vunpack.c.l.b16 %v2376
    %v2444 = vunpack.c.h.b16 %v2376
    %v2445 = vunpack.c.l.b16 %v2377
    %v2446 = vunpack.c.l.b16 %v2378
    %v2447 = vunpack.c.h.b16 %v2378
    %v2448 = vunpack.c.l.b16 %v2379
    %v2449 = vunpack.c.l.b16 %v2380
    %v2450 = vunpack.c.h.b16 %v2380
    %v2451 = vunpack.c.l.b16 %v2381
    %v2452 = vunpack.c.l.b16 %v2382
    %v2453 = vunpack.c.h.b16 %v2382
    %v2454 = vunpack.c.l.b16 %v2383
    %v2455 = vunpack.c.l.b16 %v2384
    %v2456 = vunpack.c.h.b16 %v2384
    %v2457 = vunpack.c.l.b16 %v2385
    %v2458 = vunpack.c.l.b16 %v2386
    %v2459 = vunpack.c.h.b16 %v2386
    %v2460 = vunpack.c.l.b16 %v2387
    %v2461 = vunpack.c.l.b16 %v2388
    %v2462 = vunpack.c.h.b16 %v2388
    %v2463 = vunpack.c.l.b16 %v2389
    %v2464 = vunpack.c.l.b16 %v2390
    %v2465 = vunpack.c.h.b16 %v2390
    %v2466 = vunpack.c.l.b16 %v2391
    %v2467 = vunpack.c.l.b16 %v2392
    %v2468 = vunpack.c.h.b16 %v2392
    %v2469 = vunpack.c.l.b16 %v2393
    %v2470 = vunpack.c.l.b16 %v2394
    %v2471 = vunpack.c.h.b16 %v2394
    %v2472 = vunpack.c.l.b16 %v2395
    %v2473 = vunpack.c.l.b16 %v2396
    %v2474 = vunpack.c.h.b16 %v2396
    %v2475 = vunpack.c.l.b16 %v2397
    %v2476 = vunpack.c.l.b16 %v2398
    %v2477 = vunpack.c.h.b16 %v2398
    %v2478 = vunpack.c.l.b16 %v2399
    %v2479 = vunpack.c.l.b16 %v2400
    %v2480 = vunpack.c.h.b16 %v2400
    %v2481 = vunpack.c.l.b16 %v2401
    %v2482 = vpack.c.b16 %v2437, %v2434
    %v2483 = vpack.c.b16 %v2438, %v2435
    %v2484 = vpack.c.b16 %v2439, %v2436
    %v2485 = vpack.c.b16 %v2443, %v2440
    %v2486 = vpack.c.b16 %v2444, %v2441
    %v2487 = vpack.c.b16 %v2445, %v2442
    %v2488 = vpack.c.b16 %v2449, %v2446
    %v2489 = vpack.c.b16 %v2450, %v2447
    %v2490 = vpack.c.b16 %v2451, %v2448
    %v2491 = vpack.c.b16 %v2455, %v2452
    %v2492 = vpack.c.b16 %v2456, %v2453
    %v2493 = vpack.c.b16 %v2457, %v2454
    %v2494 = vpack.c.b16 %v2461, %v2458
    %v2495 = vpack.c.b16 %v2462, %v2459
    %v2496 = vpack.c.b16 %v2463, %v2460
    %v2497 = vpack.c.b16 %v2467, %v2464
    %v2498 = vpack.c.b16 %v2468, %v2465
    %v2499 = vpack.c.b16 %v2469, %v2466
    %v2500 = vpack.c.b16 %v2473, %v2470
    %v2501 = vpack.c.b16 %v2474, %v2471
    %v2502 = vpack.c.b16 %v2475, %v2472
    %v2503 = vpack.c.b16 %v2479, %v2476
    %v2504 = vpack.c.b16 %v2480, %v2477
    %v2505 = vpack.c.b16 %v2481, %v2478
    %2530 = vmatprep.subr.bf16.mxu0 %v2483
    %2531 = vmatpush1.bf16.msra.mxu0 %v2482
    %2532 = vmatprep.subr.bf16.mxu0 %v2486
    %2533 = vmatpush1.bf16.msra.mxu0 %v2485
    %2534 = vmatprep.subr.bf16.mxu0 %v2489
    %2535 = vmatpush1.bf16.msra.mxu0 %v2488
    %2536 = vmatprep.subr.bf16.mxu0 %v2492
    %2537 = vmatpush1.bf16.msra.mxu0 %v2491
    %2538 = vmatprep.subr.bf16.mxu0 %v2495
    %2539 = vmatpush1.bf16.msra.mxu0 %v2494
    %2540 = vmatprep.subr.bf16.mxu0 %v2498
    %2541 = vmatpush1.bf16.msra.mxu0 %v2497
    %2542 = vmatprep.subr.bf16.mxu0 %v2501
    %2543 = vmatpush1.bf16.msra.mxu0 %v2500
    %2544 = vmatprep.subr.bf16.mxu0 %v2504
    %2545 = vmatpush1.bf16.msra.mxu0 %v2503
    %2546 = vmatprep.subr.bf16.mxu0 0
    %2547 = vmatpush1.bf16.msra.mxu0 0
    %2548 = vmatprep.subr.bf16.mxu0 0
    %2549 = vmatpush1.bf16.msra.mxu0 0
    %2550 = vmatprep.subr.bf16.mxu0 0
    %2551 = vmatpush1.bf16.msra.mxu0 0
    %2552 = vmatprep.subr.bf16.mxu0 0
    %2553 = vmatpush1.bf16.msra.mxu0 0
    %2554 = vmatprep.subr.bf16.mxu0 0
    %2555 = vmatpush1.bf16.msra.mxu0 0
    %2556 = vmatprep.subr.bf16.mxu0 0
    %2557 = vmatpush1.bf16.msra.mxu0 0
    %2558 = vmatprep.subr.bf16.mxu0 0
    %2559 = vmatpush1.bf16.msra.mxu0 0
    %2560 = vmatprep.subr.bf16.mxu0 0
    %2561 = vmatpush1.bf16.msra.mxu0 0
    %2562 = vmatprep.mubr.bf16.mxu0 0
    %2563 = vmatmul.mubr.bf16.gmra.mrb[0].mxu0 %v2369
    %v2564 = vpop.f32.mrb[0].mxu0
    %v2565 = vadd.f32 0.0, %v2564
    %v2566 = vpop.f32.mrb[0].mxu0
    %v2567 = vadd.f32 0.0, %v2566
    %v2568 = vpop.f32.mrb[0].mxu0
    %v2569 = vadd.f32 0.0, %v2568
    %v2570 = vpop.f32.mrb[0].mxu0
    %v2571 = vadd.f32 0.0, %v2570
    %2572 = vdwg.mxu0
    %2573 = vmatprep.subr.bf16.mxu0 0
    %2574 = vmatpush1.bf16.msra.mxu0 %v2484
    %2575 = vmatprep.subr.bf16.mxu0 0
    %2576 = vmatpush1.bf16.msra.mxu0 %v2487
    %2577 = vmatprep.subr.bf16.mxu0 0
    %2578 = vmatpush1.bf16.msra.mxu0 %v2490
    %2579 = vmatprep.subr.bf16.mxu0 0
    %2580 = vmatpush1.bf16.msra.mxu0 %v2493
    %2581 = vmatprep.subr.bf16.mxu0 0
    %2582 = vmatpush1.bf16.msra.mxu0 %v2496
    %2583 = vmatprep.subr.bf16.mxu0 0
    %2584 = vmatpush1.bf16.msra.mxu0 %v2499
    %2585 = vmatprep.subr.bf16.mxu0 0
    %2586 = vmatpush1.bf16.msra.mxu0 %v2502
    %2587 = vmatprep.subr.bf16.mxu0 0
    %2588 = vmatpush1.bf16.msra.mxu0 %v2505
    %2589 = vmatprep.subr.bf16.mxu0 0
    %2590 = vmatpush1.bf16.msra.mxu0 0
    %2591 = vmatprep.subr.bf16.mxu0 0
    %2592 = vmatpush1.bf16.msra.mxu0 0
    %2593 = vmatprep.subr.bf16.mxu0 0
    %2594 = vmatpush1.bf16.msra.mxu0 0
    %2595 = vmatprep.subr.bf16.mxu0 0
    %2596 = vmatpush1.bf16.msra.mxu0 0
    %2597 = vmatprep.subr.bf16.mxu0 0
    %2598 = vmatpush1.bf16.msra.mxu0 0
    %2599 = vmatprep.subr.bf16.mxu0 0
    %2600 = vmatpush1.bf16.msra.mxu0 0
    %2601 = vmatprep.subr.bf16.mxu0 0
    %2602 = vmatpush1.bf16.msra.mxu0 0
    %2603 = vmatprep.subr.bf16.mxu0 0
    %2604 = vmatpush1.bf16.msra.mxu0 0
    %2605 = vmatprep.mubr.bf16.mxu0 0
    %2606 = vmatmul.mubr.bf16.gmra.mrb[0].mxu0 %v2369
    %v2607 = vpop.f32.mrb[0].mxu0
    %v2608 = vadd.f32 0.0, %v2607
    %v2609 = vpop.f32.mrb[0].mxu0
    %v2610 = vpop.f32.mrb[0].mxu0
    %v2611 = vadd.f32 0.0, %v2610
    %v2612 = vpop.f32.mrb[0].mxu0
    %2613 = vdwg.mxu0
    %v2646 = vunpack.c.l.b16 %v2104
    %v2647 = vunpack.c.h.b16 %v2104
    %v2648 = vunpack.c.l.b16 %v2105
    %v2649 = vunpack.c.l.b16 %v2106
    %v2650 = vunpack.c.h.b16 %v2106
    %v2651 = vunpack.c.l.b16 %v2107
    %v2652 = vunpack.c.l.b16 %v2108
    %v2653 = vunpack.c.h.b16 %v2108
    %v2654 = vunpack.c.l.b16 %v2109
    %v2655 = vunpack.c.l.b16 %v2110
    %v2656 = vunpack.c.h.b16 %v2110
    %v2657 = vunpack.c.l.b16 %v2111
    %v2658 = vunpack.c.l.b16 %v2112
    %v2659 = vunpack.c.h.b16 %v2112
    %v2660 = vunpack.c.l.b16 %v2113
    %v2661 = vunpack.c.l.b16 %v2114
    %v2662 = vunpack.c.h.b16 %v2114
    %v2663 = vunpack.c.l.b16 %v2115
    %v2664 = vunpack.c.l.b16 %v2116
    %v2665 = vunpack.c.h.b16 %v2116
    %v2666 = vunpack.c.l.b16 %v2117
    %v2667 = vunpack.c.l.b16 %v2118
    %v2668 = vunpack.c.h.b16 %v2118
    %v2669 = vunpack.c.l.b16 %v2119
    %v2670 = vunpack.c.l.b16 %v2120
    %v2671 = vunpack.c.h.b16 %v2120
    %v2672 = vunpack.c.l.b16 %v2121
    %v2673 = vunpack.c.l.b16 %v2122
    %v2674 = vunpack.c.h.b16 %v2122
    %v2675 = vunpack.c.l.b16 %v2123
    %v2676 = vunpack.c.l.b16 %v2124
    %v2677 = vunpack.c.h.b16 %v2124
    %v2678 = vunpack.c.l.b16 %v2125
    %v2679 = vunpack.c.l.b16 %v2126
    %v2680 = vunpack.c.h.b16 %v2126
    %v2681 = vunpack.c.l.b16 %v2127
    %v2682 = vunpack.c.l.b16 %v2128
    %v2683 = vunpack.c.h.b16 %v2128
    %v2684 = vunpack.c.l.b16 %v2129
    %v2685 = vunpack.c.l.b16 %v2130
    %v2686 = vunpack.c.h.b16 %v2130
    %v2687 = vunpack.c.l.b16 %v2131
    %v2688 = vunpack.c.l.b16 %v2132
    %v2689 = vunpack.c.h.b16 %v2132
    %v2690 = vunpack.c.l.b16 %v2133
    %v2691 = vunpack.c.l.b16 %v2134
    %v2692 = vunpack.c.h.b16 %v2134
    %v2693 = vunpack.c.l.b16 %v2135
    %v2694 = vpack.c.b16 %v2649, %v2646
    %v2695 = vpack.c.b16 %v2650, %v2647
    %v2696 = vpack.c.b16 %v2651, %v2648
    %v2697 = vpack.c.b16 %v2655, %v2652
    %v2698 = vpack.c.b16 %v2656, %v2653
    %v2699 = vpack.c.b16 %v2657, %v2654
    %v2700 = vpack.c.b16 %v2661, %v2658
    %v2701 = vpack.c.b16 %v2662, %v2659
    %v2702 = vpack.c.b16 %v2663, %v2660
    %v2703 = vpack.c.b16 %v2667, %v2664
    %v2704 = vpack.c.b16 %v2668, %v2665
    %v2705 = vpack.c.b16 %v2669, %v2666
    %v2706 = vpack.c.b16 %v2673, %v2670
    %v2707 = vpack.c.b16 %v2674, %v2671
    %v2708 = vpack.c.b16 %v2675, %v2672
    %v2709 = vpack.c.b16 %v2679, %v2676
    %v2710 = vpack.c.b16 %v2680, %v2677
    %v2711 = vpack.c.b16 %v2681, %v2678
    %v2712 = vpack.c.b16 %v2685, %v2682
    %v2713 = vpack.c.b16 %v2686, %v2683
    %v2714 = vpack.c.b16 %v2687, %v2684
    %v2715 = vpack.c.b16 %v2691, %v2688
    %v2716 = vpack.c.b16 %v2692, %v2689
    %v2717 = vpack.c.b16 %v2693, %v2690
    %2742 = vmatprep.subr.bf16.mxu0 %v2695
    %2743 = vmatpush1.bf16.msra.mxu0 %v2694
    %2744 = vmatprep.subr.bf16.mxu0 %v2698
    %2745 = vmatpush1.bf16.msra.mxu0 %v2697
    %2746 = vmatprep.subr.bf16.mxu0 %v2701
    %2747 = vmatpush1.bf16.msra.mxu0 %v2700
    %2748 = vmatprep.subr.bf16.mxu0 %v2704
    %2749 = vmatpush1.bf16.msra.mxu0 %v2703
    %2750 = vmatprep.subr.bf16.mxu0 %v2707
    %2751 = vmatpush1.bf16.msra.mxu0 %v2706
    %2752 = vmatprep.subr.bf16.mxu0 %v2710
    %2753 = vmatpush1.bf16.msra.mxu0 %v2709
    %2754 = vmatprep.subr.bf16.mxu0 %v2713
    %2755 = vmatpush1.bf16.msra.mxu0 %v2712
    %2756 = vmatprep.subr.bf16.mxu0 %v2716
    %2757 = vmatpush1.bf16.msra.mxu0 %v2715
    %2758 = vmatprep.subr.bf16.mxu0 0
    %2759 = vmatpush1.bf16.msra.mxu0 0
    %2760 = vmatprep.subr.bf16.mxu0 0
    %2761 = vmatpush1.bf16.msra.mxu0 0
    %2762 = vmatprep.subr.bf16.mxu0 0
    %2763 = vmatpush1.bf16.msra.mxu0 0
    %2764 = vmatprep.subr.bf16.mxu0 0
    %2765 = vmatpush1.bf16.msra.mxu0 0
    %2766 = vmatprep.subr.bf16.mxu0 0
    %2767 = vmatpush1.bf16.msra.mxu0 0
    %2768 = vmatprep.subr.bf16.mxu0 0
    %2769 = vmatpush1.bf16.msra.mxu0 0
    %2770 = vmatprep.subr.bf16.mxu0 0
    %2771 = vmatpush1.bf16.msra.mxu0 0
    %2772 = vmatprep.subr.bf16.mxu0 0
    %2773 = vmatpush1.bf16.msra.mxu0 0
    %2774 = vmatprep.mubr.bf16.mxu0 0
    %2775 = vmatmul.mubr.bf16.gmra.mrb[0].mxu0 %v2103
    %v2776 = vpop.f32.mrb[0].mxu0
    %v2777 = vadd.f32 %v2565, %v2776
    %v2778 = vpop.f32.mrb[0].mxu0
    %v2779 = vadd.f32 %v2567, %v2778
    %v2780 = vpop.f32.mrb[0].mxu0
    %v2781 = vadd.f32 %v2569, %v2780
    %v2782 = vpop.f32.mrb[0].mxu0
    %v2783 = vadd.f32 %v2571, %v2782
    %2784 = vdwg.mxu0
    %2785 = vmatprep.subr.bf16.mxu0 0
    %2786 = vmatpush1.bf16.msra.mxu0 %v2696
    %2787 = vmatprep.subr.bf16.mxu0 0
    %2788 = vmatpush1.bf16.msra.mxu0 %v2699
    %2789 = vmatprep.subr.bf16.mxu0 0
    %2790 = vmatpush1.bf16.msra.mxu0 %v2702
    %2791 = vmatprep.subr.bf16.mxu0 0
    %2792 = vmatpush1.bf16.msra.mxu0 %v2705
    %2793 = vmatprep.subr.bf16.mxu0 0
    %2794 = vmatpush1.bf16.msra.mxu0 %v2708
    %2795 = vmatprep.subr.bf16.mxu0 0
    %2796 = vmatpush1.bf16.msra.mxu0 %v2711
    %2797 = vmatprep.subr.bf16.mxu0 0
    %2798 = vmatpush1.bf16.msra.mxu0 %v2714
    %2799 = vmatprep.subr.bf16.mxu0 0
    %2800 = vmatpush1.bf16.msra.mxu0 %v2717
    %2801 = vmatprep.subr.bf16.mxu0 0
    %2802 = vmatpush1.bf16.msra.mxu0 0
    %2803 = vmatprep.subr.bf16.mxu0 0
    %2804 = vmatpush1.bf16.msra.mxu0 0
    %2805 = vmatprep.subr.bf16.mxu0 0
    %2806 = vmatpush1.bf16.msra.mxu0 0
    %2807 = vmatprep.subr.bf16.mxu0 0
    %2808 = vmatpush1.bf16.msra.mxu0 0
    %2809 = vmatprep.subr.bf16.mxu0 0
    %2810 = vmatpush1.bf16.msra.mxu0 0
    %2811 = vmatprep.subr.bf16.mxu0 0
    %2812 = vmatpush1.bf16.msra.mxu0 0
    %2813 = vmatprep.subr.bf16.mxu0 0
    %2814 = vmatpush1.bf16.msra.mxu0 0
    %2815 = vmatprep.subr.bf16.mxu0 0
    %2816 = vmatpush1.bf16.msra.mxu0 0
    %2817 = vmatprep.mubr.bf16.mxu0 0
    %2818 = vmatmul.mubr.bf16.gmra.mrb[0].mxu0 %v2103
    %v2819 = vpop.f32.mrb[0].mxu0
    %v2820 = vadd.f32 %v2608, %v2819
    %v2821 = vpop.f32.mrb[0].mxu0
    %v2822 = vpop.f32.mrb[0].mxu0
    %v2823 = vadd.f32 %v2611, %v2822
    %v2824 = vpop.f32.mrb[0].mxu0
    %2825 = vdwg.mxu0
    %v2826 = vpack.c.bf16 %v1680, %v1676
    %v2827 = vmul.f32 %v1588, %v1854
    %v2828 = vmul.f32 %v1592, %v1854
    %v2829 = vpack.c.bf16 %v2828, %v2827
    %2830 = vmatprep.subr.bf16.mxu0 0
    %2831 = vmatpush1.bf16.xpose.msra.mxu0 %v2826
    %2832 = vmatprep.subr.bf16.mxu0 0
    %2833 = vmatpush1.bf16.xpose.msra.mxu0 0
    %2834 = vmatprep.subr.bf16.mxu0 0
    %2835 = vmatpush1.bf16.xpose.msra.mxu0 0
    %2836 = vmatprep.subr.bf16.mxu0 0
    %2837 = vmatpush1.bf16.xpose.msra.mxu0 0
    %2838 = vmatprep.subr.bf16.mxu0 0
    %2839 = vmatpush1.bf16.xpose.msra.mxu0 0
    %2840 = vmatprep.subr.bf16.mxu0 0
    %2841 = vmatpush1.bf16.xpose.msra.mxu0 0
    %2842 = vmatprep.subr.bf16.mxu0 0
    %2843 = vmatpush1.bf16.xpose.msra.mxu0 0
    %2844 = vmatprep.subr.bf16.mxu0 0
    %2845 = vmatpush1.bf16.xpose.msra.mxu0 0
    %2846 = vmatprep.subr.bf16.mxu0 0
    %2847 = vmatpush1.bf16.xpose.msra.mxu0 0
    %2848 = vmatprep.subr.bf16.mxu0 0
    %2849 = vmatpush1.bf16.xpose.msra.mxu0 0
    %2850 = vmatprep.subr.bf16.mxu0 0
    %2851 = vmatpush1.bf16.xpose.msra.mxu0 0
    %2852 = vmatprep.subr.bf16.mxu0 0
    %2853 = vmatpush1.bf16.xpose.msra.mxu0 0
    %2854 = vmatprep.subr.bf16.mxu0 0
    %2855 = vmatpush1.bf16.xpose.msra.mxu0 0
    %2856 = vmatprep.subr.bf16.mxu0 0
    %2857 = vmatpush1.bf16.xpose.msra.mxu0 0
    %2858 = vmatprep.subr.bf16.mxu0 0
    %2859 = vmatpush1.bf16.xpose.msra.mxu0 0
    %2860 = vmatprep.subr.bf16.mxu0 0
    %2861 = vmatpush1.bf16.xpose.msra.mxu0 0
    %2862 = vmatprep.mubr.bf16.mxu0 0
    %2863 = vmatmul.mubr.bf16.gmra.mrb[0].mxu0 %v2829
    %v2864 = vpop.f32.mrb[0].mxu0
    %v2865 = vadd.f32 0.0, %v2864
    %v2866 = vpop.f32.mrb[0].mxu0
    %v2867 = vpop.f32.mrb[0].mxu0
    %v2868 = vadd.f32 0.0, %v2867
    %v2869 = vpop.f32.mrb[0].mxu0
    %2870 = vdwg.mxu0
    %v2871 = vmul.f32 %v1588, %v1855
    %v2872 = vmul.f32 %v1592, %v1855
    %v2873 = vpack.c.bf16 %v2872, %v2871
    %2874 = vmatprep.subr.bf16.mxu0 0
    %2875 = vmatpush1.bf16.xpose.msra.mxu0 %v2826
    %2876 = vmatprep.subr.bf16.mxu0 0
    %2877 = vmatpush1.bf16.xpose.msra.mxu0 0
    %2878 = vmatprep.subr.bf16.mxu0 0
    %2879 = vmatpush1.bf16.xpose.msra.mxu0 0
    %2880 = vmatprep.subr.bf16.mxu0 0
    %2881 = vmatpush1.bf16.xpose.msra.mxu0 0
    %2882 = vmatprep.subr.bf16.mxu0 0
    %2883 = vmatpush1.bf16.xpose.msra.mxu0 0
    %2884 = vmatprep.subr.bf16.mxu0 0
    %2885 = vmatpush1.bf16.xpose.msra.mxu0 0
    %2886 = vmatprep.subr.bf16.mxu0 0
    %2887 = vmatpush1.bf16.xpose.msra.mxu0 0
    %2888 = vmatprep.subr.bf16.mxu0 0
    %2889 = vmatpush1.bf16.xpose.msra.mxu0 0
    %2890 = vmatprep.subr.bf16.mxu0 0
    %2891 = vmatpush1.bf16.xpose.msra.mxu0 0
    %2892 = vmatprep.subr.bf16.mxu0 0
    %2893 = vmatpush1.bf16.xpose.msra.mxu0 0
    %2894 = vmatprep.subr.bf16.mxu0 0
    %2895 = vmatpush1.bf16.xpose.msra.mxu0 0
    %2896 = vmatprep.subr.bf16.mxu0 0
    %2897 = vmatpush1.bf16.xpose.msra.mxu0 0
    %2898 = vmatprep.subr.bf16.mxu0 0
    %2899 = vmatpush1.bf16.xpose.msra.mxu0 0
    %2900 = vmatprep.subr.bf16.mxu0 0
    %2901 = vmatpush1.bf16.xpose.msra.mxu0 0
    %2902 = vmatprep.subr.bf16.mxu0 0
    %2903 = vmatpush1.bf16.xpose.msra.mxu0 0
    %2904 = vmatprep.subr.bf16.mxu0 0
    %2905 = vmatpush1.bf16.xpose.msra.mxu0 0
    %2906 = vmatprep.mubr.bf16.mxu0 0
    %2907 = vmatmul.mubr.bf16.gmra.mrb[0].mxu0 %v2873
    %v2908 = vpop.f32.mrb[0].mxu0
    %v2909 = vadd.f32 0.0, %v2908
    %v2910 = vpop.f32.mrb[0].mxu0
    %v2911 = vpop.f32.mrb[0].mxu0
    %v2912 = vadd.f32 0.0, %v2911
    %v2913 = vpop.f32.mrb[0].mxu0
    %2914 = vdwg.mxu0
    %v2915 = vsel %vm1867, %v2865, -inf
    %v2916 = vsel %vm1868, %v2868, -inf
    %v2917 = vsel %vm1960, %v2915, -inf
    %2918 = vmax.xlane.f32.xlu0 %v2917
    %v2919 = vpop.xlane.xlu0 %2918
    %v2920 = vsel %vm1960, %v2916, -inf
    %2921 = vmax.xlane.f32.xlu0 %v2920
    %v2922 = vpop.xlane.xlu0 %2921
    %v2923 = vsub.f32 %v2915, %v2919
    %v2924 = vsub.f32 %v2916, %v2922
    %v2925 = vmul.f32 %v2923, 1.442695
    %v2926 = vpow.pop %v2925
    %v2927 = vmul.f32 %v2924, 1.442695
    %v2928 = vpow.pop %v2927
    %v2929 = vsel %vm1960, %v2926, 0.0
    %2930 = vadd.xlane.f32.xlu0 %v2929
    %v2931 = vpop.xlane.xlu0 %2930
    %v2932 = vsel %vm1960, %v2928, 0.0
    %2933 = vadd.xlane.f32.xlu0 %v2932
    %v2934 = vpop.xlane.xlu0 %2933
    %v2935 = vrcp.pop %v2931
    %v2936 = vrcp.pop %v2934
    %v2937 = vmul.f32 %v2926, %v2935
    %v2938 = vmul.f32 %v2928, %v2936
    %v2939 = vpack.c.bf16 %v2938, %v2937
    %v2940 = vsel %vm1867, %v2909, -inf
    %v2941 = vsel %vm1868, %v2912, -inf
    %v2942 = vsel %vm1960, %v2940, -inf
    %2943 = vmax.xlane.f32.xlu0 %v2942
    %v2944 = vpop.xlane.xlu0 %2943
    %v2945 = vsel %vm1960, %v2941, -inf
    %2946 = vmax.xlane.f32.xlu0 %v2945
    %v2947 = vpop.xlane.xlu0 %2946
    %v2948 = vsub.f32 %v2940, %v2944
    %v2949 = vsub.f32 %v2941, %v2947
    %v2950 = vmul.f32 %v2948, 1.442695
    %v2951 = vpow.pop %v2950
    %v2952 = vmul.f32 %v2949, 1.442695
    %v2953 = vpow.pop %v2952
    %v2954 = vsel %vm1960, %v2951, 0.0
    %2955 = vadd.xlane.f32.xlu0 %v2954
    %v2956 = vpop.xlane.xlu0 %2955
    %v2957 = vsel %vm1960, %v2953, 0.0
    %2958 = vadd.xlane.f32.xlu0 %v2957
    %v2959 = vpop.xlane.xlu0 %2958
    %v2960 = vrcp.pop %v2956
    %v2961 = vrcp.pop %v2959
    %v2962 = vmul.f32 %v2951, %v2960
    %v2963 = vmul.f32 %v2953, %v2961
    %v2964 = vpack.c.bf16 %v2963, %v2962
    %v2965 = vmul.f32 %v1844, %v1854
    %v2966 = vmul.f32 %v1847, %v1854
    %v2967 = vpack.c.bf16 %v2966, %v2965
    %v2968 = vmul.f32 %v1844, %v1855
    %v2969 = vmul.f32 %v1847, %v1855
    %v2970 = vpack.c.bf16 %v2969, %v2968
    %v2972 = vsel %vm1960, %v2964, 0
    %2974 = vmatprep.subr.bf16.mxu0 0
    %2975 = vmatpush1.bf16.msra.mxu0 %v2970
    %2976 = vmatprep.subr.bf16.mxu0 0
    %2977 = vmatpush1.bf16.msra.mxu0 0
    %2978 = vmatprep.subr.bf16.mxu0 0
    %2979 = vmatpush1.bf16.msra.mxu0 0
    %2980 = vmatprep.subr.bf16.mxu0 0
    %2981 = vmatpush1.bf16.msra.mxu0 0
    %2982 = vmatprep.subr.bf16.mxu0 0
    %2983 = vmatpush1.bf16.msra.mxu0 0
    %2984 = vmatprep.subr.bf16.mxu0 0
    %2985 = vmatpush1.bf16.msra.mxu0 0
    %2986 = vmatprep.subr.bf16.mxu0 0
    %2987 = vmatpush1.bf16.msra.mxu0 0
    %2988 = vmatprep.subr.bf16.mxu0 0
    %2989 = vmatpush1.bf16.msra.mxu0 0
    %2990 = vmatprep.subr.bf16.mxu0 0
    %2991 = vmatpush1.bf16.msra.mxu0 0
    %2992 = vmatprep.subr.bf16.mxu0 0
    %2993 = vmatpush1.bf16.msra.mxu0 0
    %2994 = vmatprep.subr.bf16.mxu0 0
    %2995 = vmatpush1.bf16.msra.mxu0 0
    %2996 = vmatprep.subr.bf16.mxu0 0
    %2997 = vmatpush1.bf16.msra.mxu0 0
    %2998 = vmatprep.subr.bf16.mxu0 0
    %2999 = vmatpush1.bf16.msra.mxu0 0
    %3000 = vmatprep.subr.bf16.mxu0 0
    %3001 = vmatpush1.bf16.msra.mxu0 0
    %3002 = vmatprep.subr.bf16.mxu0 0
    %3003 = vmatpush1.bf16.msra.mxu0 0
    %3004 = vmatprep.subr.bf16.mxu0 0
    %3005 = vmatpush1.bf16.msra.mxu0 0
    %3006 = vmatprep.mubr.bf16.mxu0 0
    %3007 = vmatmul.mubr.bf16.gmra.mrb[0].mxu0 %v2972
    %v3008 = vpop.f32.mrb[0].mxu0
    %v3009 = vadd.f32 0.0, %v3008
    %v3010 = vpop.f32.mrb[0].mxu0
    %v3011 = vpop.f32.mrb[0].mxu0
    %v3012 = vadd.f32 0.0, %v3011
    %v3013 = vpop.f32.mrb[0].mxu0
    %3014 = vdwg.mxu0
    %v3016 = vsel %vm1960, %v2939, 0
    %3018 = vmatprep.subr.bf16.mxu0 0
    %3019 = vmatpush1.bf16.msra.mxu0 %v2967
    %3020 = vmatprep.subr.bf16.mxu0 0
    %3021 = vmatpush1.bf16.msra.mxu0 0
    %3022 = vmatprep.subr.bf16.mxu0 0
    %3023 = vmatpush1.bf16.msra.mxu0 0
    %3024 = vmatprep.subr.bf16.mxu0 0
    %3025 = vmatpush1.bf16.msra.mxu0 0
    %3026 = vmatprep.subr.bf16.mxu0 0
    %3027 = vmatpush1.bf16.msra.mxu0 0
    %3028 = vmatprep.subr.bf16.mxu0 0
    %3029 = vmatpush1.bf16.msra.mxu0 0
    %3030 = vmatprep.subr.bf16.mxu0 0
    %3031 = vmatpush1.bf16.msra.mxu0 0
    %3032 = vmatprep.subr.bf16.mxu0 0
    %3033 = vmatpush1.bf16.msra.mxu0 0
    %3034 = vmatprep.subr.bf16.mxu0 0
    %3035 = vmatpush1.bf16.msra.mxu0 0
    %3036 = vmatprep.subr.bf16.mxu0 0
    %3037 = vmatpush1.bf16.msra.mxu0 0
    %3038 = vmatprep.subr.bf16.mxu0 0
    %3039 = vmatpush1.bf16.msra.mxu0 0
    %3040 = vmatprep.subr.bf16.mxu0 0
    %3041 = vmatpush1.bf16.msra.mxu0 0
    %3042 = vmatprep.subr.bf16.mxu0 0
    %3043 = vmatpush1.bf16.msra.mxu0 0
    %3044 = vmatprep.subr.bf16.mxu0 0
    %3045 = vmatpush1.bf16.msra.mxu0 0
    %3046 = vmatprep.subr.bf16.mxu0 0
    %3047 = vmatpush1.bf16.msra.mxu0 0
    %3048 = vmatprep.subr.bf16.mxu0 0
    %3049 = vmatpush1.bf16.msra.mxu0 0
    %3050 = vmatprep.mubr.bf16.mxu0 0
    %3051 = vmatmul.mubr.bf16.gmra.mrb[0].mxu0 %v3016
    %v3052 = vpop.f32.mrb[0].mxu0
    %v3053 = vadd.f32 %v3009, %v3052
    %v3054 = vpop.f32.mrb[0].mxu0
    %v3055 = vpop.f32.mrb[0].mxu0
    %v3056 = vadd.f32 %v3012, %v3055
    %v3057 = vpop.f32.mrb[0].mxu0
    %3058 = vdwg.mxu0
    %v3059 = vpack.c.bf16 %v3056, %v3053
    %v3060 = vld [vmem:[#allocation7 + $0x180] sm:$0xff]
    %v3061 = vld [vmem:[#allocation7 + $0x188] sm:$0xf]
    %v3062 = vld [vmem:[#allocation7 + $0x18c] sm:$0xff]
    %v3063 = vld [vmem:[#allocation7 + $0x194] sm:$0xf]
    %v3064 = vld [vmem:[#allocation7 + $0x198] sm:$0xff]
    %v3065 = vld [vmem:[#allocation7 + $0x1a0] sm:$0xf]
    %v3066 = vld [vmem:[#allocation7 + $0x1a4] sm:$0xff]
    %v3067 = vld [vmem:[#allocation7 + $0x1ac] sm:$0xf]
    %v3068 = vld [vmem:[#allocation7 + $0x1b0] sm:$0xff]
    %v3069 = vld [vmem:[#allocation7 + $0x1b8] sm:$0xf]
    %v3070 = vld [vmem:[#allocation7 + $0x1bc] sm:$0xff]
    %v3071 = vld [vmem:[#allocation7 + $0x1c4] sm:$0xf]
    %v3072 = vld [vmem:[#allocation7 + $0x1c8] sm:$0xff]
    %v3073 = vld [vmem:[#allocation7 + $0x1d0] sm:$0xf]
    %v3074 = vld [vmem:[#allocation7 + $0x1d4] sm:$0xff]
    %v3075 = vld [vmem:[#allocation7 + $0x1dc] sm:$0xf]
    %v3076 = vld [vmem:[#allocation7 + $0x1e0] sm:$0xff]
    %v3077 = vld [vmem:[#allocation7 + $0x1e8] sm:$0xf]
    %v3078 = vld [vmem:[#allocation7 + $0x1ec] sm:$0xff]
    %v3079 = vld [vmem:[#allocation7 + $0x1f4] sm:$0xf]
    %v3080 = vld [vmem:[#allocation7 + $0x1f8] sm:$0xff]
    %v3081 = vld [vmem:[#allocation7 + $0x200] sm:$0xf]
    %v3082 = vld [vmem:[#allocation7 + $0x204] sm:$0xff]
    %v3083 = vld [vmem:[#allocation7 + $0x20c] sm:$0xf]
    %v3084 = vld [vmem:[#allocation7 + $0x210] sm:$0xff]
    %v3085 = vld [vmem:[#allocation7 + $0x218] sm:$0xf]
    %v3086 = vld [vmem:[#allocation7 + $0x21c] sm:$0xff]
    %v3087 = vld [vmem:[#allocation7 + $0x224] sm:$0xf]
    %v3088 = vld [vmem:[#allocation7 + $0x228] sm:$0xff]
    %v3089 = vld [vmem:[#allocation7 + $0x230] sm:$0xf]
    %v3090 = vld [vmem:[#allocation7 + $0x234] sm:$0xff]
    %v3091 = vld [vmem:[#allocation7 + $0x23c] sm:$0xf]
    %v3124 = vunpack.c.l.b16 %v3060
    %v3125 = vunpack.c.h.b16 %v3060
    %v3126 = vunpack.c.l.b16 %v3061
    %v3127 = vunpack.c.l.b16 %v3062
    %v3128 = vunpack.c.h.b16 %v3062
    %v3129 = vunpack.c.l.b16 %v3063
    %v3130 = vunpack.c.l.b16 %v3064
    %v3131 = vunpack.c.h.b16 %v3064
    %v3132 = vunpack.c.l.b16 %v3065
    %v3133 = vunpack.c.l.b16 %v3066
    %v3134 = vunpack.c.h.b16 %v3066
    %v3135 = vunpack.c.l.b16 %v3067
    %v3136 = vunpack.c.l.b16 %v3068
    %v3137 = vunpack.c.h.b16 %v3068
    %v3138 = vunpack.c.l.b16 %v3069
    %v3139 = vunpack.c.l.b16 %v3070
    %v3140 = vunpack.c.h.b16 %v3070
    %v3141 = vunpack.c.l.b16 %v3071
    %v3142 = vunpack.c.l.b16 %v3072
    %v3143 = vunpack.c.h.b16 %v3072
    %v3144 = vunpack.c.l.b16 %v3073
    %v3145 = vunpack.c.l.b16 %v3074
    %v3146 = vunpack.c.h.b16 %v3074
    %v3147 = vunpack.c.l.b16 %v3075
    %v3148 = vunpack.c.l.b16 %v3076
    %v3149 = vunpack.c.h.b16 %v3076
    %v3150 = vunpack.c.l.b16 %v3077
    %v3151 = vunpack.c.l.b16 %v3078
    %v3152 = vunpack.c.h.b16 %v3078
    %v3153 = vunpack.c.l.b16 %v3079
    %v3154 = vunpack.c.l.b16 %v3080
    %v3155 = vunpack.c.h.b16 %v3080
    %v3156 = vunpack.c.l.b16 %v3081
    %v3157 = vunpack.c.l.b16 %v3082
    %v3158 = vunpack.c.h.b16 %v3082
    %v3159 = vunpack.c.l.b16 %v3083
    %v3160 = vunpack.c.l.b16 %v3084
    %v3161 = vunpack.c.h.b16 %v3084
    %v3162 = vunpack.c.l.b16 %v3085
    %v3163 = vunpack.c.l.b16 %v3086
    %v3164 = vunpack.c.h.b16 %v3086
    %v3165 = vunpack.c.l.b16 %v3087
    %v3166 = vunpack.c.l.b16 %v3088
    %v3167 = vunpack.c.h.b16 %v3088
    %v3168 = vunpack.c.l.b16 %v3089
    %v3169 = vunpack.c.l.b16 %v3090
    %v3170 = vunpack.c.h.b16 %v3090
    %v3171 = vunpack.c.l.b16 %v3091
    %v3172 = vpack.c.b16 %v3127, %v3124
    %v3173 = vpack.c.b16 %v3128, %v3125
    %v3174 = vpack.c.b16 %v3129, %v3126
    %v3175 = vpack.c.b16 %v3133, %v3130
    %v3176 = vpack.c.b16 %v3134, %v3131
    %v3177 = vpack.c.b16 %v3135, %v3132
    %v3178 = vpack.c.b16 %v3139, %v3136
    %v3179 = vpack.c.b16 %v3140, %v3137
    %v3180 = vpack.c.b16 %v3141, %v3138
    %v3181 = vpack.c.b16 %v3145, %v3142
    %v3182 = vpack.c.b16 %v3146, %v3143
    %v3183 = vpack.c.b16 %v3147, %v3144
    %v3184 = vpack.c.b16 %v3151, %v3148
    %v3185 = vpack.c.b16 %v3152, %v3149
    %v3186 = vpack.c.b16 %v3153, %v3150
    %v3187 = vpack.c.b16 %v3157, %v3154
    %v3188 = vpack.c.b16 %v3158, %v3155
    %v3189 = vpack.c.b16 %v3159, %v3156
    %v3190 = vpack.c.b16 %v3163, %v3160
    %v3191 = vpack.c.b16 %v3164, %v3161
    %v3192 = vpack.c.b16 %v3165, %v3162
    %v3193 = vpack.c.b16 %v3169, %v3166
    %v3194 = vpack.c.b16 %v3170, %v3167
    %v3195 = vpack.c.b16 %v3171, %v3168
    %3220 = vmatprep.subr.bf16.mxu0 %v3173
    %3221 = vmatpush1.bf16.msra.mxu0 %v3172
    %3222 = vmatprep.subr.bf16.mxu0 %v3176
    %3223 = vmatpush1.bf16.msra.mxu0 %v3175
    %3224 = vmatprep.subr.bf16.mxu0 %v3179
    %3225 = vmatpush1.bf16.msra.mxu0 %v3178
    %3226 = vmatprep.subr.bf16.mxu0 %v3182
    %3227 = vmatpush1.bf16.msra.mxu0 %v3181
    %3228 = vmatprep.subr.bf16.mxu0 %v3185
    %3229 = vmatpush1.bf16.msra.mxu0 %v3184
    %3230 = vmatprep.subr.bf16.mxu0 %v3188
    %3231 = vmatpush1.bf16.msra.mxu0 %v3187
    %3232 = vmatprep.subr.bf16.mxu0 %v3191
    %3233 = vmatpush1.bf16.msra.mxu0 %v3190
    %3234 = vmatprep.subr.bf16.mxu0 %v3194
    %3235 = vmatpush1.bf16.msra.mxu0 %v3193
    %3236 = vmatprep.subr.bf16.mxu0 0
    %3237 = vmatpush1.bf16.msra.mxu0 0
    %3238 = vmatprep.subr.bf16.mxu0 0
    %3239 = vmatpush1.bf16.msra.mxu0 0
    %3240 = vmatprep.subr.bf16.mxu0 0
    %3241 = vmatpush1.bf16.msra.mxu0 0
    %3242 = vmatprep.subr.bf16.mxu0 0
    %3243 = vmatpush1.bf16.msra.mxu0 0
    %3244 = vmatprep.subr.bf16.mxu0 0
    %3245 = vmatpush1.bf16.msra.mxu0 0
    %3246 = vmatprep.subr.bf16.mxu0 0
    %3247 = vmatpush1.bf16.msra.mxu0 0
    %3248 = vmatprep.subr.bf16.mxu0 0
    %3249 = vmatpush1.bf16.msra.mxu0 0
    %3250 = vmatprep.subr.bf16.mxu0 0
    %3251 = vmatpush1.bf16.msra.mxu0 0
    %3252 = vmatprep.mubr.bf16.mxu0 0
    %3253 = vmatmul.mubr.bf16.gmra.mrb[0].mxu0 %v3059
    %v3254 = vpop.f32.mrb[0].mxu0
    %v3255 = vadd.f32 0.0, %v3254
    %v3256 = vpop.f32.mrb[0].mxu0
    %v3257 = vadd.f32 0.0, %v3256
    %v3258 = vpop.f32.mrb[0].mxu0
    %v3259 = vadd.f32 0.0, %v3258
    %v3260 = vpop.f32.mrb[0].mxu0
    %v3261 = vadd.f32 0.0, %v3260
    %3262 = vdwg.mxu0
    %3263 = vmatprep.subr.bf16.mxu0 0
    %3264 = vmatpush1.bf16.msra.mxu0 %v3174
    %3265 = vmatprep.subr.bf16.mxu0 0
    %3266 = vmatpush1.bf16.msra.mxu0 %v3177
    %3267 = vmatprep.subr.bf16.mxu0 0
    %3268 = vmatpush1.bf16.msra.mxu0 %v3180
    %3269 = vmatprep.subr.bf16.mxu0 0
    %3270 = vmatpush1.bf16.msra.mxu0 %v3183
    %3271 = vmatprep.subr.bf16.mxu0 0
    %3272 = vmatpush1.bf16.msra.mxu0 %v3186
    %3273 = vmatprep.subr.bf16.mxu0 0
    %3274 = vmatpush1.bf16.msra.mxu0 %v3189
    %3275 = vmatprep.subr.bf16.mxu0 0
    %3276 = vmatpush1.bf16.msra.mxu0 %v3192
    %3277 = vmatprep.subr.bf16.mxu0 0
    %3278 = vmatpush1.bf16.msra.mxu0 %v3195
    %3279 = vmatprep.subr.bf16.mxu0 0
    %3280 = vmatpush1.bf16.msra.mxu0 0
    %3281 = vmatprep.subr.bf16.mxu0 0
    %3282 = vmatpush1.bf16.msra.mxu0 0
    %3283 = vmatprep.subr.bf16.mxu0 0
    %3284 = vmatpush1.bf16.msra.mxu0 0
    %3285 = vmatprep.subr.bf16.mxu0 0
    %3286 = vmatpush1.bf16.msra.mxu0 0
    %3287 = vmatprep.subr.bf16.mxu0 0
    %3288 = vmatpush1.bf16.msra.mxu0 0
    %3289 = vmatprep.subr.bf16.mxu0 0
    %3290 = vmatpush1.bf16.msra.mxu0 0
    %3291 = vmatprep.subr.bf16.mxu0 0
    %3292 = vmatpush1.bf16.msra.mxu0 0
    %3293 = vmatprep.subr.bf16.mxu0 0
    %3294 = vmatpush1.bf16.msra.mxu0 0
    %3295 = vmatprep.mubr.bf16.mxu0 0
    %3296 = vmatmul.mubr.bf16.gmra.mrb[0].mxu0 %v3059
    %v3297 = vpop.f32.mrb[0].mxu0
    %v3298 = vadd.f32 0.0, %v3297
    %v3299 = vpop.f32.mrb[0].mxu0
    %v3300 = vpop.f32.mrb[0].mxu0
    %v3301 = vadd.f32 0.0, %v3300
    %v3302 = vpop.f32.mrb[0].mxu0
    %3303 = vdwg.mxu0
    %v3304 = vadd.f32 %v2777, %v3255
    %v3305 = vadd.f32 %v2779, %v3257
    %v3306 = vadd.f32 %v2820, %v3298
    %v3307 = vadd.f32 %v2781, %v3259
    %v3308 = vadd.f32 %v2783, %v3261
    %v3309 = vadd.f32 %v2823, %v3301
    %v3310 = vld [vmem:[%s3] sm:$0x7]
    %v3312 = vlaneseq
    %v3313 = vshrl.u32 %v3312, 7
    %v3314 = vsub.s32 0, %v3313
    %v3315 = vrot.slane %v3310, %v3314
    %v3316 = vlaneseq
    %v3317 = vshrl.u32 %v3316, 7
    %v3318 = vsub.s32 1, %v3317
    %v3319 = vrot.slane %v3310, %v3318
    %v3320 = vlaneseq
    %v3321 = vshrl.u32 %v3320, 7
    %v3322 = vsub.s32 2, %v3321
    %v3323 = vrot.slane %v3310, %v3322
    %v3327 = vadd.f32 %v3304, %v3315
    %v3328 = vadd.f32 %v3305, %v3319
    %v3329 = vadd.f32 %v3306, %v3323
    %v3330 = vadd.f32 %v3307, %v3315
    %v3331 = vadd.f32 %v3308, %v3319
    %v3332 = vadd.f32 %v3309, %v3323
    %3333 = vst [vmem:[#allocation8] sm:$0xff] %v3327
    %3334 = vst [vmem:[#allocation8 + $0x8] sm:$0xff] %v3328
    %3335 = vst [vmem:[#allocation8 + $0x10] sm:$0xff] %v3329
    %3336 = vst [vmem:[#allocation8 + $0x18] sm:$0xff] %v3330
    %3337 = vst [vmem:[#allocation8 + $0x20] sm:$0xff] %v3331
    %3338 = vst [vmem:[#allocation8 + $0x28] sm:$0xff] %v3332
    // Predicated region
    $region30: #{tpu_custom_call.1} parent=1 // pred_check
      _
    $region31: #{tpu_custom_call.1} parent=1 // pred_check_branch
      %3340 = sbr.rel (0) target = $region33
    $region32: #{tpu_custom_call.1} parent=1 // pred_region
      %s3342 = ssub.s32 768, 768
      %3343 = vsyncadd [#allocation4], %s3342
      %s3344 = sshll.u32 [#allocation8], 4
      %s3345 = int_to_ptr.vmem [resolvable:$true] %s3344
      %3350 = dma.vmem_to_hbm [thread:$0]  %s3345, 768, %s4, [#allocation4], 384, 384, 24
    $region33: #{tpu_custom_call.1} parent=1 // pred_fallthru
      _
    // Predicated region
    $region34: #{tpu_custom_call.1} parent=1 // pred_check
      _
    $region35: #{tpu_custom_call.1} parent=1 // pred_check_branch
      %3352 = sbr.rel (0) target = $region37
    $region36: #{tpu_custom_call.1} parent=1 // pred_region
      %3353 = dma.done [#allocation4], 768
    $region37: #{tpu_custom_call.1} parent=1 // pred_fallthru
      _
    %3354 = vsyncpa [#allocation3], 1
    %3355 = vsyncpa [#allocation6], 1
    %3356 = vsyncpa [#allocation4], 1

</llo_original>
